<compile_context>
chip_gen: v7x
topology: tpu7x:2x2x1
jax: 0.10.0
libtpu: 0.0.40
codegen_flags: <defaults>
</compile_context>

<pallas_src>
import functools

import jax
import jax.numpy as jnp
from jax.experimental import pallas as pl
from jax.experimental.pallas import tpu as pltpu

LN_EPS = 1e-5

try:
    _VMEM_PHYS = int(pltpu.get_tpu_info().vmem_capacity_bytes)
except Exception:  # fallback: assume the tightest generation (v7x, 64 MiB)
    _VMEM_PHYS = 64 << 20

# Conservative working-set target (leaves headroom for spills / compiler temps)
VMEM_BUDGET = int(min(28 << 20, _VMEM_PHYS // 3))
VMEM_LIMIT = int(min(96 << 20, (_VMEM_PHYS * 3) // 4))


# ---------------- small helpers ----------------

def _round_up(a, m):
    return (a + m - 1) // m * m


def _pick_seq_tile(total, per_unit_bytes, fixed_bytes, budget=None):
    """Largest tile (in sequences/images) whose estimated VMEM footprint fits
    the budget; prefers an even number of grid steps (v7x: 2 TensorCores on the
    'parallel' axis) when it does not shrink the tile below half the maximum."""
    if budget is None:
        budget = VMEM_BUDGET
    cap = max(1, (budget - fixed_bytes) // max(per_unit_bytes, 1))
    cap = int(min(cap, total))
    best, best_even = 0, 0
    for d in range(cap, 0, -1):
        if total % d:
            continue
        if best == 0:
            best = d
        if (total // d) % 2 == 0:
            best_even = d
            break
    if best == 0:
        best = max(1, cap)
    if best_even and best_even >= max(1, best // 2):
        best = best_even
    return best


def _row_tile(M, target=2048):
    """Row tile for standalone (LN-)linear kernels: multiple of 8, >=2 steps."""
    Mr = _round_up(M, 8)
    if Mr <= 16:
        return Mr
    return min(_round_up(target, 8), _round_up((M + 1) // 2, 8))


def _pixel_layer_bytes(N, D, inner, heads, Hf):
    """Rough per-sequence / fixed VMEM footprint of the fused pixel block."""
    per_seq = 4 * N * (4 * D            # x in + out blocks, double-buffered
                       + 4 * D          # f32 working copies of x / xn
                       + 4 * inner      # qkv (f32 + bf16) + attention output
                       + heads * N      # attention probabilities
                       + 2 * Hf)        # FF hidden (f32 + bf16)
    fixed = (2 * 2 * (3 * D * inner + inner * D + 2 * D * Hf)   # bf16 weights, 2x buffered
             + 4 * 4 * (4 * D + Hf))                            # LN / bias rows
    return per_seq, fixed


def _patch_layer_bytes(S, Fdim, Dp, inner, heads, Hf):
    per_img = 4 * (4 * S * Fdim                     # flat in, double-buffered
                   + 8 * S * Dp                     # patches in + out, double-buffered
                   + S * (6 * Dp + 4 * inner + heads * S + 2 * Hf))
    fixed = (2 * 2 * (Fdim * Dp + 3 * Dp * inner + inner * Dp + 2 * Dp * Hf)
             + 4 * 4 * (6 * Dp + Hf))
    return per_img, fixed


# ---------------- traced-in-kernel building blocks ----------------

def _layernorm(x, g, b):
    mu = jnp.mean(x, axis=-1, keepdims=True)
    var = jnp.mean(jnp.square(x - mu), axis=-1, keepdims=True)
    return (x - mu) * jax.lax.rsqrt(var + LN_EPS) * g + b


def _attn_residual(x, G, N, g_ref, b_ref, wqkv_ref, wout_ref, bout_ref,
                   heads, dim_head):
    """x: (G*N, D) f32.  Pre-norm multi-head attention + residual.
    The dim_head**-0.5 scale is already folded into the Q columns of wqkv."""
    inner = heads * dim_head
    xn = _layernorm(x, g_ref[...], b_ref[...]).astype(jnp.bfloat16)
    # One big QKV matmul on the flattened rows (large MXU M dimension).
    qkv = jnp.dot(xn, wqkv_ref[...], preferred_element_type=jnp.float32)
    qkv = qkv.astype(jnp.bfloat16)           # single cast for all heads / q,k,v
    head_outs = []
    for h in range(heads):                   # small static loop over heads
        q = qkv[:, h * dim_head:(h + 1) * dim_head].reshape(G, N, dim_head)
        k = qkv[:, inner + h * dim_head: inner + (h + 1) * dim_head
                ].reshape(G, N, dim_head)
        v = qkv[:, 2 * inner + h * dim_head: 2 * inner + (h + 1) * dim_head
                ].reshape(G, N, dim_head)
        # G-batched score / value matmuls.
        sim = jnp.einsum('bnd,bmd->bnm', q, k, preferred_element_type=jnp.float32)
        sim = sim - jnp.max(sim, axis=-1, keepdims=True)
        p = jnp.exp(sim)
        p = p / jnp.sum(p, axis=-1, keepdims=True)        # exact softmax
        head_outs.append(jnp.einsum('bnm,bmd->bnd', p.astype(jnp.bfloat16), v,
                                    preferred_element_type=jnp.float32))
    out = jnp.concatenate(head_outs, axis=-1).reshape(G * N, inner)
    return x + jnp.dot(out.astype(jnp.bfloat16), wout_ref[...],
                       preferred_element_type=jnp.float32) + bout_ref[...]


def _ff_residual(x, g_ref, b_ref, w1_ref, b1_ref, w2_ref, b2_ref):
    """x: (M, D) f32.  Pre-norm MLP (Linear-ReLU-Linear) + residual."""
    xn = _layernorm(x, g_ref[...], b_ref[...]).astype(jnp.bfloat16)
    h = jnp.maximum(
        jnp.dot(xn, w1_ref[...], preferred_element_type=jnp.float32) + b1_ref[...],
        0.0)
    return x + jnp.dot(h.astype(jnp.bfloat16), w2_ref[...],
                       preferred_element_type=jnp.float32) + b2_ref[...]


# ---------------- Pallas kernels ----------------

def _block_kernel(x_ref, ag_ref, ab_ref, wqkv_ref, wout_ref, bout_ref,
                  fg_ref, fb_ref, w1_ref, b1_ref, w2_ref, b2_ref, o_ref,
                  *, heads, dim_head):
    """Fused transformer block (attn + FF) on a (TB, N, D) block of sequences."""
    G, N, D = x_ref.shape
    x = x_ref[...].reshape(G * N, D)
    x = _attn_residual(x, G, N, ag_ref, ab_ref, wqkv_ref, wout_ref, bout_ref,
                       heads, dim_head)
    x = _ff_residual(x, fg_ref, fb_ref, w1_ref, b1_ref, w2_ref, b2_ref)
    o_ref[...] = x.reshape(G, N, D)


def _patch_layer_kernel(fp_ref, pt_ref, p2p_w_ref, p2p_b_ref,
                        ag_ref, ab_ref, wqkv_ref, wout_ref, bout_ref,
                        fg_ref, fb_ref, w1_ref, b1_ref, w2_ref, b2_ref,
                        o_ref, *, heads, dim_head):
    """Fused pixel->patch linear (F.pad semantics) + patch attn + patch FF."""
    G, S, Fdim = fp_ref.shape
    Dp = pt_ref.shape[-1]
    fp = fp_ref[...].reshape(G * S, Fdim).astype(jnp.bfloat16)
    pr = (jnp.dot(fp, p2p_w_ref[...], preferred_element_type=jnp.float32)
          + p2p_b_ref[...])
    # F.pad((0,0,1,0)): zero the residual for token 0 of every image.
    # Small (S, Dp) mask broadcast over G (not a full activation-sized iota).
    mask = jax.lax.broadcasted_iota(jnp.int32, (S, Dp), 0) >= 1
    pr = jnp.where(mask, pr.reshape(G, S, Dp), 0.0)
    x = (pt_ref[...] + pr).reshape(G * S, Dp)
    x = _attn_residual(x, G, S, ag_ref, ab_ref, wqkv_ref, wout_ref, bout_ref,
                       heads, dim_head)
    x = _ff_residual(x, fg_ref, fb_ref, w1_ref, b1_ref, w2_ref, b2_ref)
    o_ref[...] = x.reshape(G, S, Dp)


def _tokenizer_kernel(x_ref, w_ref, b_ref, pos_ref, o_ref):
    """Fused pixel tokenizer: linear + bias + pixel_pos_emb add."""
    TB, N, CK = x_ref.shape
    D = w_ref.shape[1]
    x = x_ref[...].reshape(TB * N, CK).astype(jnp.bfloat16)
    y = jnp.dot(x, w_ref[...], preferred_element_type=jnp.float32) + b_ref[...]
    o_ref[...] = y.reshape(TB, N, D) + pos_ref[...]


def _ln_linear_kernel(x_ref, g_ref, b_ref, w_ref, bias_ref, o_ref):
    xn = _layernorm(x_ref[...], g_ref[...], b_ref[...]).astype(jnp.bfloat16)
    o_ref[...] = (jnp.dot(xn, w_ref[...],
                          preferred_element_type=jnp.float32) + bias_ref[...])


# ---------------- wrappers ----------------

def pixel_tokenize(xu, w, b, pos):
    """xu: (Bp, N, c*K*K) f32 -> (Bp, N, pixel_dim) with bias + pos-emb fused."""
    Bs, N, CK = xu.shape
    D = w.shape[1]
    per_seq = 4 * N * (4 * CK + 6 * D)
    fixed = 2 * 2 * CK * D + 4 * (D + N * D)
    TB = _pick_seq_tile(Bs, per_seq, fixed)
    Bpad = _round_up(Bs, TB)
    xp = xu if Bpad == Bs else jnp.pad(xu, ((0, Bpad - Bs), (0, 0), (0, 0)))
    out = pl.pallas_call(
        _tokenizer_kernel,
        out_shape=jax.ShapeDtypeStruct((Bpad, N, D), jnp.float32),
        grid=(Bpad // TB,),
        in_specs=[
            pl.BlockSpec((TB, N, CK), lambda i: (i, 0, 0)),
            pl.BlockSpec((CK, D), lambda i: (0, 0)),
            pl.BlockSpec((1, D), lambda i: (0, 0)),
            pl.BlockSpec((N, D), lambda i: (0, 0)),
        ],
        out_specs=pl.BlockSpec((TB, N, D), lambda i: (i, 0, 0)),
        compiler_params=pltpu.CompilerParams(
            dimension_semantics=("parallel",), vmem_limit_bytes=VMEM_LIMIT),
    )(xp, w, b.reshape(1, D), pos)
    return out if Bpad == Bs else out[:Bs]


def pixel_block(x, lp, heads, dim_head):
    Bs, N, D = x.shape
    inner = heads * dim_head
    Hf = lp["pf_w1"].shape[1]
    per_seq, fixed = _pixel_layer_bytes(N, D, inner, heads, Hf)
    TB = _pick_seq_tile(Bs, per_seq, fixed)
    Bpad = _round_up(Bs, TB)
    xp = x if Bpad == Bs else jnp.pad(x, ((0, Bpad - Bs), (0, 0), (0, 0)))
    kernel = functools.partial(_block_kernel, heads=heads, dim_head=dim_head)
    c2 = lambda i: (0, 0)
    flops = (2 * Bpad * N * (3 * D * inner + inner * D + 2 * D * Hf)
             + 4 * Bpad * heads * N * N * dim_head)
    ce = pl.CostEstimate(
        flops=int(flops),
        transcendentals=int(Bpad * heads * N * N),
        bytes_accessed=int(8 * Bpad * N * D
                           + 2 * (3 * D * inner + inner * D + 2 * D * Hf)))
    out = pl.pallas_call(
        kernel,
        out_shape=jax.ShapeDtypeStruct((Bpad, N, D), jnp.float32),
        grid=(Bpad // TB,),
        in_specs=[
            pl.BlockSpec((TB, N, D), lambda i: (i, 0, 0)),
            pl.BlockSpec((1, D), c2), pl.BlockSpec((1, D), c2),
            pl.BlockSpec((D, 3 * inner), c2),
            pl.BlockSpec((inner, D), c2), pl.BlockSpec((1, D), c2),
            pl.BlockSpec((1, D), c2), pl.BlockSpec((1, D), c2),
            pl.BlockSpec((D, Hf), c2), pl.BlockSpec((1, Hf), c2),
            pl.BlockSpec((Hf, D), c2), pl.BlockSpec((1, D), c2),
        ],
        out_specs=pl.BlockSpec((TB, N, D), lambda i: (i, 0, 0)),
        compiler_params=pltpu.CompilerParams(
            dimension_semantics=("parallel",), vmem_limit_bytes=VMEM_LIMIT),
        cost_estimate=ce,
    )(xp,
      lp["pa_ln_g"].reshape(1, D), lp["pa_ln_b"].reshape(1, D),
      lp["pa_wqkv"], lp["pa_wout"], lp["pa_bout"].reshape(1, D),
      lp["pf_ln_g"].reshape(1, D), lp["pf_ln_b"].reshape(1, D),
      lp["pf_w1"], lp["pf_b1"].reshape(1, Hf), lp["pf_w2"],
      lp["pf_b2"].reshape(1, D))
    return out if Bpad == Bs else out[:Bs]


def patch_layer(flat, patches, lp, heads, dim_head):
    b, S, Fdim = flat.shape
    Dp = patches.shape[-1]
    inner = heads * dim_head
    Hf = lp["qf_w1"].shape[1]
    per_img, fixed = _patch_layer_bytes(S, Fdim, Dp, inner, heads, Hf)
    TB = _pick_seq_tile(b, per_img, fixed)
    bpad = _round_up(b, TB)
    fp = flat if bpad == b else jnp.pad(flat, ((0, bpad - b), (0, 0), (0, 0)))
    pt = patches if bpad == b else jnp.pad(patches, ((0, bpad - b), (0, 0), (0, 0)))
    kernel = functools.partial(_patch_layer_kernel, heads=heads, dim_head=dim_head)
    c2 = lambda i: (0, 0)
    flops = (2 * bpad * S * (Fdim * Dp + 3 * Dp * inner + inner * Dp + 2 * Dp * Hf)
             + 4 * bpad * heads * S * S * dim_head)
    ce = pl.CostEstimate(
        flops=int(flops),
        transcendentals=int(bpad * heads * S * S),
        bytes_accessed=int(4 * bpad * S * (Fdim + 2 * Dp)
                           + 2 * (Fdim * Dp + 3 * Dp * inner + inner * Dp
                                  + 2 * Dp * Hf)))
    out = pl.pallas_call(
        kernel,
        out_shape=jax.ShapeDtypeStruct((bpad, S, Dp), jnp.float32),
        grid=(bpad // TB,),
        in_specs=[
            pl.BlockSpec((TB, S, Fdim), lambda i: (i, 0, 0)),
            pl.BlockSpec((TB, S, Dp), lambda i: (i, 0, 0)),
            pl.BlockSpec((Fdim, Dp), c2), pl.BlockSpec((1, Dp), c2),
            pl.BlockSpec((1, Dp), c2), pl.BlockSpec((1, Dp), c2),
            pl.BlockSpec((Dp, 3 * inner), c2),
            pl.BlockSpec((inner, Dp), c2), pl.BlockSpec((1, Dp), c2),
            pl.BlockSpec((1, Dp), c2), pl.BlockSpec((1, Dp), c2),
            pl.BlockSpec((Dp, Hf), c2), pl.BlockSpec((1, Hf), c2),
            pl.BlockSpec((Hf, Dp), c2), pl.BlockSpec((1, Dp), c2),
        ],
        out_specs=pl.BlockSpec((TB, S, Dp), lambda i: (i, 0, 0)),
        compiler_params=pltpu.CompilerParams(
            dimension_semantics=("parallel",), vmem_limit_bytes=VMEM_LIMIT),
        cost_estimate=ce,
    )(fp, pt,
      lp["p2p_w"], lp["p2p_b"].reshape(1, Dp),
      lp["qa_ln_g"].reshape(1, Dp), lp["qa_ln_b"].reshape(1, Dp),
      lp["qa_wqkv"], lp["qa_wout"], lp["qa_bout"].reshape(1, Dp),
      lp["qf_ln_g"].reshape(1, Dp), lp["qf_ln_b"].reshape(1, Dp),
      lp["qf_w1"], lp["qf_b1"].reshape(1, Hf), lp["qf_w2"],
      lp["qf_b2"].reshape(1, Dp))
    return out if bpad == b else out[:b]


def ln_linear(x2d, g, bn, w, b, target_rows=2048):
    M, D = x2d.shape
    Dout = w.shape[1]
    tm = _row_tile(M, target_rows)
    Mp = _round_up(M, tm)
    xp = x2d if Mp == M else jnp.pad(x2d, ((0, Mp - M), (0, 0)))
    out = pl.pallas_call(
        _ln_linear_kernel,
        out_shape=jax.ShapeDtypeStruct((Mp, Dout), jnp.float32),
        grid=(Mp // tm,),
        in_specs=[
            pl.BlockSpec((tm, D), lambda i: (i, 0)),
            pl.BlockSpec((1, D), lambda i: (0, 0)),
            pl.BlockSpec((1, D), lambda i: (0, 0)),
            pl.BlockSpec((D, Dout), lambda i: (0, 0)),
            pl.BlockSpec((1, Dout), lambda i: (0, 0)),
        ],
        out_specs=pl.BlockSpec((tm, Dout), lambda i: (i, 0)),
        compiler_params=pltpu.CompilerParams(
            dimension_semantics=("parallel",), vmem_limit_bytes=VMEM_LIMIT),
    )(xp, g.reshape(1, D), bn.reshape(1, D), w, b.reshape(1, Dout))
    return out if Mp == M else out[:M]


# ---------------- Encoder forward ----------------

def encoder_forward(x, params, cfg):
    b, c, H, W = x.shape
    P = cfg["patch_size"]
    K = P // cfg["pixel_size"]              # pixel_width
    npp = cfg["image_size"] // P            # patches per side
    nb = P // K                             # unfold blocks per side
    pixel_dim = cfg["pixel_dim"]
    patch_dim = cfg["patch_dim"]
    heads, dim_head = cfg["heads"], cfg["dim_head"]
    N = nb * nb                             # num_pixels per patch
    S = npp * npp + 1                       # patch tokens (+cls)
    Bp = b * npp * npp
    CK = c * K * K
    Fdim = N * pixel_dim

    # --- to_pixel_tokens (index shuffles as XLA glue, matmul in Pallas) ---
    # Rearrange 'b c (p1 h) (p2 w) -> (b h w) c p1 p2' with p1=p2=patch_size
    xr = x.reshape(b, c, P, npp, P, npp)
    xr = xr.transpose(0, 3, 5, 1, 2, 4).reshape(Bp, c, P, P)
    # nn.Unfold(K, stride=K) -> (B', c*K*K, L) then '... c n -> ... n c'
    xu = xr.reshape(Bp, c, nb, K, nb, K)
    xu = xu.transpose(0, 2, 4, 1, 3, 5).reshape(Bp, N, CK)
    # Fused: linear + bias + pixel_pos_emb add.
    pixels = pixel_tokenize(xu, params["pix_w"], params["pix_b"],
                            params["pixel_pos_emb"])

    patches = jnp.broadcast_to(
        (params["patch_tokens"] + params["patch_pos_emb"])[None], (b, S, patch_dim))

    # TODO(synk): dropout layers are identity (p=0.0) and are omitted.
    for lp in params["layers"]:
        # fused pixel attn + FF (one pallas_call)
        pixels = pixel_block(pixels, lp, heads, dim_head)
        # '(b h w) n d -> b (h w) (n d)' is a contiguous reshape; pad a zero
        # leading token row per image (the kernel masks its p2p residual).
        flat = jnp.pad(pixels.reshape(b, npp * npp, Fdim),
                       ((0, 0), (1, 0), (0, 0)))
        # fused p2p linear + pad-add + patch attn + patch FF (one pallas_call)
        patches = patch_layer(flat, patches, lp, heads, dim_head)

    # mlp_head applied to both `patches` and `patch_pos_emb` in one call.
    rows = jnp.concatenate(
        [patches.reshape(b * S, patch_dim), params["patch_pos_emb"]], axis=0)
    head_out = ln_linear(rows, params["head_ln_g"], params["head_ln_b"],
                         params["head_w"], params["head_b"])
    out = head_out[:b * S].reshape(b, S, cfg["out_dim"])
    patch_pos = head_out[b * S:]
    return out, patch_pos


# ---------------- deterministic parameter init ----------------

def init_params(key, cfg):
    heads, dim_head = cfg["heads"], cfg["dim_head"]
    inner = heads * dim_head
    scale = dim_head ** (-0.5)
    patch_dim, pixel_dim = cfg["patch_dim"], cfg["pixel_dim"]
    P = cfg["patch_size"]
    K = P // cfg["pixel_size"]
    npp = cfg["image_size"] // P
    num_patch_tokens = npp * npp
    num_pixels = (P // K) ** 2
    c = cfg["image_dim"]

    keys = iter(jax.random.split(key, 512))

    def nrm(shape, std=0.02, dtype=jnp.float32):
        return (std * jax.random.normal(next(keys), shape, jnp.float32)).astype(dtype)

    # matmul weights stored in bf16 (MXU path); everything else f32.
    # NOTE: bf16 weights are an intentional tolerance vs. the f32 reference.
    W = functools.partial(nrm, dtype=jnp.bfloat16)

    def qkv_weight(dim):
        # dim_head**-0.5 softmax scale folded into the Q columns (one-time
        # host-side prep; removes a per-element VPU multiply in the kernel).
        w = 0.02 * jax.random.normal(next(keys), (dim, 3 * inner), jnp.float32)
        w = w.at[:, :inner].multiply(scale)
        return w.astype(jnp.bfloat16)

    params = {
        "patch_tokens": nrm((num_patch_tokens + 1, patch_dim), 1.0),
        "patch_pos_emb": nrm((num_patch_tokens + 1, patch_dim), 1.0),
        "pixel_pos_emb": nrm((num_pixels, pixel_dim), 1.0),
        "pix_w": W((c * K * K, pixel_dim)),
        "pix_b": nrm((pixel_dim,)),
        "head_ln_g": jnp.ones((patch_dim,), jnp.float32),
        "head_ln_b": jnp.zeros((patch_dim,), jnp.float32),
        "head_w": W((patch_dim, cfg["out_dim"])),
        "head_b": nrm((cfg["out_dim"],)),
        "layers": [],
    }
    for _ in range(cfg["depth"]):
        lp = {
            "pa_ln_g": jnp.ones((pixel_dim,), jnp.float32),
            "pa_ln_b": jnp.zeros((pixel_dim,), jnp.float32),
            "pa_wqkv": qkv_weight(pixel_dim),
            "pa_wout": W((inner, pixel_dim)),
            "pa_bout": nrm((pixel_dim,)),
            "pf_ln_g": jnp.ones((pixel_dim,), jnp.float32),
            "pf_ln_b": jnp.zeros((pixel_dim,), jnp.float32),
            "pf_w1": W((pixel_dim, 4 * pixel_dim)),
            "pf_b1": nrm((4 * pixel_dim,)),
            "pf_w2": W((4 * pixel_dim, pixel_dim)),
            "pf_b2": nrm((pixel_dim,)),
            "p2p_w": W((pixel_dim * num_pixels, patch_dim)),
            "p2p_b": nrm((patch_dim,)),
            "qa_ln_g": jnp.ones((patch_dim,), jnp.float32),
            "qa_ln_b": jnp.zeros((patch_dim,), jnp.float32),
            "qa_wqkv": qkv_weight(patch_dim),
            "qa_wout": W((inner, patch_dim)),
            "qa_bout": nrm((patch_dim,)),
            "qf_ln_g": jnp.ones((patch_dim,), jnp.float32),
            "qf_ln_b": jnp.zeros((patch_dim,), jnp.float32),
            "qf_w1": W((patch_dim, 4 * patch_dim)),
            "qf_b1": nrm((4 * patch_dim,)),
            "qf_w2": W((4 * patch_dim, patch_dim)),
            "qf_b2": nrm((patch_dim,)),
        }
        params["layers"].append(lp)
    return params


if __name__ == "__main__":
    cfg = dict(image_dim=4, image_size=8, patch_dim=32, pixel_dim=16,
               patch_size=4, pixel_size=2, depth=2, out_dim=8,
               heads=2, dim_head=8)
    params = init_params(jax.random.PRNGKey(0), cfg)
    x = jax.random.normal(jax.random.PRNGKey(1),
                          (2, cfg["image_dim"], cfg["image_size"], cfg["image_size"]),
                          jnp.float32)

    fwd = jax.jit(functools.partial(encoder_forward, cfg=cfg))
    out, patch_pos = fwd(x, params)
    jax.block_until_ready((out, patch_pos))

    num_patch_tokens = (cfg["image_size"] // cfg["patch_size"]) ** 2
    assert out.shape == (2, num_patch_tokens + 1, cfg["out_dim"])
    assert patch_pos.shape == (num_patch_tokens + 1, cfg["out_dim"])
    assert jnp.all(jnp.isfinite(out)) and jnp.all(jnp.isfinite(patch_pos))
    print("KERNEL_OK")
</pallas_src>

<mosaic_0001>
module attributes {stable_mosaic.version = 11 : i64} {
  func.func @_block_kernel(%arg0: i32, %arg1: memref<4x4x16xf32, #tpu.memory_space<vmem>>, %arg2: memref<1x16xf32, #tpu.memory_space<vmem>>, %arg3: memref<1x16xf32, #tpu.memory_space<vmem>>, %arg4: memref<16x48xbf16, #tpu.memory_space<vmem>>, %arg5: memref<16x16xbf16, #tpu.memory_space<vmem>>, %arg6: memref<1x16xf32, #tpu.memory_space<vmem>>, %arg7: memref<1x16xf32, #tpu.memory_space<vmem>>, %arg8: memref<1x16xf32, #tpu.memory_space<vmem>>, %arg9: memref<16x64xbf16, #tpu.memory_space<vmem>>, %arg10: memref<1x64xf32, #tpu.memory_space<vmem>>, %arg11: memref<64x16xbf16, #tpu.memory_space<vmem>>, %arg12: memref<1x16xf32, #tpu.memory_space<vmem>>, %arg13: memref<4x4x16xf32, #tpu.memory_space<vmem>>) attributes {dimension_semantics = [#tpu.dimension_semantics<parallel>], iteration_bounds = array<i64: 2>, scalar_prefetch = 0 : i64, scratch_operands = 0 : i64, tpu.core_type = #tpu.core_type<tc>, window_params = [{transform_indices = @transform_0, window_bounds = array<i64: 4, 4, 16>}, {pipeline_mode = #tpu.pipeline_mode<synchronous>, transform_indices = @transform_1, window_bounds = array<i64: 1, 16>}, {pipeline_mode = #tpu.pipeline_mode<synchronous>, transform_indices = @transform_2, window_bounds = array<i64: 1, 16>}, {pipeline_mode = #tpu.pipeline_mode<synchronous>, transform_indices = @transform_3, window_bounds = array<i64: 16, 48>}, {pipeline_mode = #tpu.pipeline_mode<synchronous>, transform_indices = @transform_4, window_bounds = array<i64: 16, 16>}, {pipeline_mode = #tpu.pipeline_mode<synchronous>, transform_indices = @transform_5, window_bounds = array<i64: 1, 16>}, {pipeline_mode = #tpu.pipeline_mode<synchronous>, transform_indices = @transform_6, window_bounds = array<i64: 1, 16>}, {pipeline_mode = #tpu.pipeline_mode<synchronous>, transform_indices = @transform_7, window_bounds = array<i64: 1, 16>}, {pipeline_mode = #tpu.pipeline_mode<synchronous>, transform_indices = @transform_8, window_bounds = array<i64: 16, 64>}, {pipeline_mode = #tpu.pipeline_mode<synchronous>, transform_indices = @transform_9, window_bounds = array<i64: 1, 64>}, {pipeline_mode = #tpu.pipeline_mode<synchronous>, transform_indices = @transform_10, window_bounds = array<i64: 64, 16>}, {pipeline_mode = #tpu.pipeline_mode<synchronous>, transform_indices = @transform_11, window_bounds = array<i64: 1, 16>}, {transform_indices = @transform_12, window_bounds = array<i64: 4, 4, 16>}]} {
    %c0 = arith.constant 0 : index
    %c0_0 = arith.constant 0 : index
    %c0_1 = arith.constant 0 : index
    %0 = vector.load %arg1[%c0, %c0_0, %c0_1] : memref<4x4x16xf32, #tpu.memory_space<vmem>>, vector<4x4x16xf32>
    %1 = vector.shape_cast %0 : vector<4x4x16xf32> to vector<16x16xf32>
    %c0_2 = arith.constant 0 : index
    %c0_3 = arith.constant 0 : index
    %2 = vector.load %arg2[%c0_2, %c0_3] : memref<1x16xf32, #tpu.memory_space<vmem>>, vector<1x16xf32>
    %c0_4 = arith.constant 0 : index
    %c0_5 = arith.constant 0 : index
    %3 = vector.load %arg3[%c0_4, %c0_5] : memref<1x16xf32, #tpu.memory_space<vmem>>, vector<1x16xf32>
    %cst = arith.constant dense<0.000000e+00> : vector<16xf32>
    %4 = vector.multi_reduction <add>, %1, %cst [1] : vector<16x16xf32> to vector<16xf32>
    %5 = vector.shape_cast %4 : vector<16xf32> to vector<16x1xf32>
    %cst_6 = arith.constant 1.600000e+01 : f32
    %6 = vector.broadcast %cst_6 : f32 to vector<16x1xf32>
    %7 = arith.divf %5, %6 : vector<16x1xf32>
    %8 = vector.broadcast %7 : vector<16x1xf32> to vector<16x16xf32>
    %9 = arith.subf %1, %8 : vector<16x16xf32>
    %10 = arith.mulf %9, %9 : vector<16x16xf32>
    %cst_7 = arith.constant dense<0.000000e+00> : vector<16xf32>
    %11 = vector.multi_reduction <add>, %10, %cst_7 [1] : vector<16x16xf32> to vector<16xf32>
    %12 = vector.shape_cast %11 : vector<16xf32> to vector<16x1xf32>
    %cst_8 = arith.constant 1.600000e+01 : f32
    %13 = vector.broadcast %cst_8 : f32 to vector<16x1xf32>
    %14 = arith.divf %12, %13 : vector<16x1xf32>
    %15 = vector.broadcast %7 : vector<16x1xf32> to vector<16x16xf32>
    %16 = arith.subf %1, %15 : vector<16x16xf32>
    %cst_9 = arith.constant 9.99999974E-6 : f32
    %17 = vector.broadcast %cst_9 : f32 to vector<16x1xf32>
    %18 = arith.addf %14, %17 : vector<16x1xf32>
    %19 = math.rsqrt %18 : vector<16x1xf32>
    %20 = vector.broadcast %19 : vector<16x1xf32> to vector<16x16xf32>
    %21 = arith.mulf %16, %20 : vector<16x16xf32>
    %22 = vector.broadcast %2 : vector<1x16xf32> to vector<16x16xf32>
    %23 = arith.mulf %21, %22 : vector<16x16xf32>
    %24 = vector.broadcast %3 : vector<1x16xf32> to vector<16x16xf32>
    %25 = arith.addf %23, %24 : vector<16x16xf32>
    %26 = arith.truncf %25 : vector<16x16xf32> to vector<16x16xbf16>
    %c0_10 = arith.constant 0 : index
    %c0_11 = arith.constant 0 : index
    %27 = vector.load %arg4[%c0_10, %c0_11] : memref<16x48xbf16, #tpu.memory_space<vmem>>, vector<16x48xbf16>
    %cst_12 = arith.constant dense<0.000000e+00> : vector<16x48xf32>
    %28 = tpu.matmul %26, %27, %cst_12 {dimension_numbers = #tpu.dot_dimension_numbers<[1], [0], [0], [1], [0, 0, 1, 1], [], []>} : vector<16x16xbf16>, vector<16x48xbf16>, vector<16x48xf32> -> vector<16x48xf32>
    %29 = arith.truncf %28 : vector<16x48xf32> to vector<16x48xbf16>
    %30 = vector.extract_strided_slice %29 {offsets = [0, 0], sizes = [16, 8], strides = [1, 1]} : vector<16x48xbf16> to vector<16x8xbf16>
    %31 = vector.shape_cast %30 : vector<16x8xbf16> to vector<4x4x8xbf16>
    %32 = vector.extract_strided_slice %29 {offsets = [0, 16], sizes = [16, 8], strides = [1, 1]} : vector<16x48xbf16> to vector<16x8xbf16>
    %33 = vector.shape_cast %32 : vector<16x8xbf16> to vector<4x4x8xbf16>
    %34 = vector.extract_strided_slice %29 {offsets = [0, 32], sizes = [16, 8], strides = [1, 1]} : vector<16x48xbf16> to vector<16x8xbf16>
    %35 = vector.shape_cast %34 : vector<16x8xbf16> to vector<4x4x8xbf16>
    "tpu.trace_start"() <{level = 10 : i32, message = "bnd,bmd->bnm"}> : () -> ()
    %cst_13 = arith.constant dense<0.000000e+00> : vector<4x4x4xf32>
    %36 = tpu.matmul %31, %33, %cst_13 {dimension_numbers = #tpu.dot_dimension_numbers<[2], [2], [1], [1], [0, 0, 0, 1, 1, 1], [0], [0]>} : vector<4x4x8xbf16>, vector<4x4x8xbf16>, vector<4x4x4xf32> -> vector<4x4x4xf32>
    "tpu.trace_stop"() : () -> ()
    %cst_14 = arith.constant dense<0xFF800000> : vector<4x4xf32>
    %37 = vector.multi_reduction <maximumf>, %36, %cst_14 [2] : vector<4x4x4xf32> to vector<4x4xf32>
    %38 = vector.shape_cast %37 : vector<4x4xf32> to vector<4x4x1xf32>
    %39 = vector.broadcast %38 : vector<4x4x1xf32> to vector<4x4x4xf32>
    %40 = arith.subf %36, %39 : vector<4x4x4xf32>
    %41 = math.exp %40 : vector<4x4x4xf32>
    %cst_15 = arith.constant dense<0.000000e+00> : vector<4x4xf32>
    %42 = vector.multi_reduction <add>, %41, %cst_15 [2] : vector<4x4x4xf32> to vector<4x4xf32>
    %43 = vector.shape_cast %42 : vector<4x4xf32> to vector<4x4x1xf32>
    %44 = vector.broadcast %43 : vector<4x4x1xf32> to vector<4x4x4xf32>
    %45 = arith.divf %41, %44 : vector<4x4x4xf32>
    %46 = arith.truncf %45 : vector<4x4x4xf32> to vector<4x4x4xbf16>
    "tpu.trace_start"() <{level = 10 : i32, message = "bnm,bmd->bnd"}> : () -> ()
    %cst_16 = arith.constant dense<0.000000e+00> : vector<4x4x8xf32>
    %47 = tpu.matmul %46, %35, %cst_16 {dimension_numbers = #tpu.dot_dimension_numbers<[2], [1], [1], [2], [0, 0, 0, 1, 1, 2], [0], [0]>} : vector<4x4x4xbf16>, vector<4x4x8xbf16>, vector<4x4x8xf32> -> vector<4x4x8xf32>
    "tpu.trace_stop"() : () -> ()
    %48 = vector.extract_strided_slice %29 {offsets = [0, 8], sizes = [16, 8], strides = [1, 1]} : vector<16x48xbf16> to vector<16x8xbf16>
    %49 = vector.shape_cast %48 : vector<16x8xbf16> to vector<4x4x8xbf16>
    %50 = vector.extract_strided_slice %29 {offsets = [0, 24], sizes = [16, 8], strides = [1, 1]} : vector<16x48xbf16> to vector<16x8xbf16>
    %51 = vector.shape_cast %50 : vector<16x8xbf16> to vector<4x4x8xbf16>
    %52 = vector.extract_strided_slice %29 {offsets = [0, 40], sizes = [16, 8], strides = [1, 1]} : vector<16x48xbf16> to vector<16x8xbf16>
    %53 = vector.shape_cast %52 : vector<16x8xbf16> to vector<4x4x8xbf16>
    "tpu.trace_start"() <{level = 10 : i32, message = "bnd,bmd->bnm"}> : () -> ()
    %cst_17 = arith.constant dense<0.000000e+00> : vector<4x4x4xf32>
    %54 = tpu.matmul %49, %51, %cst_17 {dimension_numbers = #tpu.dot_dimension_numbers<[2], [2], [1], [1], [0, 0, 0, 1, 1, 1], [0], [0]>} : vector<4x4x8xbf16>, vector<4x4x8xbf16>, vector<4x4x4xf32> -> vector<4x4x4xf32>
    "tpu.trace_stop"() : () -> ()
    %cst_18 = arith.constant dense<0xFF800000> : vector<4x4xf32>
    %55 = vector.multi_reduction <maximumf>, %54, %cst_18 [2] : vector<4x4x4xf32> to vector<4x4xf32>
    %56 = vector.shape_cast %55 : vector<4x4xf32> to vector<4x4x1xf32>
    %57 = vector.broadcast %56 : vector<4x4x1xf32> to vector<4x4x4xf32>
    %58 = arith.subf %54, %57 : vector<4x4x4xf32>
    %59 = math.exp %58 : vector<4x4x4xf32>
    %cst_19 = arith.constant dense<0.000000e+00> : vector<4x4xf32>
    %60 = vector.multi_reduction <add>, %59, %cst_19 [2] : vector<4x4x4xf32> to vector<4x4xf32>
    %61 = vector.shape_cast %60 : vector<4x4xf32> to vector<4x4x1xf32>
    %62 = vector.broadcast %61 : vector<4x4x1xf32> to vector<4x4x4xf32>
    %63 = arith.divf %59, %62 : vector<4x4x4xf32>
    %64 = arith.truncf %63 : vector<4x4x4xf32> to vector<4x4x4xbf16>
    "tpu.trace_start"() <{level = 10 : i32, message = "bnm,bmd->bnd"}> : () -> ()
    %cst_20 = arith.constant dense<0.000000e+00> : vector<4x4x8xf32>
    %65 = tpu.matmul %64, %53, %cst_20 {dimension_numbers = #tpu.dot_dimension_numbers<[2], [1], [1], [2], [0, 0, 0, 1, 1, 2], [0], [0]>} : vector<4x4x4xbf16>, vector<4x4x8xbf16>, vector<4x4x8xf32> -> vector<4x4x8xf32>
    "tpu.trace_stop"() : () -> ()
    %66 = tpu.concatenate %47, %65 in 2 : vector<4x4x8xf32>, vector<4x4x8xf32> -> vector<4x4x16xf32>
    %67 = vector.shape_cast %66 : vector<4x4x16xf32> to vector<16x16xf32>
    %68 = arith.truncf %67 : vector<16x16xf32> to vector<16x16xbf16>
    %c0_21 = arith.constant 0 : index
    %c0_22 = arith.constant 0 : index
    %69 = vector.load %arg5[%c0_21, %c0_22] : memref<16x16xbf16, #tpu.memory_space<vmem>>, vector<16x16xbf16>
    %cst_23 = arith.constant dense<0.000000e+00> : vector<16x16xf32>
    %70 = tpu.matmul %68, %69, %cst_23 {dimension_numbers = #tpu.dot_dimension_numbers<[1], [0], [0], [1], [0, 0, 1, 1], [], []>} : vector<16x16xbf16>, vector<16x16xbf16>, vector<16x16xf32> -> vector<16x16xf32>
    %71 = arith.addf %1, %70 : vector<16x16xf32>
    %c0_24 = arith.constant 0 : index
    %c0_25 = arith.constant 0 : index
    %72 = vector.load %arg6[%c0_24, %c0_25] : memref<1x16xf32, #tpu.memory_space<vmem>>, vector<1x16xf32>
    %73 = vector.broadcast %72 : vector<1x16xf32> to vector<16x16xf32>
    %74 = arith.addf %71, %73 : vector<16x16xf32>
    %c0_26 = arith.constant 0 : index
    %c0_27 = arith.constant 0 : index
    %75 = vector.load %arg7[%c0_26, %c0_27] : memref<1x16xf32, #tpu.memory_space<vmem>>, vector<1x16xf32>
    %c0_28 = arith.constant 0 : index
    %c0_29 = arith.constant 0 : index
    %76 = vector.load %arg8[%c0_28, %c0_29] : memref<1x16xf32, #tpu.memory_space<vmem>>, vector<1x16xf32>
    %cst_30 = arith.constant dense<0.000000e+00> : vector<16xf32>
    %77 = vector.multi_reduction <add>, %74, %cst_30 [1] : vector<16x16xf32> to vector<16xf32>
    %78 = vector.shape_cast %77 : vector<16xf32> to vector<16x1xf32>
    %cst_31 = arith.constant 1.600000e+01 : f32
    %79 = vector.broadcast %cst_31 : f32 to vector<16x1xf32>
    %80 = arith.divf %78, %79 : vector<16x1xf32>
    %81 = vector.broadcast %80 : vector<16x1xf32> to vector<16x16xf32>
    %82 = arith.subf %74, %81 : vector<16x16xf32>
    %83 = arith.mulf %82, %82 : vector<16x16xf32>
    %cst_32 = arith.constant dense<0.000000e+00> : vector<16xf32>
    %84 = vector.multi_reduction <add>, %83, %cst_32 [1] : vector<16x16xf32> to vector<16xf32>
    %85 = vector.shape_cast %84 : vector<16xf32> to vector<16x1xf32>
    %cst_33 = arith.constant 1.600000e+01 : f32
    %86 = vector.broadcast %cst_33 : f32 to vector<16x1xf32>
    %87 = arith.divf %85, %86 : vector<16x1xf32>
    %88 = vector.broadcast %80 : vector<16x1xf32> to vector<16x16xf32>
    %89 = arith.subf %74, %88 : vector<16x16xf32>
    %cst_34 = arith.constant 9.99999974E-6 : f32
    %90 = vector.broadcast %cst_34 : f32 to vector<16x1xf32>
    %91 = arith.addf %87, %90 : vector<16x1xf32>
    %92 = math.rsqrt %91 : vector<16x1xf32>
    %93 = vector.broadcast %92 : vector<16x1xf32> to vector<16x16xf32>
    %94 = arith.mulf %89, %93 : vector<16x16xf32>
    %95 = vector.broadcast %75 : vector<1x16xf32> to vector<16x16xf32>
    %96 = arith.mulf %94, %95 : vector<16x16xf32>
    %97 = vector.broadcast %76 : vector<1x16xf32> to vector<16x16xf32>
    %98 = arith.addf %96, %97 : vector<16x16xf32>
    %99 = arith.truncf %98 : vector<16x16xf32> to vector<16x16xbf16>
    %c0_35 = arith.constant 0 : index
    %c0_36 = arith.constant 0 : index
    %100 = vector.load %arg9[%c0_35, %c0_36] : memref<16x64xbf16, #tpu.memory_space<vmem>>, vector<16x64xbf16>
    %cst_37 = arith.constant dense<0.000000e+00> : vector<16x64xf32>
    %101 = tpu.matmul %99, %100, %cst_37 {dimension_numbers = #tpu.dot_dimension_numbers<[1], [0], [0], [1], [0, 0, 1, 1], [], []>} : vector<16x16xbf16>, vector<16x64xbf16>, vector<16x64xf32> -> vector<16x64xf32>
    %c0_38 = arith.constant 0 : index
    %c0_39 = arith.constant 0 : index
    %102 = vector.load %arg10[%c0_38, %c0_39] : memref<1x64xf32, #tpu.memory_space<vmem>>, vector<1x64xf32>
    %103 = vector.broadcast %102 : vector<1x64xf32> to vector<16x64xf32>
    %104 = arith.addf %101, %103 : vector<16x64xf32>
    %cst_40 = arith.constant 0.000000e+00 : f32
    %105 = vector.broadcast %cst_40 : f32 to vector<16x64xf32>
    %106 = arith.maximumf %104, %105 : vector<16x64xf32>
    %107 = arith.truncf %106 : vector<16x64xf32> to vector<16x64xbf16>
    %c0_41 = arith.constant 0 : index
    %c0_42 = arith.constant 0 : index
    %108 = vector.load %arg11[%c0_41, %c0_42] : memref<64x16xbf16, #tpu.memory_space<vmem>>, vector<64x16xbf16>
    %cst_43 = arith.constant dense<0.000000e+00> : vector<16x16xf32>
    %109 = tpu.matmul %107, %108, %cst_43 {dimension_numbers = #tpu.dot_dimension_numbers<[1], [0], [0], [1], [0, 0, 1, 1], [], []>} : vector<16x64xbf16>, vector<64x16xbf16>, vector<16x16xf32> -> vector<16x16xf32>
    %110 = arith.addf %74, %109 : vector<16x16xf32>
    %c0_44 = arith.constant 0 : index
    %c0_45 = arith.constant 0 : index
    %111 = vector.load %arg12[%c0_44, %c0_45] : memref<1x16xf32, #tpu.memory_space<vmem>>, vector<1x16xf32>
    %112 = vector.broadcast %111 : vector<1x16xf32> to vector<16x16xf32>
    %113 = arith.addf %110, %112 : vector<16x16xf32>
    %114 = vector.shape_cast %113 : vector<16x16xf32> to vector<4x4x16xf32>
    %c0_46 = arith.constant 0 : index
    %c0_47 = arith.constant 0 : index
    %c0_48 = arith.constant 0 : index
    %115 = vector.load %arg13[%c0_46, %c0_47, %c0_48] : memref<4x4x16xf32, #tpu.memory_space<vmem>>, vector<4x4x16xf32>
    tpu.vector_store %arg13[%c0_46, %c0_47, %c0_48], %114 {strides = array<i32>} : memref<4x4x16xf32, #tpu.memory_space<vmem>>, vector<4x4x16xf32>,
    return
  }
  func.func @transform_0(%arg0: i32) -> (i32, i32, i32) {
    %c0_i32 = arith.constant 0 : i32
    %c0_i32_0 = arith.constant 0 : i32
    %c0_i32_1 = arith.constant 0 : i32
    return %arg0, %c0_i32, %c0_i32_0 : i32, i32, i32
  }
  func.func @transform_1(%arg0: i32) -> (i32, i32) {
    %c0_i32 = arith.constant 0 : i32
    %c0_i32_0 = arith.constant 0 : i32
    %c0_i32_1 = arith.constant 0 : i32
    return %c0_i32, %c0_i32_0 : i32, i32
  }
  func.func @transform_2(%arg0: i32) -> (i32, i32) {
    %c0_i32 = arith.constant 0 : i32
    %c0_i32_0 = arith.constant 0 : i32
    %c0_i32_1 = arith.constant 0 : i32
    return %c0_i32, %c0_i32_0 : i32, i32
  }
  func.func @transform_3(%arg0: i32) -> (i32, i32) {
    %c0_i32 = arith.constant 0 : i32
    %c0_i32_0 = arith.constant 0 : i32
    %c0_i32_1 = arith.constant 0 : i32
    return %c0_i32, %c0_i32_0 : i32, i32
  }
  func.func @transform_4(%arg0: i32) -> (i32, i32) {
    %c0_i32 = arith.constant 0 : i32
    %c0_i32_0 = arith.constant 0 : i32
    %c0_i32_1 = arith.constant 0 : i32
    return %c0_i32, %c0_i32_0 : i32, i32
  }
  func.func @transform_5(%arg0: i32) -> (i32, i32) {
    %c0_i32 = arith.constant 0 : i32
    %c0_i32_0 = arith.constant 0 : i32
    %c0_i32_1 = arith.constant 0 : i32
    return %c0_i32, %c0_i32_0 : i32, i32
  }
  func.func @transform_6(%arg0: i32) -> (i32, i32) {
    %c0_i32 = arith.constant 0 : i32
    %c0_i32_0 = arith.constant 0 : i32
    %c0_i32_1 = arith.constant 0 : i32
    return %c0_i32, %c0_i32_0 : i32, i32
  }
  func.func @transform_7(%arg0: i32) -> (i32, i32) {
    %c0_i32 = arith.constant 0 : i32
    %c0_i32_0 = arith.constant 0 : i32
    %c0_i32_1 = arith.constant 0 : i32
    return %c0_i32, %c0_i32_0 : i32, i32
  }
  func.func @transform_8(%arg0: i32) -> (i32, i32) {
    %c0_i32 = arith.constant 0 : i32
    %c0_i32_0 = arith.constant 0 : i32
    %c0_i32_1 = arith.constant 0 : i32
    return %c0_i32, %c0_i32_0 : i32, i32
  }
  func.func @transform_9(%arg0: i32) -> (i32, i32) {
    %c0_i32 = arith.constant 0 : i32
    %c0_i32_0 = arith.constant 0 : i32
    %c0_i32_1 = arith.constant 0 : i32
    return %c0_i32, %c0_i32_0 : i32, i32
  }
  func.func @transform_10(%arg0: i32) -> (i32, i32) {
    %c0_i32 = arith.constant 0 : i32
    %c0_i32_0 = arith.constant 0 : i32
    %c0_i32_1 = arith.constant 0 : i32
    return %c0_i32, %c0_i32_0 : i32, i32
  }
  func.func @transform_11(%arg0: i32) -> (i32, i32) {
    %c0_i32 = arith.constant 0 : i32
    %c0_i32_0 = arith.constant 0 : i32
    %c0_i32_1 = arith.constant 0 : i32
    return %c0_i32, %c0_i32_0 : i32, i32
  }
  func.func @transform_12(%arg0: i32) -> (i32, i32, i32) {
    %c0_i32 = arith.constant 0 : i32
    %c0_i32_0 = arith.constant 0 : i32
    %c0_i32_1 = arith.constant 0 : i32
    return %arg0, %c0_i32, %c0_i32_0 : i32, i32, i32
  }
}

module attributes {stable_mosaic.version = 11 : i64} {
  func.func @_tokenizer_kernel(%arg0: i32, %arg1: memref<4x4x16xf32, #tpu.memory_space<vmem>>, %arg2: memref<16x16xbf16, #tpu.memory_space<vmem>>, %arg3: memref<1x16xf32, #tpu.memory_space<vmem>>, %arg4: memref<4x16xf32, #tpu.memory_space<vmem>>, %arg5: memref<4x4x16xf32, #tpu.memory_space<vmem>>) attributes {dimension_semantics = [#tpu.dimension_semantics<parallel>], iteration_bounds = array<i64: 2>, scalar_prefetch = 0 : i64, scratch_operands = 0 : i64, tpu.core_type = #tpu.core_type<tc>, window_params = [{transform_indices = @transform_0, window_bounds = array<i64: 4, 4, 16>}, {pipeline_mode = #tpu.pipeline_mode<synchronous>, transform_indices = @transform_1, window_bounds = array<i64: 16, 16>}, {pipeline_mode = #tpu.pipeline_mode<synchronous>, transform_indices = @transform_2, window_bounds = array<i64: 1, 16>}, {pipeline_mode = #tpu.pipeline_mode<synchronous>, transform_indices = @transform_3, window_bounds = array<i64: 4, 16>}, {transform_indices = @transform_4, window_bounds = array<i64: 4, 4, 16>}]} {
    %c0 = arith.constant 0 : index
    %c0_0 = arith.constant 0 : index
    %c0_1 = arith.constant 0 : index
    %0 = vector.load %arg1[%c0, %c0_0, %c0_1] : memref<4x4x16xf32, #tpu.memory_space<vmem>>, vector<4x4x16xf32>
    %1 = vector.shape_cast %0 : vector<4x4x16xf32> to vector<16x16xf32>
    %2 = arith.truncf %1 : vector<16x16xf32> to vector<16x16xbf16>
    %c0_2 = arith.constant 0 : index
    %c0_3 = arith.constant 0 : index
    %3 = vector.load %arg2[%c0_2, %c0_3] : memref<16x16xbf16, #tpu.memory_space<vmem>>, vector<16x16xbf16>
    %cst = arith.constant dense<0.000000e+00> : vector<16x16xf32>
    %4 = tpu.matmul %2, %3, %cst {dimension_numbers = #tpu.dot_dimension_numbers<[1], [0], [0], [1], [0, 0, 1, 1], [], []>} : vector<16x16xbf16>, vector<16x16xbf16>, vector<16x16xf32> -> vector<16x16xf32>
    %c0_4 = arith.constant 0 : index
    %c0_5 = arith.constant 0 : index
    %5 = vector.load %arg3[%c0_4, %c0_5] : memref<1x16xf32, #tpu.memory_space<vmem>>, vector<1x16xf32>
    %6 = vector.broadcast %5 : vector<1x16xf32> to vector<16x16xf32>
    %7 = arith.addf %4, %6 : vector<16x16xf32>
    %8 = vector.shape_cast %7 : vector<16x16xf32> to vector<4x4x16xf32>
    %c0_6 = arith.constant 0 : index
    %c0_7 = arith.constant 0 : index
    %9 = vector.load %arg4[%c0_6, %c0_7] : memref<4x16xf32, #tpu.memory_space<vmem>>, vector<4x16xf32>
    %10 = vector.shape_cast %9 : vector<4x16xf32> to vector<1x4x16xf32>
    %11 = vector.broadcast %10 : vector<1x4x16xf32> to vector<4x4x16xf32>
    %12 = arith.addf %8, %11 : vector<4x4x16xf32>
    %c0_8 = arith.constant 0 : index
    %c0_9 = arith.constant 0 : index
    %c0_10 = arith.constant 0 : index
    %13 = vector.load %arg5[%c0_8, %c0_9, %c0_10] : memref<4x4x16xf32, #tpu.memory_space<vmem>>, vector<4x4x16xf32>
    tpu.vector_store %arg5[%c0_8, %c0_9, %c0_10], %12 {strides = array<i32>} : memref<4x4x16xf32, #tpu.memory_space<vmem>>, vector<4x4x16xf32>,
    return
  }
  func.func @transform_0(%arg0: i32) -> (i32, i32, i32) {
    %c0_i32 = arith.constant 0 : i32
    %c0_i32_0 = arith.constant 0 : i32
    %c0_i32_1 = arith.constant 0 : i32
    return %arg0, %c0_i32, %c0_i32_0 : i32, i32, i32
  }
  func.func @transform_1(%arg0: i32) -> (i32, i32) {
    %c0_i32 = arith.constant 0 : i32
    %c0_i32_0 = arith.constant 0 : i32
    %c0_i32_1 = arith.constant 0 : i32
    return %c0_i32, %c0_i32_0 : i32, i32
  }
  func.func @transform_2(%arg0: i32) -> (i32, i32) {
    %c0_i32 = arith.constant 0 : i32
    %c0_i32_0 = arith.constant 0 : i32
    %c0_i32_1 = arith.constant 0 : i32
    return %c0_i32, %c0_i32_0 : i32, i32
  }
  func.func @transform_3(%arg0: i32) -> (i32, i32) {
    %c0_i32 = arith.constant 0 : i32
    %c0_i32_0 = arith.constant 0 : i32
    %c0_i32_1 = arith.constant 0 : i32
    return %c0_i32, %c0_i32_0 : i32, i32
  }
  func.func @transform_4(%arg0: i32) -> (i32, i32, i32) {
    %c0_i32 = arith.constant 0 : i32
    %c0_i32_0 = arith.constant 0 : i32
    %c0_i32_1 = arith.constant 0 : i32
    return %arg0, %c0_i32, %c0_i32_0 : i32, i32, i32
  }
}

module attributes {stable_mosaic.version = 11 : i64} {
  func.func @_patch_layer_kernel(%arg0: i32, %arg1: memref<1x5x64xf32, #tpu.memory_space<vmem>>, %arg2: memref<1x5x32xf32, #tpu.memory_space<vmem>>, %arg3: memref<64x32xbf16, #tpu.memory_space<vmem>>, %arg4: memref<1x32xf32, #tpu.memory_space<vmem>>, %arg5: memref<1x32xf32, #tpu.memory_space<vmem>>, %arg6: memref<1x32xf32, #tpu.memory_space<vmem>>, %arg7: memref<32x48xbf16, #tpu.memory_space<vmem>>, %arg8: memref<16x32xbf16, #tpu.memory_space<vmem>>, %arg9: memref<1x32xf32, #tpu.memory_space<vmem>>, %arg10: memref<1x32xf32, #tpu.memory_space<vmem>>, %arg11: memref<1x32xf32, #tpu.memory_space<vmem>>, %arg12: memref<32x128xbf16, #tpu.memory_space<vmem>>, %arg13: memref<1x128xf32, #tpu.memory_space<vmem>>, %arg14: memref<128x32xbf16, #tpu.memory_space<vmem>>, %arg15: memref<1x32xf32, #tpu.memory_space<vmem>>, %arg16: memref<1x5x32xf32, #tpu.memory_space<vmem>>) attributes {dimension_semantics = [#tpu.dimension_semantics<parallel>], iteration_bounds = array<i64: 2>, scalar_prefetch = 0 : i64, scratch_operands = 0 : i64, tpu.core_type = #tpu.core_type<tc>, window_params = [{transform_indices = @transform_0, window_bounds = array<i64: 1, 5, 64>}, {transform_indices = @transform_1, window_bounds = array<i64: 1, 5, 32>}, {pipeline_mode = #tpu.pipeline_mode<synchronous>, transform_indices = @transform_2, window_bounds = array<i64: 64, 32>}, {pipeline_mode = #tpu.pipeline_mode<synchronous>, transform_indices = @transform_3, window_bounds = array<i64: 1, 32>}, {pipeline_mode = #tpu.pipeline_mode<synchronous>, transform_indices = @transform_4, window_bounds = array<i64: 1, 32>}, {pipeline_mode = #tpu.pipeline_mode<synchronous>, transform_indices = @transform_5, window_bounds = array<i64: 1, 32>}, {pipeline_mode = #tpu.pipeline_mode<synchronous>, transform_indices = @transform_6, window_bounds = array<i64: 32, 48>}, {pipeline_mode = #tpu.pipeline_mode<synchronous>, transform_indices = @transform_7, window_bounds = array<i64: 16, 32>}, {pipeline_mode = #tpu.pipeline_mode<synchronous>, transform_indices = @transform_8, window_bounds = array<i64: 1, 32>}, {pipeline_mode = #tpu.pipeline_mode<synchronous>, transform_indices = @transform_9, window_bounds = array<i64: 1, 32>}, {pipeline_mode = #tpu.pipeline_mode<synchronous>, transform_indices = @transform_10, window_bounds = array<i64: 1, 32>}, {pipeline_mode = #tpu.pipeline_mode<synchronous>, transform_indices = @transform_11, window_bounds = array<i64: 32, 128>}, {pipeline_mode = #tpu.pipeline_mode<synchronous>, transform_indices = @transform_12, window_bounds = array<i64: 1, 128>}, {pipeline_mode = #tpu.pipeline_mode<synchronous>, transform_indices = @transform_13, window_bounds = array<i64: 128, 32>}, {pipeline_mode = #tpu.pipeline_mode<synchronous>, transform_indices = @transform_14, window_bounds = array<i64: 1, 32>}, {transform_indices = @transform_15, window_bounds = array<i64: 1, 5, 32>}]} {
    %c0 = arith.constant 0 : index
    %c0_0 = arith.constant 0 : index
    %c0_1 = arith.constant 0 : index
    %0 = vector.load %arg1[%c0, %c0_0, %c0_1] : memref<1x5x64xf32, #tpu.memory_space<vmem>>, vector<1x5x64xf32>
    %1 = vector.shape_cast %0 : vector<1x5x64xf32> to vector<5x64xf32>
    %2 = arith.truncf %1 : vector<5x64xf32> to vector<5x64xbf16>
    %c0_2 = arith.constant 0 : index
    %c0_3 = arith.constant 0 : index
    %3 = vector.load %arg3[%c0_2, %c0_3] : memref<64x32xbf16, #tpu.memory_space<vmem>>, vector<64x32xbf16>
    %cst = arith.constant dense<0.000000e+00> : vector<5x32xf32>
    %4 = tpu.matmul %2, %3, %cst {dimension_numbers = #tpu.dot_dimension_numbers<[1], [0], [0], [1], [0, 0, 1, 1], [], []>} : vector<5x64xbf16>, vector<64x32xbf16>, vector<5x32xf32> -> vector<5x32xf32>
    %c0_4 = arith.constant 0 : index
    %c0_5 = arith.constant 0 : index
    %5 = vector.load %arg4[%c0_4, %c0_5] : memref<1x32xf32, #tpu.memory_space<vmem>>, vector<1x32xf32>
    %6 = vector.broadcast %5 : vector<1x32xf32> to vector<5x32xf32>
    %7 = arith.addf %4, %6 : vector<5x32xf32>
    %8 = tpu.iota {dimensions = array<i32: 0>} : vector<5x32xi32>
    %c1_i32 = arith.constant 1 : i32
    %9 = vector.broadcast %c1_i32 : i32 to vector<5x32xi32>
    %10 = arith.cmpi sge, %8, %9 : vector<5x32xi32>
    %11 = vector.shape_cast %7 : vector<5x32xf32> to vector<1x5x32xf32>
    %cst_6 = arith.constant 0.000000e+00 : f32
    %12 = vector.shape_cast %10 : vector<5x32xi1> to vector<1x5x32xi1>
    %13 = vector.broadcast %cst_6 : f32 to vector<1x5x32xf32>
    %14 = arith.select %12, %11, %13 : vector<1x5x32xi1>, vector<1x5x32xf32>
    %c0_7 = arith.constant 0 : index
    %c0_8 = arith.constant 0 : index
    %c0_9 = arith.constant 0 : index
    %15 = vector.load %arg2[%c0_7, %c0_8, %c0_9] : memref<1x5x32xf32, #tpu.memory_space<vmem>>, vector<1x5x32xf32>
    %16 = arith.addf %15, %14 : vector<1x5x32xf32>
    %17 = vector.shape_cast %16 : vector<1x5x32xf32> to vector<5x32xf32>
    %c0_10 = arith.constant 0 : index
    %c0_11 = arith.constant 0 : index
    %18 = vector.load %arg5[%c0_10, %c0_11] : memref<1x32xf32, #tpu.memory_space<vmem>>, vector<1x32xf32>
    %c0_12 = arith.constant 0 : index
    %c0_13 = arith.constant 0 : index
    %19 = vector.load %arg6[%c0_12, %c0_13] : memref<1x32xf32, #tpu.memory_space<vmem>>, vector<1x32xf32>
    %cst_14 = arith.constant dense<0.000000e+00> : vector<5xf32>
    %20 = vector.multi_reduction <add>, %17, %cst_14 [1] : vector<5x32xf32> to vector<5xf32>
    %21 = vector.shape_cast %20 : vector<5xf32> to vector<5x1xf32>
    %cst_15 = arith.constant 3.200000e+01 : f32
    %22 = vector.broadcast %cst_15 : f32 to vector<5x1xf32>
    %23 = arith.divf %21, %22 : vector<5x1xf32>
    %24 = vector.broadcast %23 : vector<5x1xf32> to vector<5x32xf32>
    %25 = arith.subf %17, %24 : vector<5x32xf32>
    %26 = arith.mulf %25, %25 : vector<5x32xf32>
    %cst_16 = arith.constant dense<0.000000e+00> : vector<5xf32>
    %27 = vector.multi_reduction <add>, %26, %cst_16 [1] : vector<5x32xf32> to vector<5xf32>
    %28 = vector.shape_cast %27 : vector<5xf32> to vector<5x1xf32>
    %cst_17 = arith.constant 3.200000e+01 : f32
    %29 = vector.broadcast %cst_17 : f32 to vector<5x1xf32>
    %30 = arith.divf %28, %29 : vector<5x1xf32>
    %31 = vector.broadcast %23 : vector<5x1xf32> to vector<5x32xf32>
    %32 = arith.subf %17, %31 : vector<5x32xf32>
    %cst_18 = arith.constant 9.99999974E-6 : f32
    %33 = vector.broadcast %cst_18 : f32 to vector<5x1xf32>
    %34 = arith.addf %30, %33 : vector<5x1xf32>
    %35 = math.rsqrt %34 : vector<5x1xf32>
    %36 = vector.broadcast %35 : vector<5x1xf32> to vector<5x32xf32>
    %37 = arith.mulf %32, %36 : vector<5x32xf32>
    %38 = vector.broadcast %18 : vector<1x32xf32> to vector<5x32xf32>
    %39 = arith.mulf %37, %38 : vector<5x32xf32>
    %40 = vector.broadcast %19 : vector<1x32xf32> to vector<5x32xf32>
    %41 = arith.addf %39, %40 : vector<5x32xf32>
    %42 = arith.truncf %41 : vector<5x32xf32> to vector<5x32xbf16>
    %c0_19 = arith.constant 0 : index
    %c0_20 = arith.constant 0 : index
    %43 = vector.load %arg7[%c0_19, %c0_20] : memref<32x48xbf16, #tpu.memory_space<vmem>>, vector<32x48xbf16>
    %cst_21 = arith.constant dense<0.000000e+00> : vector<5x48xf32>
    %44 = tpu.matmul %42, %43, %cst_21 {dimension_numbers = #tpu.dot_dimension_numbers<[1], [0], [0], [1], [0, 0, 1, 1], [], []>} : vector<5x32xbf16>, vector<32x48xbf16>, vector<5x48xf32> -> vector<5x48xf32>
    %45 = arith.truncf %44 : vector<5x48xf32> to vector<5x48xbf16>
    %46 = vector.extract_strided_slice %45 {offsets = [0, 0], sizes = [5, 8], strides = [1, 1]} : vector<5x48xbf16> to vector<5x8xbf16>
    %47 = vector.shape_cast %46 : vector<5x8xbf16> to vector<1x5x8xbf16>
    %48 = vector.extract_strided_slice %45 {offsets = [0, 16], sizes = [5, 8], strides = [1, 1]} : vector<5x48xbf16> to vector<5x8xbf16>
    %49 = vector.shape_cast %48 : vector<5x8xbf16> to vector<1x5x8xbf16>
    %50 = vector.extract_strided_slice %45 {offsets = [0, 32], sizes = [5, 8], strides = [1, 1]} : vector<5x48xbf16> to vector<5x8xbf16>
    %51 = vector.shape_cast %50 : vector<5x8xbf16> to vector<1x5x8xbf16>
    "tpu.trace_start"() <{level = 10 : i32, message = "bnd,bmd->bnm"}> : () -> ()
    %cst_22 = arith.constant dense<0.000000e+00> : vector<1x5x5xf32>
    %52 = tpu.matmul %47, %49, %cst_22 {dimension_numbers = #tpu.dot_dimension_numbers<[2], [2], [1], [1], [0, 0, 0, 1, 1, 1], [0], [0]>} : vector<1x5x8xbf16>, vector<1x5x8xbf16>, vector<1x5x5xf32> -> vector<1x5x5xf32>
    "tpu.trace_stop"() : () -> ()
    %cst_23 = arith.constant dense<0xFF800000> : vector<1x5xf32>
    %53 = vector.multi_reduction <maximumf>, %52, %cst_23 [2] : vector<1x5x5xf32> to vector<1x5xf32>
    %54 = vector.shape_cast %53 : vector<1x5xf32> to vector<1x5x1xf32>
    %55 = vector.broadcast %54 : vector<1x5x1xf32> to vector<1x5x5xf32>
    %56 = arith.subf %52, %55 : vector<1x5x5xf32>
    %57 = math.exp %56 : vector<1x5x5xf32>
    %cst_24 = arith.constant dense<0.000000e+00> : vector<1x5xf32>
    %58 = vector.multi_reduction <add>, %57, %cst_24 [2] : vector<1x5x5xf32> to vector<1x5xf32>
    %59 = vector.shape_cast %58 : vector<1x5xf32> to vector<1x5x1xf32>
    %60 = vector.broadcast %59 : vector<1x5x1xf32> to vector<1x5x5xf32>
    %61 = arith.divf %57, %60 : vector<1x5x5xf32>
    %62 = arith.truncf %61 : vector<1x5x5xf32> to vector<1x5x5xbf16>
    "tpu.trace_start"() <{level = 10 : i32, message = "bnm,bmd->bnd"}> : () -> ()
    %cst_25 = arith.constant dense<0.000000e+00> : vector<1x5x8xf32>
    %63 = tpu.matmul %62, %51, %cst_25 {dimension_numbers = #tpu.dot_dimension_numbers<[2], [1], [1], [2], [0, 0, 0, 1, 1, 2], [0], [0]>} : vector<1x5x5xbf16>, vector<1x5x8xbf16>, vector<1x5x8xf32> -> vector<1x5x8xf32>
    "tpu.trace_stop"() : () -> ()
    %64 = vector.extract_strided_slice %45 {offsets = [0, 8], sizes = [5, 8], strides = [1, 1]} : vector<5x48xbf16> to vector<5x8xbf16>
    %65 = vector.shape_cast %64 : vector<5x8xbf16> to vector<1x5x8xbf16>
    %66 = vector.extract_strided_slice %45 {offsets = [0, 24], sizes = [5, 8], strides = [1, 1]} : vector<5x48xbf16> to vector<5x8xbf16>
    %67 = vector.shape_cast %66 : vector<5x8xbf16> to vector<1x5x8xbf16>
    %68 = vector.extract_strided_slice %45 {offsets = [0, 40], sizes = [5, 8], strides = [1, 1]} : vector<5x48xbf16> to vector<5x8xbf16>
    %69 = vector.shape_cast %68 : vector<5x8xbf16> to vector<1x5x8xbf16>
    "tpu.trace_start"() <{level = 10 : i32, message = "bnd,bmd->bnm"}> : () -> ()
    %cst_26 = arith.constant dense<0.000000e+00> : vector<1x5x5xf32>
    %70 = tpu.matmul %65, %67, %cst_26 {dimension_numbers = #tpu.dot_dimension_numbers<[2], [2], [1], [1], [0, 0, 0, 1, 1, 1], [0], [0]>} : vector<1x5x8xbf16>, vector<1x5x8xbf16>, vector<1x5x5xf32> -> vector<1x5x5xf32>
    "tpu.trace_stop"() : () -> ()
    %cst_27 = arith.constant dense<0xFF800000> : vector<1x5xf32>
    %71 = vector.multi_reduction <maximumf>, %70, %cst_27 [2] : vector<1x5x5xf32> to vector<1x5xf32>
    %72 = vector.shape_cast %71 : vector<1x5xf32> to vector<1x5x1xf32>
    %73 = vector.broadcast %72 : vector<1x5x1xf32> to vector<1x5x5xf32>
    %74 = arith.subf %70, %73 : vector<1x5x5xf32>
    %75 = math.exp %74 : vector<1x5x5xf32>
    %cst_28 = arith.constant dense<0.000000e+00> : vector<1x5xf32>
    %76 = vector.multi_reduction <add>, %75, %cst_28 [2] : vector<1x5x5xf32> to vector<1x5xf32>
    %77 = vector.shape_cast %76 : vector<1x5xf32> to vector<1x5x1xf32>
    %78 = vector.broadcast %77 : vector<1x5x1xf32> to vector<1x5x5xf32>
    %79 = arith.divf %75, %78 : vector<1x5x5xf32>
    %80 = arith.truncf %79 : vector<1x5x5xf32> to vector<1x5x5xbf16>
    "tpu.trace_start"() <{level = 10 : i32, message = "bnm,bmd->bnd"}> : () -> ()
    %cst_29 = arith.constant dense<0.000000e+00> : vector<1x5x8xf32>
    %81 = tpu.matmul %80, %69, %cst_29 {dimension_numbers = #tpu.dot_dimension_numbers<[2], [1], [1], [2], [0, 0, 0, 1, 1, 2], [0], [0]>} : vector<1x5x5xbf16>, vector<1x5x8xbf16>, vector<1x5x8xf32> -> vector<1x5x8xf32>
    "tpu.trace_stop"() : () -> ()
    %82 = tpu.concatenate %63, %81 in 2 : vector<1x5x8xf32>, vector<1x5x8xf32> -> vector<1x5x16xf32>
    %83 = vector.shape_cast %82 : vector<1x5x16xf32> to vector<5x16xf32>
    %84 = arith.truncf %83 : vector<5x16xf32> to vector<5x16xbf16>
    %c0_30 = arith.constant 0 : index
    %c0_31 = arith.constant 0 : index
    %85 = vector.load %arg8[%c0_30, %c0_31] : memref<16x32xbf16, #tpu.memory_space<vmem>>, vector<16x32xbf16>
    %cst_32 = arith.constant dense<0.000000e+00> : vector<5x32xf32>
    %86 = tpu.matmul %84, %85, %cst_32 {dimension_numbers = #tpu.dot_dimension_numbers<[1], [0], [0], [1], [0, 0, 1, 1], [], []>} : vector<5x16xbf16>, vector<16x32xbf16>, vector<5x32xf32> -> vector<5x32xf32>
    %87 = arith.addf %17, %86 : vector<5x32xf32>
    %c0_33 = arith.constant 0 : index
    %c0_34 = arith.constant 0 : index
    %88 = vector.load %arg9[%c0_33, %c0_34] : memref<1x32xf32, #tpu.memory_space<vmem>>, vector<1x32xf32>
    %89 = vector.broadcast %88 : vector<1x32xf32> to vector<5x32xf32>
    %90 = arith.addf %87, %89 : vector<5x32xf32>
    %c0_35 = arith.constant 0 : index
    %c0_36 = arith.constant 0 : index
    %91 = vector.load %arg10[%c0_35, %c0_36] : memref<1x32xf32, #tpu.memory_space<vmem>>, vector<1x32xf32>
    %c0_37 = arith.constant 0 : index
    %c0_38 = arith.constant 0 : index
    %92 = vector.load %arg11[%c0_37, %c0_38] : memref<1x32xf32, #tpu.memory_space<vmem>>, vector<1x32xf32>
    %cst_39 = arith.constant dense<0.000000e+00> : vector<5xf32>
    %93 = vector.multi_reduction <add>, %90, %cst_39 [1] : vector<5x32xf32> to vector<5xf32>
    %94 = vector.shape_cast %93 : vector<5xf32> to vector<5x1xf32>
    %cst_40 = arith.constant 3.200000e+01 : f32
    %95 = vector.broadcast %cst_40 : f32 to vector<5x1xf32>
    %96 = arith.divf %94, %95 : vector<5x1xf32>
    %97 = vector.broadcast %96 : vector<5x1xf32> to vector<5x32xf32>
    %98 = arith.subf %90, %97 : vector<5x32xf32>
    %99 = arith.mulf %98, %98 : vector<5x32xf32>
    %cst_41 = arith.constant dense<0.000000e+00> : vector<5xf32>
    %100 = vector.multi_reduction <add>, %99, %cst_41 [1] : vector<5x32xf32> to vector<5xf32>
    %101 = vector.shape_cast %100 : vector<5xf32> to vector<5x1xf32>
    %cst_42 = arith.constant 3.200000e+01 : f32
    %102 = vector.broadcast %cst_42 : f32 to vector<5x1xf32>
    %103 = arith.divf %101, %102 : vector<5x1xf32>
    %104 = vector.broadcast %96 : vector<5x1xf32> to vector<5x32xf32>
    %105 = arith.subf %90, %104 : vector<5x32xf32>
    %cst_43 = arith.constant 9.99999974E-6 : f32
    %106 = vector.broadcast %cst_43 : f32 to vector<5x1xf32>
    %107 = arith.addf %103, %106 : vector<5x1xf32>
    %108 = math.rsqrt %107 : vector<5x1xf32>
    %109 = vector.broadcast %108 : vector<5x1xf32> to vector<5x32xf32>
    %110 = arith.mulf %105, %109 : vector<5x32xf32>
    %111 = vector.broadcast %91 : vector<1x32xf32> to vector<5x32xf32>
    %112 = arith.mulf %110, %111 : vector<5x32xf32>
    %113 = vector.broadcast %92 : vector<1x32xf32> to vector<5x32xf32>
    %114 = arith.addf %112, %113 : vector<5x32xf32>
    %115 = arith.truncf %114 : vector<5x32xf32> to vector<5x32xbf16>
    %c0_44 = arith.constant 0 : index
    %c0_45 = arith.constant 0 : index
    %116 = vector.load %arg12[%c0_44, %c0_45] : memref<32x128xbf16, #tpu.memory_space<vmem>>, vector<32x128xbf16>
    %cst_46 = arith.constant dense<0.000000e+00> : vector<5x128xf32>
    %117 = tpu.matmul %115, %116, %cst_46 {dimension_numbers = #tpu.dot_dimension_numbers<[1], [0], [0], [1], [0, 0, 1, 1], [], []>} : vector<5x32xbf16>, vector<32x128xbf16>, vector<5x128xf32> -> vector<5x128xf32>
    %c0_47 = arith.constant 0 : index
    %c0_48 = arith.constant 0 : index
    %118 = vector.load %arg13[%c0_47, %c0_48] : memref<1x128xf32, #tpu.memory_space<vmem>>, vector<1x128xf32>
    %119 = vector.broadcast %118 : vector<1x128xf32> to vector<5x128xf32>
    %120 = arith.addf %117, %119 : vector<5x128xf32>
    %cst_49 = arith.constant 0.000000e+00 : f32
    %121 = vector.broadcast %cst_49 : f32 to vector<5x128xf32>
    %122 = arith.maximumf %120, %121 : vector<5x128xf32>
    %123 = arith.truncf %122 : vector<5x128xf32> to vector<5x128xbf16>
    %c0_50 = arith.constant 0 : index
    %c0_51 = arith.constant 0 : index
    %124 = vector.load %arg14[%c0_50, %c0_51] : memref<128x32xbf16, #tpu.memory_space<vmem>>, vector<128x32xbf16>
    %cst_52 = arith.constant dense<0.000000e+00> : vector<5x32xf32>
    %125 = tpu.matmul %123, %124, %cst_52 {dimension_numbers = #tpu.dot_dimension_numbers<[1], [0], [0], [1], [0, 0, 1, 1], [], []>} : vector<5x128xbf16>, vector<128x32xbf16>, vector<5x32xf32> -> vector<5x32xf32>
    %126 = arith.addf %90, %125 : vector<5x32xf32>
    %c0_53 = arith.constant 0 : index
    %c0_54 = arith.constant 0 : index
    %127 = vector.load %arg15[%c0_53, %c0_54] : memref<1x32xf32, #tpu.memory_space<vmem>>, vector<1x32xf32>
    %128 = vector.broadcast %127 : vector<1x32xf32> to vector<5x32xf32>
    %129 = arith.addf %126, %128 : vector<5x32xf32>
    %130 = vector.shape_cast %129 : vector<5x32xf32> to vector<1x5x32xf32>
    %c0_55 = arith.constant 0 : index
    %c0_56 = arith.constant 0 : index
    %c0_57 = arith.constant 0 : index
    %131 = vector.load %arg16[%c0_55, %c0_56, %c0_57] : memref<1x5x32xf32, #tpu.memory_space<vmem>>, vector<1x5x32xf32>
    tpu.vector_store %arg16[%c0_55, %c0_56, %c0_57], %130 {strides = array<i32>} : memref<1x5x32xf32, #tpu.memory_space<vmem>>, vector<1x5x32xf32>,
    return
  }
  func.func @transform_0(%arg0: i32) -> (i32, i32, i32) {
    %c0_i32 = arith.constant 0 : i32
    %c0_i32_0 = arith.constant 0 : i32
    %c0_i32_1 = arith.constant 0 : i32
    return %arg0, %c0_i32, %c0_i32_0 : i32, i32, i32
  }
  func.func @transform_1(%arg0: i32) -> (i32, i32, i32) {
    %c0_i32 = arith.constant 0 : i32
    %c0_i32_0 = arith.constant 0 : i32
    %c0_i32_1 = arith.constant 0 : i32
    return %arg0, %c0_i32, %c0_i32_0 : i32, i32, i32
  }
  func.func @transform_2(%arg0: i32) -> (i32, i32) {
    %c0_i32 = arith.constant 0 : i32
    %c0_i32_0 = arith.constant 0 : i32
    %c0_i32_1 = arith.constant 0 : i32
    return %c0_i32, %c0_i32_0 : i32, i32
  }
  func.func @transform_3(%arg0: i32) -> (i32, i32) {
    %c0_i32 = arith.constant 0 : i32
    %c0_i32_0 = arith.constant 0 : i32
    %c0_i32_1 = arith.constant 0 : i32
    return %c0_i32, %c0_i32_0 : i32, i32
  }
  func.func @transform_4(%arg0: i32) -> (i32, i32) {
    %c0_i32 = arith.constant 0 : i32
    %c0_i32_0 = arith.constant 0 : i32
    %c0_i32_1 = arith.constant 0 : i32
    return %c0_i32, %c0_i32_0 : i32, i32
  }
  func.func @transform_5(%arg0: i32) -> (i32, i32) {
    %c0_i32 = arith.constant 0 : i32
    %c0_i32_0 = arith.constant 0 : i32
    %c0_i32_1 = arith.constant 0 : i32
    return %c0_i32, %c0_i32_0 : i32, i32
  }
  func.func @transform_6(%arg0: i32) -> (i32, i32) {
    %c0_i32 = arith.constant 0 : i32
    %c0_i32_0 = arith.constant 0 : i32
    %c0_i32_1 = arith.constant 0 : i32
    return %c0_i32, %c0_i32_0 : i32, i32
  }
  func.func @transform_7(%arg0: i32) -> (i32, i32) {
    %c0_i32 = arith.constant 0 : i32
    %c0_i32_0 = arith.constant 0 : i32
    %c0_i32_1 = arith.constant 0 : i32
    return %c0_i32, %c0_i32_0 : i32, i32
  }
  func.func @transform_8(%arg0: i32) -> (i32, i32) {
    %c0_i32 = arith.constant 0 : i32
    %c0_i32_0 = arith.constant 0 : i32
    %c0_i32_1 = arith.constant 0 : i32
    return %c0_i32, %c0_i32_0 : i32, i32
  }
  func.func @transform_9(%arg0: i32) -> (i32, i32) {
    %c0_i32 = arith.constant 0 : i32
    %c0_i32_0 = arith.constant 0 : i32
    %c0_i32_1 = arith.constant 0 : i32
    return %c0_i32, %c0_i32_0 : i32, i32
  }
  func.func @transform_10(%arg0: i32) -> (i32, i32) {
    %c0_i32 = arith.constant 0 : i32
    %c0_i32_0 = arith.constant 0 : i32
    %c0_i32_1 = arith.constant 0 : i32
    return %c0_i32, %c0_i32_0 : i32, i32
  }
  func.func @transform_11(%arg0: i32) -> (i32, i32) {
    %c0_i32 = arith.constant 0 : i32
    %c0_i32_0 = arith.constant 0 : i32
    %c0_i32_1 = arith.constant 0 : i32
    return %c0_i32, %c0_i32_0 : i32, i32
  }
  func.func @transform_12(%arg0: i32) -> (i32, i32) {
    %c0_i32 = arith.constant 0 : i32
    %c0_i32_0 = arith.constant 0 : i32
    %c0_i32_1 = arith.constant 0 : i32
    return %c0_i32, %c0_i32_0 : i32, i32
  }
  func.func @transform_13(%arg0: i32) -> (i32, i32) {
    %c0_i32 = arith.constant 0 : i32
    %c0_i32_0 = arith.constant 0 : i32
    %c0_i32_1 = arith.constant 0 : i32
    return %c0_i32, %c0_i32_0 : i32, i32
  }
  func.func @transform_14(%arg0: i32) -> (i32, i32) {
    %c0_i32 = arith.constant 0 : i32
    %c0_i32_0 = arith.constant 0 : i32
    %c0_i32_1 = arith.constant 0 : i32
    return %c0_i32, %c0_i32_0 : i32, i32
  }
  func.func @transform_15(%arg0: i32) -> (i32, i32, i32) {
    %c0_i32 = arith.constant 0 : i32
    %c0_i32_0 = arith.constant 0 : i32
    %c0_i32_1 = arith.constant 0 : i32
    return %arg0, %c0_i32, %c0_i32_0 : i32, i32, i32
  }
}

module attributes {stable_mosaic.version = 11 : i64} {
  func.func @_ln_linear_kernel(%arg0: i32, %arg1: memref<16x32xf32, #tpu.memory_space<vmem>>, %arg2: memref<1x32xf32, #tpu.memory_space<vmem>>, %arg3: memref<1x32xf32, #tpu.memory_space<vmem>>, %arg4: memref<32x8xbf16, #tpu.memory_space<vmem>>, %arg5: memref<1x8xf32, #tpu.memory_space<vmem>>, %arg6: memref<16x8xf32, #tpu.memory_space<vmem>>) attributes {dimension_semantics = [#tpu.dimension_semantics<parallel>], iteration_bounds = array<i64: 1>, scalar_prefetch = 0 : i64, scratch_operands = 0 : i64, tpu.core_type = #tpu.core_type<tc>, window_params = [{transform_indices = @transform_0, window_bounds = array<i64: 16, 32>}, {pipeline_mode = #tpu.pipeline_mode<synchronous>, transform_indices = @transform_1, window_bounds = array<i64: 1, 32>}, {pipeline_mode = #tpu.pipeline_mode<synchronous>, transform_indices = @transform_2, window_bounds = array<i64: 1, 32>}, {pipeline_mode = #tpu.pipeline_mode<synchronous>, transform_indices = @transform_3, window_bounds = array<i64: 32, 8>}, {pipeline_mode = #tpu.pipeline_mode<synchronous>, transform_indices = @transform_4, window_bounds = array<i64: 1, 8>}, {transform_indices = @transform_5, window_bounds = array<i64: 16, 8>}]} {
    %c0 = arith.constant 0 : index
    %c0_0 = arith.constant 0 : index
    %0 = vector.load %arg1[%c0, %c0_0] : memref<16x32xf32, #tpu.memory_space<vmem>>, vector<16x32xf32>
    %c0_1 = arith.constant 0 : index
    %c0_2 = arith.constant 0 : index
    %1 = vector.load %arg2[%c0_1, %c0_2] : memref<1x32xf32, #tpu.memory_space<vmem>>, vector<1x32xf32>
    %c0_3 = arith.constant 0 : index
    %c0_4 = arith.constant 0 : index
    %2 = vector.load %arg3[%c0_3, %c0_4] : memref<1x32xf32, #tpu.memory_space<vmem>>, vector<1x32xf32>
    %cst = arith.constant dense<0.000000e+00> : vector<16xf32>
    %3 = vector.multi_reduction <add>, %0, %cst [1] : vector<16x32xf32> to vector<16xf32>
    %4 = vector.shape_cast %3 : vector<16xf32> to vector<16x1xf32>
    %cst_5 = arith.constant 3.200000e+01 : f32
    %5 = vector.broadcast %cst_5 : f32 to vector<16x1xf32>
    %6 = arith.divf %4, %5 : vector<16x1xf32>
    %7 = vector.broadcast %6 : vector<16x1xf32> to vector<16x32xf32>
    %8 = arith.subf %0, %7 : vector<16x32xf32>
    %9 = arith.mulf %8, %8 : vector<16x32xf32>
    %cst_6 = arith.constant dense<0.000000e+00> : vector<16xf32>
    %10 = vector.multi_reduction <add>, %9, %cst_6 [1] : vector<16x32xf32> to vector<16xf32>
    %11 = vector.shape_cast %10 : vector<16xf32> to vector<16x1xf32>
    %cst_7 = arith.constant 3.200000e+01 : f32
    %12 = vector.broadcast %cst_7 : f32 to vector<16x1xf32>
    %13 = arith.divf %11, %12 : vector<16x1xf32>
    %14 = vector.broadcast %6 : vector<16x1xf32> to vector<16x32xf32>
    %15 = arith.subf %0, %14 : vector<16x32xf32>
    %cst_8 = arith.constant 9.99999974E-6 : f32
    %16 = vector.broadcast %cst_8 : f32 to vector<16x1xf32>
    %17 = arith.addf %13, %16 : vector<16x1xf32>
    %18 = math.rsqrt %17 : vector<16x1xf32>
    %19 = vector.broadcast %18 : vector<16x1xf32> to vector<16x32xf32>
    %20 = arith.mulf %15, %19 : vector<16x32xf32>
    %21 = vector.broadcast %1 : vector<1x32xf32> to vector<16x32xf32>
    %22 = arith.mulf %20, %21 : vector<16x32xf32>
    %23 = vector.broadcast %2 : vector<1x32xf32> to vector<16x32xf32>
    %24 = arith.addf %22, %23 : vector<16x32xf32>
    %25 = arith.truncf %24 : vector<16x32xf32> to vector<16x32xbf16>
    %c0_9 = arith.constant 0 : index
    %c0_10 = arith.constant 0 : index
    %26 = vector.load %arg4[%c0_9, %c0_10] : memref<32x8xbf16, #tpu.memory_space<vmem>>, vector<32x8xbf16>
    %cst_11 = arith.constant dense<0.000000e+00> : vector<16x8xf32>
    %27 = tpu.matmul %25, %26, %cst_11 {dimension_numbers = #tpu.dot_dimension_numbers<[1], [0], [0], [1], [0, 0, 1, 1], [], []>} : vector<16x32xbf16>, vector<32x8xbf16>, vector<16x8xf32> -> vector<16x8xf32>
    %c0_12 = arith.constant 0 : index
    %c0_13 = arith.constant 0 : index
    %28 = vector.load %arg5[%c0_12, %c0_13] : memref<1x8xf32, #tpu.memory_space<vmem>>, vector<1x8xf32>
    %29 = vector.broadcast %28 : vector<1x8xf32> to vector<16x8xf32>
    %30 = arith.addf %27, %29 : vector<16x8xf32>
    %c0_14 = arith.constant 0 : index
    %c0_15 = arith.constant 0 : index
    %31 = vector.load %arg6[%c0_14, %c0_15] : memref<16x8xf32, #tpu.memory_space<vmem>>, vector<16x8xf32>
    tpu.vector_store %arg6[%c0_14, %c0_15], %30 {strides = array<i32>} : memref<16x8xf32, #tpu.memory_space<vmem>>, vector<16x8xf32>,
    return
  }
  func.func @transform_0(%arg0: i32) -> (i32, i32) {
    %c0_i32 = arith.constant 0 : i32
    %c0_i32_0 = arith.constant 0 : i32
    return %arg0, %c0_i32 : i32, i32
  }
  func.func @transform_1(%arg0: i32) -> (i32, i32) {
    %c0_i32 = arith.constant 0 : i32
    %c0_i32_0 = arith.constant 0 : i32
    %c0_i32_1 = arith.constant 0 : i32
    return %c0_i32, %c0_i32_0 : i32, i32
  }
  func.func @transform_2(%arg0: i32) -> (i32, i32) {
    %c0_i32 = arith.constant 0 : i32
    %c0_i32_0 = arith.constant 0 : i32
    %c0_i32_1 = arith.constant 0 : i32
    return %c0_i32, %c0_i32_0 : i32, i32
  }
  func.func @transform_3(%arg0: i32) -> (i32, i32) {
    %c0_i32 = arith.constant 0 : i32
    %c0_i32_0 = arith.constant 0 : i32
    %c0_i32_1 = arith.constant 0 : i32
    return %c0_i32, %c0_i32_0 : i32, i32
  }
  func.func @transform_4(%arg0: i32) -> (i32, i32) {
    %c0_i32 = arith.constant 0 : i32
    %c0_i32_0 = arith.constant 0 : i32
    %c0_i32_1 = arith.constant 0 : i32
    return %c0_i32, %c0_i32_0 : i32, i32
  }
  func.func @transform_5(%arg0: i32) -> (i32, i32) {
    %c0_i32 = arith.constant 0 : i32
    %c0_i32_0 = arith.constant 0 : i32
    return %arg0, %c0_i32 : i32, i32
  }
}

</mosaic_0001>

<llo_original>
// kernel: encoder_forward.6
$region0: #{encoder_forward.6}
  #allocation0 [shape = 'u32[]', space=smem, size = 0x4, offset = 0x4, fixed_abs, tag = 'smem constant byte address 0x4 - core index']
  #allocation1 [shape = 'u32[144,128]{1,0:T(1,128)}', space=vmem, size = 0x12000, scoped, tag = 'internal scratch']
  %s0 = inlined_call_operand.vmem [shape: f32[8,4,16], index: 0, kind: input, shape index: {}]
  %s1 = inlined_call_operand.vmem [shape: bf16[16,16], index: 1, kind: input, shape index: {}]
  %s2 = inlined_call_operand.vmem [shape: f32[1,16], index: 2, kind: input, shape index: {}]
  %s3 = inlined_call_operand.vmem [shape: f32[4,16], index: 3, kind: input, shape index: {}]
  %s4 = inlined_call_operand.vmem [shape: f32[8,4,16], index: 4, kind: output, shape index: {}]
  %s5 = sld [smem:[#allocation0]]
  $region49: #{encoder_forward.6} parent=0
    _
  %s7 = ssub.s32 1, %s5
  %s8 = scalar_select 0, %s7, %s5
  loop: start=0, step=1, limit=4
  $region2: #{encoder_forward.6} parent=0 // loop_pre_header
    _
  $region3: #{encoder_forward.6} parent=0 // loop_header
    %s10 = sphi 0, %s14
    %p11 = scmp.ge.s32.totalorder %s10, 4
    %s20 = sphi 0, %s22
    %s23 = sphi 0, %s20
    %s24 = sphi 0, %s23
    %s40 = sphi 0, %s24
    %s44 = sphi 0, %s44
    %s46 = sphi 0, %s44
    %s47 = sphi 0, %s46
    %s61 = sphi 0, %s47
    %s65 = sphi 0, %s65
    %s67 = sphi 0, %s65
    %s68 = sphi 0, %s67
    %s82 = sphi 0, %s68
    %s86 = sphi 0, %s86
    %s88 = sphi 0, %s86
    %s89 = sphi 0, %s88
    %s103 = sphi 0, %s89
    %s109 = sphi 0, %s111
    %s112 = sphi 0, %s109
    %s113 = sphi 0, %s112
    %s129 = sphi 0, %s113
  $region4: #{encoder_forward.6} parent=0 // loop_header_branch
    %13 = sbr.rel (%p11) target = $region8
  $region5: #{encoder_forward.6} parent=0 // loop_body
    %s15 = ssub.s32 %s10, 1
    %s16 = ssub.s32 %s10, 2
    %s17 = sadd.s32 %s10, 1
    %s18 = ssub.s32 %s10, %s17
    %p19 = scmp.eq.s32.totalorder %s18, 0
    %s21 = sadd.s32 %s20, 1
    %s22 = scalar_select %p19, %s20, %s21
    %p25 = pneg %p19
    %p26 = scmp.eq.s32.totalorder %s10, 1
    %p27 = por %p25, %p26
    %p28 = scmp.ne.s32.totalorder %s20, %s23
    %p29 = scmp.eq.s32.totalorder %s10, 0
    %p30 = por %p28, %p29
    %p31 = scmp.ne.s32.totalorder %s20, %s23
    %p32 = scmp.eq.s32.totalorder %s15, 1
    %p33 = por %p31, %p32
    %p34 = scmp.ne.s32.totalorder %s23, %s24
    %p35 = scmp.eq.s32.totalorder %s15, 0
    %p36 = por %p34, %p35
    %p37 = scmp.ne.s32.totalorder %s23, %s24
    %p38 = scmp.eq.s32.totalorder %s16, 1
    %p39 = por %p37, %p38
    %p41 = scmp.ne.s32.totalorder %s24, %s40
    %p42 = scmp.eq.s32.totalorder %s16, 0
    %p43 = por %p41, %p42
    %s45 = sadd.s32 %s44, 1
    %p48 = scmp.eq.s32.totalorder %s10, 1
    %p49 = scmp.ne.s32.totalorder %s44, %s46
    %p50 = scmp.eq.s32.totalorder %s10, 0
    %p51 = por %p49, %p50
    %p52 = scmp.ne.s32.totalorder %s44, %s46
    %p53 = scmp.eq.s32.totalorder %s15, 1
    %p54 = por %p52, %p53
    %p55 = scmp.ne.s32.totalorder %s46, %s47
    %p56 = scmp.eq.s32.totalorder %s15, 0
    %p57 = por %p55, %p56
    %p58 = scmp.ne.s32.totalorder %s46, %s47
    %p59 = scmp.eq.s32.totalorder %s16, 1
    %p60 = por %p58, %p59
    %p62 = scmp.ne.s32.totalorder %s47, %s61
    %p63 = scmp.eq.s32.totalorder %s16, 0
    %p64 = por %p62, %p63
    %s66 = sadd.s32 %s65, 1
    %p69 = scmp.eq.s32.totalorder %s10, 1
    %p70 = scmp.ne.s32.totalorder %s65, %s67
    %p71 = scmp.eq.s32.totalorder %s10, 0
    %p72 = por %p70, %p71
    %p73 = scmp.ne.s32.totalorder %s65, %s67
    %p74 = scmp.eq.s32.totalorder %s15, 1
    %p75 = por %p73, %p74
    %p76 = scmp.ne.s32.totalorder %s67, %s68
    %p77 = scmp.eq.s32.totalorder %s15, 0
    %p78 = por %p76, %p77
    %p79 = scmp.ne.s32.totalorder %s67, %s68
    %p80 = scmp.eq.s32.totalorder %s16, 1
    %p81 = por %p79, %p80
    %p83 = scmp.ne.s32.totalorder %s68, %s82
    %p84 = scmp.eq.s32.totalorder %s16, 0
    %p85 = por %p83, %p84
    %s87 = sadd.s32 %s86, 1
    %p90 = scmp.eq.s32.totalorder %s10, 1
    %p91 = scmp.ne.s32.totalorder %s86, %s88
    %p92 = scmp.eq.s32.totalorder %s10, 0
    %p93 = por %p91, %p92
    %p94 = scmp.ne.s32.totalorder %s86, %s88
    %p95 = scmp.eq.s32.totalorder %s15, 1
    %p96 = por %p94, %p95
    %p97 = scmp.ne.s32.totalorder %s88, %s89
    %p98 = scmp.eq.s32.totalorder %s15, 0
    %p99 = por %p97, %p98
    %p100 = scmp.ne.s32.totalorder %s88, %s89
    %p101 = scmp.eq.s32.totalorder %s16, 1
    %p102 = por %p100, %p101
    %p104 = scmp.ne.s32.totalorder %s89, %s103
    %p105 = scmp.eq.s32.totalorder %s16, 0
    %p106 = por %p104, %p105
    %s107 = ssub.s32 %s10, %s17
    %p108 = scmp.eq.s32.totalorder %s107, 0
    %s110 = sadd.s32 %s109, 1
    %s111 = scalar_select %p108, %s109, %s110
    %p114 = pneg %p108
    %p115 = scmp.eq.s32.totalorder %s10, 1
    %p116 = por %p114, %p115
    %p117 = scmp.ne.s32.totalorder %s109, %s112
    %p118 = scmp.eq.s32.totalorder %s10, 0
    %p119 = por %p117, %p118
    %p120 = scmp.ne.s32.totalorder %s109, %s112
    %p121 = scmp.eq.s32.totalorder %s15, 1
    %p122 = por %p120, %p121
    %p123 = scmp.ne.s32.totalorder %s112, %s113
    %p124 = scmp.eq.s32.totalorder %s15, 0
    %p125 = por %p123, %p124
    %p126 = scmp.ne.s32.totalorder %s112, %s113
    %p127 = scmp.eq.s32.totalorder %s16, 1
    %p128 = por %p126, %p127
    %p130 = scmp.ne.s32.totalorder %s113, %s129
    %p131 = scmp.eq.s32.totalorder %s16, 0
    %p132 = por %p130, %p131
    %p133 = scmp.le.s32.totalorder 1, %s10
    %p134 = scmp.lt.s32.totalorder %s10, 3
    %p135 = pnand %p133, %p134
    %p136 = pneg %p135
    // Predicated region
    $region9: #{encoder_forward.6} parent=5 // pred_check
      _
    $region10: #{encoder_forward.6} parent=5 // pred_check_branch
      %138 = sbr.rel (%p135) target = $region12
    $region11: #{encoder_forward.6} parent=5 // pred_region
      %s139 = ssub.s32 %s10, 1
      // Predicated region
      $region13: #{encoder_forward.6} parent=11 // pred_check
        %p140 = pneg %p57
      $region14: #{encoder_forward.6} parent=11 // pred_check_branch
        %142 = sbr.rel (%p140) target = $region16
      $region15: #{encoder_forward.6} parent=11 // pred_region
        _
      $region16: #{encoder_forward.6} parent=11 // pred_fallthru
        _
      // Predicated region
      $region17: #{encoder_forward.6} parent=11 // pred_check
        %p143 = pneg %p78
      $region18: #{encoder_forward.6} parent=11 // pred_check_branch
        %145 = sbr.rel (%p143) target = $region20
      $region19: #{encoder_forward.6} parent=11 // pred_region
        _
      $region20: #{encoder_forward.6} parent=11 // pred_fallthru
        _
      // Predicated region
      $region21: #{encoder_forward.6} parent=11 // pred_check
        %p146 = pneg %p99
      $region22: #{encoder_forward.6} parent=11 // pred_check_branch
        %148 = sbr.rel (%p146) target = $region24
      $region23: #{encoder_forward.6} parent=11 // pred_region
        _
      $region24: #{encoder_forward.6} parent=11 // pred_fallthru
        _
    $region12: #{encoder_forward.6} parent=5 // pred_fallthru
      _
    %p149 = scmp.lt.s32.totalorder %s10, 2
    // Predicated region
    $region25: #{encoder_forward.6} parent=5 // pred_check
      %p150 = pneg %p149
    $region26: #{encoder_forward.6} parent=5 // pred_check_branch
      %152 = sbr.rel (%p150) target = $region28
    $region27: #{encoder_forward.6} parent=5 // pred_region
      // Predicated region
      $region29: #{encoder_forward.6} parent=27 // pred_check
        %p153 = pneg %p30
      $region30: #{encoder_forward.6} parent=27 // pred_check_branch
        %155 = sbr.rel (%p153) target = $region32
      $region31: #{encoder_forward.6} parent=27 // pred_region
        %s156 = smul.u32 4, %s10
        %p157 = scmp.lt.s32.totalorder %s156, 7
        %s158 = scalar_select %p157, %s156, 7
        %s159 = smul.addr %s158, 4
        %s160 = scalar_lea.vmem %s0, %s159
        %s161 = smul.u32 4, %s10
      $region32: #{encoder_forward.6} parent=27 // pred_fallthru
        _
    $region28: #{encoder_forward.6} parent=5 // pred_fallthru
      _
    %p162 = scmp.le.s32.totalorder 1, %s10
    %p163 = scmp.lt.s32.totalorder %s10, 3
    %p164 = pnand %p162, %p163
    %p165 = pneg %p164
    // Predicated region
    $region33: #{encoder_forward.6} parent=5 // pred_check
      _
    $region34: #{encoder_forward.6} parent=5 // pred_check_branch
      %167 = sbr.rel (%p164) target = $region36
    $region35: #{encoder_forward.6} parent=5 // pred_region
      %s168 = ssub.s32 %s10, 1
      %s169 = smul.u32 4, %s15
      %p170 = scmp.lt.s32.totalorder %s169, 7
      %s171 = scalar_select %p170, %s169, 7
      %s172 = smul.addr %s171, 4
      %s173 = scalar_lea.vmem %s0, %s172
      %p174 = pneg %p36
      %p175 = pneg %p33
      %p176 = pneg %p57
      %p177 = pneg %p54
      %p178 = pneg %p78
      %p179 = pneg %p75
      %p180 = pneg %p99
      %p181 = pneg %p96
      %p182 = pneg %p125
      %p183 = pneg %p122
      %s184 = smul.u32 4, %s15
      %p185 = scmp.lt.s32.totalorder %s184, 7
      %s186 = scalar_select %p185, %s184, 7
      %s187 = smul.addr %s186, 4
      %s188 = scalar_lea.vmem %s4, %s187
      %s189 = smul.u32 4, %s15
      %p190 = scmp.lt.s32.totalorder %s189, 7
      %s191 = scalar_select %p190, %s189, 7
      %s192 = smul.addr %s191, 4
      %s193 = scalar_lea.vmem %s0, %s192
      %s194 = smul.u32 4, %s15
      %s195 = smul.u32 4, %s15
      %p196 = scmp.lt.s32.totalorder %s195, 7
      %s197 = scalar_select %p196, %s195, 7
      %s198 = smul.addr %s197, 4
      %s199 = scalar_lea.vmem %s4, %s198
      %s200 = smul.u32 4, %s15
      %v202 = vld [vmem:[%s193] sm:$0xf]
      %v203 = vld [vmem:[%s193 + $0x4] sm:$0xf]
      %v204 = vld [vmem:[%s193 + $0x8] sm:$0xf]
      %v205 = vld [vmem:[%s193 + $0xc] sm:$0xf]
      %v210 = vcombine.low %v202, %v203
      %v211 = vcombine.low %v204, %v205
      %v214 = vpack.c.bf16 %v211, %v210
      %v215 = vld [vmem:[%s1] sm:$0xf]
      %v216 = vld [vmem:[%s1 + $0x4] sm:$0xf]
      %v217 = vld [vmem:[%s2] sm:$0x1]
      %v219 = vlaneseq
      %v220 = vshrl.u32 %v219, 7
      %v221 = vsub.s32 0, %v220
      %v222 = vrot.slane %v217, %v221
      %v226 = vunpack.c.l.b16 %v215
      %v227 = vunpack.c.l.b16 %v216
      %v228 = vpack.c.b16 %v227, %v226
      %vm230 = vcmask 130048
      %v232 = vsel %vm230, %v214, 0
      %234 = vmatprep.subr.bf16.mxu0 0
      %235 = vmatpush1.bf16.msra.mxu0 %v228
      %236 = vmatprep.subr.bf16.mxu0 0
      %237 = vmatpush1.bf16.msra.mxu0 0
      %238 = vmatprep.subr.bf16.mxu0 0
      %239 = vmatpush1.bf16.msra.mxu0 0
      %240 = vmatprep.subr.bf16.mxu0 0
      %241 = vmatpush1.bf16.msra.mxu0 0
      %242 = vmatprep.subr.bf16.mxu0 0
      %243 = vmatpush1.bf16.msra.mxu0 0
      %244 = vmatprep.subr.bf16.mxu0 0
      %245 = vmatpush1.bf16.msra.mxu0 0
      %246 = vmatprep.subr.bf16.mxu0 0
      %247 = vmatpush1.bf16.msra.mxu0 0
      %248 = vmatprep.subr.bf16.mxu0 0
      %249 = vmatpush1.bf16.msra.mxu0 0
      %250 = vmatprep.subr.bf16.mxu0 0
      %251 = vmatpush1.bf16.msra.mxu0 0
      %252 = vmatprep.subr.bf16.mxu0 0
      %253 = vmatpush1.bf16.msra.mxu0 0
      %254 = vmatprep.subr.bf16.mxu0 0
      %255 = vmatpush1.bf16.msra.mxu0 0
      %256 = vmatprep.subr.bf16.mxu0 0
      %257 = vmatpush1.bf16.msra.mxu0 0
      %258 = vmatprep.subr.bf16.mxu0 0
      %259 = vmatpush1.bf16.msra.mxu0 0
      %260 = vmatprep.subr.bf16.mxu0 0
      %261 = vmatpush1.bf16.msra.mxu0 0
      %262 = vmatprep.subr.bf16.mxu0 0
      %263 = vmatpush1.bf16.msra.mxu0 0
      %264 = vmatprep.subr.bf16.mxu0 0
      %265 = vmatpush1.bf16.msra.mxu0 0
      %266 = vmatprep.mubr.bf16.mxu0 0
      %267 = vmatmul.mubr.bf16.gmra.mrb[0].mxu0 %v232
      %v268 = vpop.f32.mrb[0].mxu0
      %v269 = vadd.f32 %v222, %v268
      %v270 = vpop.f32.mrb[0].mxu0
      %v271 = vpop.f32.mrb[0].mxu0
      %v272 = vadd.f32 %v222, %v271
      %v273 = vpop.f32.mrb[0].mxu0
      %274 = vdwg.mxu0
      %v277 = vcombine.high %v269, %v269
      %v278 = vcombine.high %v272, %v272
      %v281 = vld [vmem:[%s3] sm:$0xf]
      %v282 = vadd.f32 %v269, %v281
      %v283 = vadd.f32 %v277, %v281
      %v284 = vadd.f32 %v272, %v281
      %v285 = vadd.f32 %v278, %v281
      %vm286 = vcmask 125952
      %287 = vst.msk [vmem:[%s199] sm:$0xf] %vm286, %v282
      %288 = vst.msk [vmem:[%s199 + $0x4] sm:$0xf] %vm286, %v283
      %289 = vst.msk [vmem:[%s199 + $0x8] sm:$0xf] %vm286, %v284
      %290 = vst.msk [vmem:[%s199 + $0xc] sm:$0xf] %vm286, %v285
      %s291 = smul.u32 4, %s15
      %p292 = scmp.lt.s32.totalorder %s291, 7
      %s293 = scalar_select %p292, %s291, 7
      %s294 = smul.addr %s293, 4
      %s295 = scalar_lea.vmem %s4, %s294
      // Predicated region
      $region37: #{encoder_forward.6} parent=35 // pred_check
        %p296 = pneg %p122
      $region38: #{encoder_forward.6} parent=35 // pred_check_branch
        %298 = sbr.rel (%p296) target = $region40
      $region39: #{encoder_forward.6} parent=35 // pred_region
        %s299 = smul.u32 4, %s15
      $region40: #{encoder_forward.6} parent=35 // pred_fallthru
        _
    $region36: #{encoder_forward.6} parent=5 // pred_fallthru
      _
    %p300 = scmp.le.s32.totalorder 2, %s10
    // Predicated region
    $region41: #{encoder_forward.6} parent=5 // pred_check
      %p301 = pneg %p300
    $region42: #{encoder_forward.6} parent=5 // pred_check_branch
      %303 = sbr.rel (%p301) target = $region44
    $region43: #{encoder_forward.6} parent=5 // pred_region
      %s304 = ssub.s32 %s10, 2
      // Predicated region
      $region45: #{encoder_forward.6} parent=43 // pred_check
        %p305 = pneg %p128
      $region46: #{encoder_forward.6} parent=43 // pred_check_branch
        %307 = sbr.rel (%p305) target = $region48
      $region47: #{encoder_forward.6} parent=43 // pred_region
        %s308 = smul.u32 4, %s16
        %p309 = scmp.lt.s32.totalorder %s308, 7
        %s310 = scalar_select %p309, %s308, 7
        %s311 = smul.addr %s310, 4
        %s312 = scalar_lea.vmem %s4, %s311
      $region48: #{encoder_forward.6} parent=43 // pred_fallthru
        _
    $region44: #{encoder_forward.6} parent=5 // pred_fallthru
      _
  $region6: #{encoder_forward.6} parent=0 // loop_footer
    %s14 = sadd.s32 1, %s10
  $region7: #{encoder_forward.6} parent=0 // loop_footer_branch
    %9 = sbr.rel target = $region3
  $region8: #{encoder_forward.6} parent=0 // loop_exit
    _

// kernel: encoder_forward.11
$region0: #{encoder_forward.11}
  #allocation0 [shape = 'u32[]', space=smem, size = 0x4, offset = 0x4, fixed_abs, tag = 'smem constant byte address 0x4 - core index']
  #allocation1 [shape = 'u32[144,128]{1,0:T(1,128)}', space=vmem, size = 0x12000, scoped, tag = 'internal scratch']
  %s0 = inlined_call_operand.vmem [shape: f32[16,32], index: 0, kind: input, shape index: {}]
  %s1 = inlined_call_operand.vmem [shape: f32[1,32], index: 1, kind: input, shape index: {}]
  %s2 = inlined_call_operand.vmem [shape: f32[1,32], index: 2, kind: input, shape index: {}]
  %s3 = inlined_call_operand.vmem [shape: bf16[32,8], index: 3, kind: input, shape index: {}]
  %s4 = inlined_call_operand.vmem [shape: f32[1,8], index: 4, kind: input, shape index: {}]
  %s5 = inlined_call_operand.vmem [shape: f32[16,8], index: 5, kind: output, shape index: {}]
  %s6 = sld [smem:[#allocation0]]
  $region30: #{encoder_forward.11} parent=0
    _
  %s8 = ssub.s32 1, %s6
  %s9 = scalar_select 0, %s8, %s6
  // Predicated region
  $region2: #{encoder_forward.11} parent=0 // pred_check
    _
  $region3: #{encoder_forward.11} parent=0 // pred_check_branch
    %11 = sbr.rel (0) target = $region5
  $region4: #{encoder_forward.11} parent=0 // pred_region
    _
  $region5: #{encoder_forward.11} parent=0 // pred_fallthru
    _
  // Predicated region
  $region6: #{encoder_forward.11} parent=0 // pred_check
    _
  $region7: #{encoder_forward.11} parent=0 // pred_check_branch
    %13 = sbr.rel (0) target = $region9
  $region8: #{encoder_forward.11} parent=0 // pred_region
    _
  $region9: #{encoder_forward.11} parent=0 // pred_fallthru
    _
  // Predicated region
  $region10: #{encoder_forward.11} parent=0 // pred_check
    _
  $region11: #{encoder_forward.11} parent=0 // pred_check_branch
    %15 = sbr.rel (0) target = $region13
  $region12: #{encoder_forward.11} parent=0 // pred_region
    _
  $region13: #{encoder_forward.11} parent=0 // pred_fallthru
    _
  // Predicated region
  $region14: #{encoder_forward.11} parent=0 // pred_check
    _
  $region15: #{encoder_forward.11} parent=0 // pred_check_branch
    %17 = sbr.rel (0) target = $region17
  $region16: #{encoder_forward.11} parent=0 // pred_region
    _
  $region17: #{encoder_forward.11} parent=0 // pred_fallthru
    _
  // Predicated region
  $region18: #{encoder_forward.11} parent=0 // pred_check
    _
  $region19: #{encoder_forward.11} parent=0 // pred_check_branch
    %19 = sbr.rel (0) target = $region21
  $region20: #{encoder_forward.11} parent=0 // pred_region
    _
  $region21: #{encoder_forward.11} parent=0 // pred_fallthru
    _
  %v21 = vld [vmem:[%s0] sm:$0xff]
  %v22 = vld [vmem:[%s0 + $0x8] sm:$0xff]
  %v23 = vld [vmem:[%s1] sm:$0x1]
  %v24 = vld [vmem:[%s2] sm:$0x1]
  %vm25 = vcmask 261120
  %v26 = vsel %vm25, %v21, 0.0
  %27 = vadd.xlane.f32.xlu0 %v26
  %v28 = vpop.xlane.xlu0 %27
  %v29 = vsel %vm25, %v22, 0.0
  %30 = vadd.xlane.f32.xlu0 %v29
  %v31 = vpop.xlane.xlu0 %30
  %v32 = vrcp.pop 32.0
  %v33 = vmul.f32 %v28, %v32
  %v34 = vmul.f32 %v31, %v32
  %v35 = vsub.f32 %v21, %v33
  %v36 = vsub.f32 %v22, %v34
  %v37 = vmul.f32 %v35, %v35
  %v38 = vmul.f32 %v36, %v36
  %v39 = vsel %vm25, %v37, 0.0
  %40 = vadd.xlane.f32.xlu0 %v39
  %v41 = vpop.xlane.xlu0 %40
  %v42 = vsel %vm25, %v38, 0.0
  %43 = vadd.xlane.f32.xlu0 %v42
  %v44 = vpop.xlane.xlu0 %43
  %v45 = vmul.f32 %v41, %v32
  %v46 = vmul.f32 %v44, %v32
  %v47 = vadd.f32 %v45, 1e-05
  %v48 = vadd.f32 %v46, 1e-05
  %v49 = vrsqrt.pop %v47
  %v50 = vrsqrt.pop %v48
  %v51 = vmul.f32 %v35, %v49
  %v52 = vmul.f32 %v36, %v50
  %v54 = vlaneseq
  %v55 = vshrl.u32 %v54, 7
  %v56 = vsub.s32 0, %v55
  %v57 = vrot.slane %v23, %v56
  %v59 = vmul.f32 %v51, %v57
  %v60 = vmul.f32 %v52, %v57
  %v62 = vlaneseq
  %v63 = vshrl.u32 %v62, 7
  %v64 = vsub.s32 0, %v63
  %v65 = vrot.slane %v24, %v64
  %v67 = vadd.f32 %v59, %v65
  %v68 = vadd.f32 %v60, %v65
  %v69 = vpack.c.bf16 %v68, %v67
  %v70 = vld [vmem:[%s3] sm:$0xf]
  %v71 = vld [vmem:[%s3 + $0x4] sm:$0xf]
  %v72 = vld [vmem:[%s3 + $0x8] sm:$0xf]
  %v73 = vld [vmem:[%s3 + $0xc] sm:$0xf]
  %v74 = vld [vmem:[%s4] sm:$0x1]
  %v76 = vlaneseq
  %v77 = vshrl.u32 %v76, 7
  %v78 = vsub.s32 0, %v77
  %v79 = vrot.slane %v74, %v78
  %v85 = vunpack.c.l.b16 %v70
  %v86 = vunpack.c.l.b16 %v71
  %v87 = vunpack.c.l.b16 %v72
  %v88 = vunpack.c.l.b16 %v73
  %v89 = vpack.c.b16 %v86, %v85
  %v90 = vpack.c.b16 %v88, %v87
  %v94 = vsel %vm25, %v69, 0
  %96 = vmatprep.subr.bf16.mxu0 0
  %97 = vmatpush1.bf16.msra.mxu0 %v89
  %98 = vmatprep.subr.bf16.mxu0 0
  %99 = vmatpush1.bf16.msra.mxu0 %v90
  %100 = vmatprep.subr.bf16.mxu0 0
  %101 = vmatpush1.bf16.msra.mxu0 0
  %102 = vmatprep.subr.bf16.mxu0 0
  %103 = vmatpush1.bf16.msra.mxu0 0
  %104 = vmatprep.subr.bf16.mxu0 0
  %105 = vmatpush1.bf16.msra.mxu0 0
  %106 = vmatprep.subr.bf16.mxu0 0
  %107 = vmatpush1.bf16.msra.mxu0 0
  %108 = vmatprep.subr.bf16.mxu0 0
  %109 = vmatpush1.bf16.msra.mxu0 0
  %110 = vmatprep.subr.bf16.mxu0 0
  %111 = vmatpush1.bf16.msra.mxu0 0
  %112 = vmatprep.subr.bf16.mxu0 0
  %113 = vmatpush1.bf16.msra.mxu0 0
  %114 = vmatprep.subr.bf16.mxu0 0
  %115 = vmatpush1.bf16.msra.mxu0 0
  %116 = vmatprep.subr.bf16.mxu0 0
  %117 = vmatpush1.bf16.msra.mxu0 0
  %118 = vmatprep.subr.bf16.mxu0 0
  %119 = vmatpush1.bf16.msra.mxu0 0
  %120 = vmatprep.subr.bf16.mxu0 0
  %121 = vmatpush1.bf16.msra.mxu0 0
  %122 = vmatprep.subr.bf16.mxu0 0
  %123 = vmatpush1.bf16.msra.mxu0 0
  %124 = vmatprep.subr.bf16.mxu0 0
  %125 = vmatpush1.bf16.msra.mxu0 0
  %126 = vmatprep.subr.bf16.mxu0 0
  %127 = vmatpush1.bf16.msra.mxu0 0
  %128 = vmatprep.mubr.bf16.mxu0 0
  %129 = vmatmul.mubr.bf16.gmra.mrb[0].mxu0 %v94
  %v130 = vpop.f32.mrb[0].mxu0
  %v131 = vadd.f32 %v79, %v130
  %v132 = vpop.f32.mrb[0].mxu0
  %v133 = vpop.f32.mrb[0].mxu0
  %v134 = vadd.f32 %v79, %v133
  %v135 = vpop.f32.mrb[0].mxu0
  %136 = vdwg.mxu0
  %vm137 = vcmask 64512
  %138 = vst.msk [vmem:[%s5] sm:$0xff] %vm137, %v131
  %139 = vst.msk [vmem:[%s5 + $0x8] sm:$0xff] %vm137, %v134
  // Predicated region
  $region22: #{encoder_forward.11} parent=0 // pred_check
    _
  $region23: #{encoder_forward.11} parent=0 // pred_check_branch
    %141 = sbr.rel (0) target = $region25
  $region24: #{encoder_forward.11} parent=0 // pred_region
    _
  $region25: #{encoder_forward.11} parent=0 // pred_fallthru
    _
  // Predicated region
  $region26: #{encoder_forward.11} parent=0 // pred_check
    _
  $region27: #{encoder_forward.11} parent=0 // pred_check_branch
    %143 = sbr.rel (0) target = $region29
  $region28: #{encoder_forward.11} parent=0 // pred_region
    _
  $region29: #{encoder_forward.11} parent=0 // pred_fallthru
    _

// kernel: encoder_forward.7
$region0: #{encoder_forward.7}
  #allocation0 [shape = 'u32[]', space=smem, size = 0x4, offset = 0x4, fixed_abs, tag = 'smem constant byte address 0x4 - core index']
  #allocation1 [shape = 'u32[144,128]{1,0:T(1,128)}', space=vmem, size = 0x12000, scoped, tag = 'internal scratch']
  %s0 = inlined_call_operand.vmem [shape: f32[8,4,16], index: 0, kind: input, shape index: {}]
  %s1 = inlined_call_operand.vmem [shape: f32[1,16], index: 1, kind: input, shape index: {}]
  %s2 = inlined_call_operand.vmem [shape: f32[1,16], index: 2, kind: input, shape index: {}]
  %s3 = inlined_call_operand.vmem [shape: bf16[16,48], index: 3, kind: input, shape index: {}]
  %s4 = inlined_call_operand.vmem [shape: bf16[16,16], index: 4, kind: input, shape index: {}]
  %s5 = inlined_call_operand.vmem [shape: f32[1,16], index: 5, kind: input, shape index: {}]
  %s6 = inlined_call_operand.vmem [shape: f32[1,16], index: 6, kind: input, shape index: {}]
  %s7 = inlined_call_operand.vmem [shape: f32[1,16], index: 7, kind: input, shape index: {}]
  %s8 = inlined_call_operand.vmem [shape: bf16[16,64], index: 8, kind: input, shape index: {}]
  %s9 = inlined_call_operand.vmem [shape: f32[1,64], index: 9, kind: input, shape index: {}]
  %s10 = inlined_call_operand.vmem [shape: bf16[64,16], index: 10, kind: input, shape index: {}]
  %s11 = inlined_call_operand.vmem [shape: f32[1,16], index: 11, kind: input, shape index: {}]
  %s12 = inlined_call_operand.vmem [shape: f32[8,4,16], index: 12, kind: output, shape index: {}]
  %s13 = sld [smem:[#allocation0]]
  $region81: #{encoder_forward.7} parent=0
    _
  %s15 = ssub.s32 1, %s13
  %s16 = scalar_select 0, %s15, %s13
  loop: start=0, step=1, limit=4
  $region2: #{encoder_forward.7} parent=0 // loop_pre_header
    _
  $region3: #{encoder_forward.7} parent=0 // loop_header
    %s18 = sphi 0, %s22
    %p19 = scmp.ge.s32.totalorder %s18, 4
    %s28 = sphi 0, %s30
    %s31 = sphi 0, %s28
    %s32 = sphi 0, %s31
    %s48 = sphi 0, %s32
    %s52 = sphi 0, %s52
    %s54 = sphi 0, %s52
    %s55 = sphi 0, %s54
    %s69 = sphi 0, %s55
    %s73 = sphi 0, %s73
    %s75 = sphi 0, %s73
    %s76 = sphi 0, %s75
    %s90 = sphi 0, %s76
    %s94 = sphi 0, %s94
    %s96 = sphi 0, %s94
    %s97 = sphi 0, %s96
    %s111 = sphi 0, %s97
    %s115 = sphi 0, %s115
    %s117 = sphi 0, %s115
    %s118 = sphi 0, %s117
    %s132 = sphi 0, %s118
    %s136 = sphi 0, %s136
    %s138 = sphi 0, %s136
    %s139 = sphi 0, %s138
    %s153 = sphi 0, %s139
    %s157 = sphi 0, %s157
    %s159 = sphi 0, %s157
    %s160 = sphi 0, %s159
    %s174 = sphi 0, %s160
    %s178 = sphi 0, %s178
    %s180 = sphi 0, %s178
    %s181 = sphi 0, %s180
    %s195 = sphi 0, %s181
    %s199 = sphi 0, %s199
    %s201 = sphi 0, %s199
    %s202 = sphi 0, %s201
    %s216 = sphi 0, %s202
    %s220 = sphi 0, %s220
    %s222 = sphi 0, %s220
    %s223 = sphi 0, %s222
    %s237 = sphi 0, %s223
    %s241 = sphi 0, %s241
    %s243 = sphi 0, %s241
    %s244 = sphi 0, %s243
    %s258 = sphi 0, %s244
    %s262 = sphi 0, %s262
    %s264 = sphi 0, %s262
    %s265 = sphi 0, %s264
    %s279 = sphi 0, %s265
    %s285 = sphi 0, %s287
    %s288 = sphi 0, %s285
    %s289 = sphi 0, %s288
    %s305 = sphi 0, %s289
  $region4: #{encoder_forward.7} parent=0 // loop_header_branch
    %21 = sbr.rel (%p19) target = $region8
  $region5: #{encoder_forward.7} parent=0 // loop_body
    %s23 = ssub.s32 %s18, 1
    %s24 = ssub.s32 %s18, 2
    %s25 = sadd.s32 %s18, 1
    %s26 = ssub.s32 %s18, %s25
    %p27 = scmp.eq.s32.totalorder %s26, 0
    %s29 = sadd.s32 %s28, 1
    %s30 = scalar_select %p27, %s28, %s29
    %p33 = pneg %p27
    %p34 = scmp.eq.s32.totalorder %s18, 1
    %p35 = por %p33, %p34
    %p36 = scmp.ne.s32.totalorder %s28, %s31
    %p37 = scmp.eq.s32.totalorder %s18, 0
    %p38 = por %p36, %p37
    %p39 = scmp.ne.s32.totalorder %s28, %s31
    %p40 = scmp.eq.s32.totalorder %s23, 1
    %p41 = por %p39, %p40
    %p42 = scmp.ne.s32.totalorder %s31, %s32
    %p43 = scmp.eq.s32.totalorder %s23, 0
    %p44 = por %p42, %p43
    %p45 = scmp.ne.s32.totalorder %s31, %s32
    %p46 = scmp.eq.s32.totalorder %s24, 1
    %p47 = por %p45, %p46
    %p49 = scmp.ne.s32.totalorder %s32, %s48
    %p50 = scmp.eq.s32.totalorder %s24, 0
    %p51 = por %p49, %p50
    %s53 = sadd.s32 %s52, 1
    %p56 = scmp.eq.s32.totalorder %s18, 1
    %p57 = scmp.ne.s32.totalorder %s52, %s54
    %p58 = scmp.eq.s32.totalorder %s18, 0
    %p59 = por %p57, %p58
    %p60 = scmp.ne.s32.totalorder %s52, %s54
    %p61 = scmp.eq.s32.totalorder %s23, 1
    %p62 = por %p60, %p61
    %p63 = scmp.ne.s32.totalorder %s54, %s55
    %p64 = scmp.eq.s32.totalorder %s23, 0
    %p65 = por %p63, %p64
    %p66 = scmp.ne.s32.totalorder %s54, %s55
    %p67 = scmp.eq.s32.totalorder %s24, 1
    %p68 = por %p66, %p67
    %p70 = scmp.ne.s32.totalorder %s55, %s69
    %p71 = scmp.eq.s32.totalorder %s24, 0
    %p72 = por %p70, %p71
    %s74 = sadd.s32 %s73, 1
    %p77 = scmp.eq.s32.totalorder %s18, 1
    %p78 = scmp.ne.s32.totalorder %s73, %s75
    %p79 = scmp.eq.s32.totalorder %s18, 0
    %p80 = por %p78, %p79
    %p81 = scmp.ne.s32.totalorder %s73, %s75
    %p82 = scmp.eq.s32.totalorder %s23, 1
    %p83 = por %p81, %p82
    %p84 = scmp.ne.s32.totalorder %s75, %s76
    %p85 = scmp.eq.s32.totalorder %s23, 0
    %p86 = por %p84, %p85
    %p87 = scmp.ne.s32.totalorder %s75, %s76
    %p88 = scmp.eq.s32.totalorder %s24, 1
    %p89 = por %p87, %p88
    %p91 = scmp.ne.s32.totalorder %s76, %s90
    %p92 = scmp.eq.s32.totalorder %s24, 0
    %p93 = por %p91, %p92
    %s95 = sadd.s32 %s94, 1
    %p98 = scmp.eq.s32.totalorder %s18, 1
    %p99 = scmp.ne.s32.totalorder %s94, %s96
    %p100 = scmp.eq.s32.totalorder %s18, 0
    %p101 = por %p99, %p100
    %p102 = scmp.ne.s32.totalorder %s94, %s96
    %p103 = scmp.eq.s32.totalorder %s23, 1
    %p104 = por %p102, %p103
    %p105 = scmp.ne.s32.totalorder %s96, %s97
    %p106 = scmp.eq.s32.totalorder %s23, 0
    %p107 = por %p105, %p106
    %p108 = scmp.ne.s32.totalorder %s96, %s97
    %p109 = scmp.eq.s32.totalorder %s24, 1
    %p110 = por %p108, %p109
    %p112 = scmp.ne.s32.totalorder %s97, %s111
    %p113 = scmp.eq.s32.totalorder %s24, 0
    %p114 = por %p112, %p113
    %s116 = sadd.s32 %s115, 1
    %p119 = scmp.eq.s32.totalorder %s18, 1
    %p120 = scmp.ne.s32.totalorder %s115, %s117
    %p121 = scmp.eq.s32.totalorder %s18, 0
    %p122 = por %p120, %p121
    %p123 = scmp.ne.s32.totalorder %s115, %s117
    %p124 = scmp.eq.s32.totalorder %s23, 1
    %p125 = por %p123, %p124
    %p126 = scmp.ne.s32.totalorder %s117, %s118
    %p127 = scmp.eq.s32.totalorder %s23, 0
    %p128 = por %p126, %p127
    %p129 = scmp.ne.s32.totalorder %s117, %s118
    %p130 = scmp.eq.s32.totalorder %s24, 1
    %p131 = por %p129, %p130
    %p133 = scmp.ne.s32.totalorder %s118, %s132
    %p134 = scmp.eq.s32.totalorder %s24, 0
    %p135 = por %p133, %p134
    %s137 = sadd.s32 %s136, 1
    %p140 = scmp.eq.s32.totalorder %s18, 1
    %p141 = scmp.ne.s32.totalorder %s136, %s138
    %p142 = scmp.eq.s32.totalorder %s18, 0
    %p143 = por %p141, %p142
    %p144 = scmp.ne.s32.totalorder %s136, %s138
    %p145 = scmp.eq.s32.totalorder %s23, 1
    %p146 = por %p144, %p145
    %p147 = scmp.ne.s32.totalorder %s138, %s139
    %p148 = scmp.eq.s32.totalorder %s23, 0
    %p149 = por %p147, %p148
    %p150 = scmp.ne.s32.totalorder %s138, %s139
    %p151 = scmp.eq.s32.totalorder %s24, 1
    %p152 = por %p150, %p151
    %p154 = scmp.ne.s32.totalorder %s139, %s153
    %p155 = scmp.eq.s32.totalorder %s24, 0
    %p156 = por %p154, %p155
    %s158 = sadd.s32 %s157, 1
    %p161 = scmp.eq.s32.totalorder %s18, 1
    %p162 = scmp.ne.s32.totalorder %s157, %s159
    %p163 = scmp.eq.s32.totalorder %s18, 0
    %p164 = por %p162, %p163
    %p165 = scmp.ne.s32.totalorder %s157, %s159
    %p166 = scmp.eq.s32.totalorder %s23, 1
    %p167 = por %p165, %p166
    %p168 = scmp.ne.s32.totalorder %s159, %s160
    %p169 = scmp.eq.s32.totalorder %s23, 0
    %p170 = por %p168, %p169
    %p171 = scmp.ne.s32.totalorder %s159, %s160
    %p172 = scmp.eq.s32.totalorder %s24, 1
    %p173 = por %p171, %p172
    %p175 = scmp.ne.s32.totalorder %s160, %s174
    %p176 = scmp.eq.s32.totalorder %s24, 0
    %p177 = por %p175, %p176
    %s179 = sadd.s32 %s178, 1
    %p182 = scmp.eq.s32.totalorder %s18, 1
    %p183 = scmp.ne.s32.totalorder %s178, %s180
    %p184 = scmp.eq.s32.totalorder %s18, 0
    %p185 = por %p183, %p184
    %p186 = scmp.ne.s32.totalorder %s178, %s180
    %p187 = scmp.eq.s32.totalorder %s23, 1
    %p188 = por %p186, %p187
    %p189 = scmp.ne.s32.totalorder %s180, %s181
    %p190 = scmp.eq.s32.totalorder %s23, 0
    %p191 = por %p189, %p190
    %p192 = scmp.ne.s32.totalorder %s180, %s181
    %p193 = scmp.eq.s32.totalorder %s24, 1
    %p194 = por %p192, %p193
    %p196 = scmp.ne.s32.totalorder %s181, %s195
    %p197 = scmp.eq.s32.totalorder %s24, 0
    %p198 = por %p196, %p197
    %s200 = sadd.s32 %s199, 1
    %p203 = scmp.eq.s32.totalorder %s18, 1
    %p204 = scmp.ne.s32.totalorder %s199, %s201
    %p205 = scmp.eq.s32.totalorder %s18, 0
    %p206 = por %p204, %p205
    %p207 = scmp.ne.s32.totalorder %s199, %s201
    %p208 = scmp.eq.s32.totalorder %s23, 1
    %p209 = por %p207, %p208
    %p210 = scmp.ne.s32.totalorder %s201, %s202
    %p211 = scmp.eq.s32.totalorder %s23, 0
    %p212 = por %p210, %p211
    %p213 = scmp.ne.s32.totalorder %s201, %s202
    %p214 = scmp.eq.s32.totalorder %s24, 1
    %p215 = por %p213, %p214
    %p217 = scmp.ne.s32.totalorder %s202, %s216
    %p218 = scmp.eq.s32.totalorder %s24, 0
    %p219 = por %p217, %p218
    %s221 = sadd.s32 %s220, 1
    %p224 = scmp.eq.s32.totalorder %s18, 1
    %p225 = scmp.ne.s32.totalorder %s220, %s222
    %p226 = scmp.eq.s32.totalorder %s18, 0
    %p227 = por %p225, %p226
    %p228 = scmp.ne.s32.totalorder %s220, %s222
    %p229 = scmp.eq.s32.totalorder %s23, 1
    %p230 = por %p228, %p229
    %p231 = scmp.ne.s32.totalorder %s222, %s223
    %p232 = scmp.eq.s32.totalorder %s23, 0
    %p233 = por %p231, %p232
    %p234 = scmp.ne.s32.totalorder %s222, %s223
    %p235 = scmp.eq.s32.totalorder %s24, 1
    %p236 = por %p234, %p235
    %p238 = scmp.ne.s32.totalorder %s223, %s237
    %p239 = scmp.eq.s32.totalorder %s24, 0
    %p240 = por %p238, %p239
    %s242 = sadd.s32 %s241, 1
    %p245 = scmp.eq.s32.totalorder %s18, 1
    %p246 = scmp.ne.s32.totalorder %s241, %s243
    %p247 = scmp.eq.s32.totalorder %s18, 0
    %p248 = por %p246, %p247
    %p249 = scmp.ne.s32.totalorder %s241, %s243
    %p250 = scmp.eq.s32.totalorder %s23, 1
    %p251 = por %p249, %p250
    %p252 = scmp.ne.s32.totalorder %s243, %s244
    %p253 = scmp.eq.s32.totalorder %s23, 0
    %p254 = por %p252, %p253
    %p255 = scmp.ne.s32.totalorder %s243, %s244
    %p256 = scmp.eq.s32.totalorder %s24, 1
    %p257 = por %p255, %p256
    %p259 = scmp.ne.s32.totalorder %s244, %s258
    %p260 = scmp.eq.s32.totalorder %s24, 0
    %p261 = por %p259, %p260
    %s263 = sadd.s32 %s262, 1
    %p266 = scmp.eq.s32.totalorder %s18, 1
    %p267 = scmp.ne.s32.totalorder %s262, %s264
    %p268 = scmp.eq.s32.totalorder %s18, 0
    %p269 = por %p267, %p268
    %p270 = scmp.ne.s32.totalorder %s262, %s264
    %p271 = scmp.eq.s32.totalorder %s23, 1
    %p272 = por %p270, %p271
    %p273 = scmp.ne.s32.totalorder %s264, %s265
    %p274 = scmp.eq.s32.totalorder %s23, 0
    %p275 = por %p273, %p274
    %p276 = scmp.ne.s32.totalorder %s264, %s265
    %p277 = scmp.eq.s32.totalorder %s24, 1
    %p278 = por %p276, %p277
    %p280 = scmp.ne.s32.totalorder %s265, %s279
    %p281 = scmp.eq.s32.totalorder %s24, 0
    %p282 = por %p280, %p281
    %s283 = ssub.s32 %s18, %s25
    %p284 = scmp.eq.s32.totalorder %s283, 0
    %s286 = sadd.s32 %s285, 1
    %s287 = scalar_select %p284, %s285, %s286
    %p290 = pneg %p284
    %p291 = scmp.eq.s32.totalorder %s18, 1
    %p292 = por %p290, %p291
    %p293 = scmp.ne.s32.totalorder %s285, %s288
    %p294 = scmp.eq.s32.totalorder %s18, 0
    %p295 = por %p293, %p294
    %p296 = scmp.ne.s32.totalorder %s285, %s288
    %p297 = scmp.eq.s32.totalorder %s23, 1
    %p298 = por %p296, %p297
    %p299 = scmp.ne.s32.totalorder %s288, %s289
    %p300 = scmp.eq.s32.totalorder %s23, 0
    %p301 = por %p299, %p300
    %p302 = scmp.ne.s32.totalorder %s288, %s289
    %p303 = scmp.eq.s32.totalorder %s24, 1
    %p304 = por %p302, %p303
    %p306 = scmp.ne.s32.totalorder %s289, %s305
    %p307 = scmp.eq.s32.totalorder %s24, 0
    %p308 = por %p306, %p307
    %p309 = scmp.le.s32.totalorder 1, %s18
    %p310 = scmp.lt.s32.totalorder %s18, 3
    %p311 = pnand %p309, %p310
    %p312 = pneg %p311
    // Predicated region
    $region9: #{encoder_forward.7} parent=5 // pred_check
      _
    $region10: #{encoder_forward.7} parent=5 // pred_check_branch
      %314 = sbr.rel (%p311) target = $region12
    $region11: #{encoder_forward.7} parent=5 // pred_region
      %s315 = ssub.s32 %s18, 1
      // Predicated region
      $region13: #{encoder_forward.7} parent=11 // pred_check
        %p316 = pneg %p65
      $region14: #{encoder_forward.7} parent=11 // pred_check_branch
        %318 = sbr.rel (%p316) target = $region16
      $region15: #{encoder_forward.7} parent=11 // pred_region
        _
      $region16: #{encoder_forward.7} parent=11 // pred_fallthru
        _
      // Predicated region
      $region17: #{encoder_forward.7} parent=11 // pred_check
        %p319 = pneg %p86
      $region18: #{encoder_forward.7} parent=11 // pred_check_branch
        %321 = sbr.rel (%p319) target = $region20
      $region19: #{encoder_forward.7} parent=11 // pred_region
        _
      $region20: #{encoder_forward.7} parent=11 // pred_fallthru
        _
      // Predicated region
      $region21: #{encoder_forward.7} parent=11 // pred_check
        %p322 = pneg %p107
      $region22: #{encoder_forward.7} parent=11 // pred_check_branch
        %324 = sbr.rel (%p322) target = $region24
      $region23: #{encoder_forward.7} parent=11 // pred_region
        _
      $region24: #{encoder_forward.7} parent=11 // pred_fallthru
        _
      // Predicated region
      $region25: #{encoder_forward.7} parent=11 // pred_check
        %p325 = pneg %p128
      $region26: #{encoder_forward.7} parent=11 // pred_check_branch
        %327 = sbr.rel (%p325) target = $region28
      $region27: #{encoder_forward.7} parent=11 // pred_region
        _
      $region28: #{encoder_forward.7} parent=11 // pred_fallthru
        _
      // Predicated region
      $region29: #{encoder_forward.7} parent=11 // pred_check
        %p328 = pneg %p149
      $region30: #{encoder_forward.7} parent=11 // pred_check_branch
        %330 = sbr.rel (%p328) target = $region32
      $region31: #{encoder_forward.7} parent=11 // pred_region
        _
      $region32: #{encoder_forward.7} parent=11 // pred_fallthru
        _
      // Predicated region
      $region33: #{encoder_forward.7} parent=11 // pred_check
        %p331 = pneg %p170
      $region34: #{encoder_forward.7} parent=11 // pred_check_branch
        %333 = sbr.rel (%p331) target = $region36
      $region35: #{encoder_forward.7} parent=11 // pred_region
        _
      $region36: #{encoder_forward.7} parent=11 // pred_fallthru
        _
      // Predicated region
      $region37: #{encoder_forward.7} parent=11 // pred_check
        %p334 = pneg %p191
      $region38: #{encoder_forward.7} parent=11 // pred_check_branch
        %336 = sbr.rel (%p334) target = $region40
      $region39: #{encoder_forward.7} parent=11 // pred_region
        _
      $region40: #{encoder_forward.7} parent=11 // pred_fallthru
        _
      // Predicated region
      $region41: #{encoder_forward.7} parent=11 // pred_check
        %p337 = pneg %p212
      $region42: #{encoder_forward.7} parent=11 // pred_check_branch
        %339 = sbr.rel (%p337) target = $region44
      $region43: #{encoder_forward.7} parent=11 // pred_region
        _
      $region44: #{encoder_forward.7} parent=11 // pred_fallthru
        _
      // Predicated region
      $region45: #{encoder_forward.7} parent=11 // pred_check
        %p340 = pneg %p233
      $region46: #{encoder_forward.7} parent=11 // pred_check_branch
        %342 = sbr.rel (%p340) target = $region48
      $region47: #{encoder_forward.7} parent=11 // pred_region
        _
      $region48: #{encoder_forward.7} parent=11 // pred_fallthru
        _
      // Predicated region
      $region49: #{encoder_forward.7} parent=11 // pred_check
        %p343 = pneg %p254
      $region50: #{encoder_forward.7} parent=11 // pred_check_branch
        %345 = sbr.rel (%p343) target = $region52
      $region51: #{encoder_forward.7} parent=11 // pred_region
        _
      $region52: #{encoder_forward.7} parent=11 // pred_fallthru
        _
      // Predicated region
      $region53: #{encoder_forward.7} parent=11 // pred_check
        %p346 = pneg %p275
      $region54: #{encoder_forward.7} parent=11 // pred_check_branch
        %348 = sbr.rel (%p346) target = $region56
      $region55: #{encoder_forward.7} parent=11 // pred_region
        _
      $region56: #{encoder_forward.7} parent=11 // pred_fallthru
        _
    $region12: #{encoder_forward.7} parent=5 // pred_fallthru
      _
    %p349 = scmp.lt.s32.totalorder %s18, 2
    // Predicated region
    $region57: #{encoder_forward.7} parent=5 // pred_check
      %p350 = pneg %p349
    $region58: #{encoder_forward.7} parent=5 // pred_check_branch
      %352 = sbr.rel (%p350) target = $region60
    $region59: #{encoder_forward.7} parent=5 // pred_region
      // Predicated region
      $region61: #{encoder_forward.7} parent=59 // pred_check
        %p353 = pneg %p38
      $region62: #{encoder_forward.7} parent=59 // pred_check_branch
        %355 = sbr.rel (%p353) target = $region64
      $region63: #{encoder_forward.7} parent=59 // pred_region
        %s356 = smul.u32 4, %s18
        %p357 = scmp.lt.s32.totalorder %s356, 7
        %s358 = scalar_select %p357, %s356, 7
        %s359 = smul.addr %s358, 4
        %s360 = scalar_lea.vmem %s0, %s359
        %s361 = smul.u32 4, %s18
      $region64: #{encoder_forward.7} parent=59 // pred_fallthru
        _
    $region60: #{encoder_forward.7} parent=5 // pred_fallthru
      _
    %p362 = scmp.le.s32.totalorder 1, %s18
    %p363 = scmp.lt.s32.totalorder %s18, 3
    %p364 = pnand %p362, %p363
    %p365 = pneg %p364
    // Predicated region
    $region65: #{encoder_forward.7} parent=5 // pred_check
      _
    $region66: #{encoder_forward.7} parent=5 // pred_check_branch
      %367 = sbr.rel (%p364) target = $region68
    $region67: #{encoder_forward.7} parent=5 // pred_region
      %s368 = ssub.s32 %s18, 1
      %s369 = smul.u32 4, %s23
      %p370 = scmp.lt.s32.totalorder %s369, 7
      %s371 = scalar_select %p370, %s369, 7
      %s372 = smul.addr %s371, 4
      %s373 = scalar_lea.vmem %s0, %s372
      %p374 = pneg %p44
      %p375 = pneg %p41
      %p376 = pneg %p65
      %p377 = pneg %p62
      %p378 = pneg %p86
      %p379 = pneg %p83
      %p380 = pneg %p107
      %p381 = pneg %p104
      %p382 = pneg %p128
      %p383 = pneg %p125
      %p384 = pneg %p149
      %p385 = pneg %p146
      %p386 = pneg %p170
      %p387 = pneg %p167
      %p388 = pneg %p191
      %p389 = pneg %p188
      %p390 = pneg %p212
      %p391 = pneg %p209
      %p392 = pneg %p233
      %p393 = pneg %p230
      %p394 = pneg %p254
      %p395 = pneg %p251
      %p396 = pneg %p275
      %p397 = pneg %p272
      %p398 = pneg %p301
      %p399 = pneg %p298
      %s400 = smul.u32 4, %s23
      %p401 = scmp.lt.s32.totalorder %s400, 7
      %s402 = scalar_select %p401, %s400, 7
      %s403 = smul.addr %s402, 4
      %s404 = scalar_lea.vmem %s12, %s403
      %s405 = smul.u32 4, %s23
      %p406 = scmp.lt.s32.totalorder %s405, 7
      %s407 = scalar_select %p406, %s405, 7
      %s408 = smul.addr %s407, 4
      %s409 = scalar_lea.vmem %s0, %s408
      %s410 = smul.u32 4, %s23
      %s411 = smul.u32 4, %s23
      %p412 = scmp.lt.s32.totalorder %s411, 7
      %s413 = scalar_select %p412, %s411, 7
      %s414 = smul.addr %s413, 4
      %s415 = scalar_lea.vmem %s12, %s414
      %s416 = smul.u32 4, %s23
      %v418 = vld [vmem:[%s409] sm:$0xf]
      %v419 = vld [vmem:[%s409 + $0x4] sm:$0xf]
      %v420 = vld [vmem:[%s409 + $0x8] sm:$0xf]
      %v421 = vld [vmem:[%s409 + $0xc] sm:$0xf]
      %v422 = vld [vmem:[%s1] sm:$0x1]
      %v423 = vld [vmem:[%s2] sm:$0x1]
      %v428 = vcombine.low %v418, %v419
      %v429 = vcombine.low %v420, %v421
      %vm432 = vcmask 130048
      %v433 = vsel %vm432, %v428, 0.0
      %434 = vadd.xlane.f32.xlu0 %v433
      %v435 = vpop.xlane.xlu0 %434
      %v436 = vsel %vm432, %v429, 0.0
      %437 = vadd.xlane.f32.xlu0 %v436
      %v438 = vpop.xlane.xlu0 %437
      %v439 = vrcp.pop 16.0
      %v440 = vmul.f32 %v435, %v439
      %v441 = vmul.f32 %v438, %v439
      %v445 = vunpack.c.l.s4 839922192
      %v446 = vunpack.c.0.s8 %v445
      %v447 = vlaneseq
      %v448 = vshrl.u32 %v447, 7
      %v449 = vsub.s32 %v446, %v448
      %v450 = vrot.slane %v440, %v449
      %v452 = vunpack.c.l.s4 1985246804
      %v453 = vunpack.c.0.s8 %v452
      %v454 = vlaneseq
      %v455 = vshrl.u32 %v454, 7
      %v456 = vsub.s32 %v453, %v455
      %v457 = vrot.slane %v440, %v456
      %v459 = vunpack.c.l.s4 839922192
      %v460 = vunpack.c.0.s8 %v459
      %v461 = vlaneseq
      %v462 = vshrl.u32 %v461, 7
      %v463 = vsub.s32 %v460, %v462
      %v464 = vrot.slane %v441, %v463
      %v466 = vunpack.c.l.s4 1985246804
      %v467 = vunpack.c.0.s8 %v466
      %v468 = vlaneseq
      %v469 = vshrl.u32 %v468, 7
      %v470 = vsub.s32 %v467, %v469
      %v471 = vrot.slane %v441, %v470
      %v476 = vsub.f32 %v418, %v450
      %v477 = vsub.f32 %v419, %v457
      %v478 = vsub.f32 %v420, %v464
      %v479 = vsub.f32 %v421, %v471
      %v480 = vmul.f32 %v476, %v476
      %v481 = vmul.f32 %v477, %v477
      %v482 = vmul.f32 %v478, %v478
      %v483 = vmul.f32 %v479, %v479
      %v488 = vcombine.low %v480, %v481
      %v489 = vcombine.low %v482, %v483
      %v492 = vsel %vm432, %v488, 0.0
      %493 = vadd.xlane.f32.xlu0 %v492
      %v494 = vpop.xlane.xlu0 %493
      %v495 = vsel %vm432, %v489, 0.0
      %496 = vadd.xlane.f32.xlu0 %v495
      %v497 = vpop.xlane.xlu0 %496
      %v498 = vmul.f32 %v494, %v439
      %v499 = vmul.f32 %v497, %v439
      %v500 = vadd.f32 %v498, 1e-05
      %v501 = vadd.f32 %v499, 1e-05
      %v502 = vrsqrt.pop %v500
      %v503 = vrsqrt.pop %v501
      %v507 = vunpack.c.l.s4 839922192
      %v508 = vunpack.c.0.s8 %v507
      %v509 = vlaneseq
      %v510 = vshrl.u32 %v509, 7
      %v511 = vsub.s32 %v508, %v510
      %v512 = vrot.slane %v502, %v511
      %v514 = vunpack.c.l.s4 1985246804
      %v515 = vunpack.c.0.s8 %v514
      %v516 = vlaneseq
      %v517 = vshrl.u32 %v516, 7
      %v518 = vsub.s32 %v515, %v517
      %v519 = vrot.slane %v502, %v518
      %v521 = vunpack.c.l.s4 839922192
      %v522 = vunpack.c.0.s8 %v521
      %v523 = vlaneseq
      %v524 = vshrl.u32 %v523, 7
      %v525 = vsub.s32 %v522, %v524
      %v526 = vrot.slane %v503, %v525
      %v528 = vunpack.c.l.s4 1985246804
      %v529 = vunpack.c.0.s8 %v528
      %v530 = vlaneseq
      %v531 = vshrl.u32 %v530, 7
      %v532 = vsub.s32 %v529, %v531
      %v533 = vrot.slane %v503, %v532
      %v538 = vmul.f32 %v476, %v512
      %v539 = vmul.f32 %v477, %v519
      %v540 = vmul.f32 %v478, %v526
      %v541 = vmul.f32 %v479, %v533
      %v543 = vlaneseq
      %v544 = vshrl.u32 %v543, 7
      %v545 = vsub.s32 0, %v544
      %v546 = vrot.slane %v422, %v545
      %v548 = vcombine.high %v546, %v546
      %v550 = vmul.f32 %v538, %v546
      %v551 = vmul.f32 %v539, %v548
      %v552 = vmul.f32 %v540, %v546
      %v553 = vmul.f32 %v541, %v548
      %v555 = vlaneseq
      %v556 = vshrl.u32 %v555, 7
      %v557 = vsub.s32 0, %v556
      %v558 = vrot.slane %v423, %v557
      %v560 = vcombine.high %v558, %v558
      %v562 = vadd.f32 %v550, %v558
      %v563 = vadd.f32 %v551, %v560
      %v564 = vadd.f32 %v552, %v558
      %v565 = vadd.f32 %v553, %v560
      %v570 = vcombine.low %v562, %v563
      %v571 = vcombine.low %v564, %v565
      %v574 = vpack.c.bf16 %v571, %v570
      %v575 = vld [vmem:[%s3] sm:$0xf]
      %v576 = vld [vmem:[%s3 + $0x4] sm:$0xf]
      %v579 = vunpack.c.l.b16 %v575
      %v580 = vunpack.c.l.b16 %v576
      %v581 = vpack.c.b16 %v580, %v579
      %v584 = vsel %vm432, %v574, 0
      %586 = vmatprep.subr.bf16.mxu0 0
      %587 = vmatpush1.bf16.msra.mxu0 %v581
      %588 = vmatprep.subr.bf16.mxu0 0
      %589 = vmatpush1.bf16.msra.mxu0 0
      %590 = vmatprep.subr.bf16.mxu0 0
      %591 = vmatpush1.bf16.msra.mxu0 0
      %592 = vmatprep.subr.bf16.mxu0 0
      %593 = vmatpush1.bf16.msra.mxu0 0
      %594 = vmatprep.subr.bf16.mxu0 0
      %595 = vmatpush1.bf16.msra.mxu0 0
      %596 = vmatprep.subr.bf16.mxu0 0
      %597 = vmatpush1.bf16.msra.mxu0 0
      %598 = vmatprep.subr.bf16.mxu0 0
      %599 = vmatpush1.bf16.msra.mxu0 0
      %600 = vmatprep.subr.bf16.mxu0 0
      %601 = vmatpush1.bf16.msra.mxu0 0
      %602 = vmatprep.subr.bf16.mxu0 0
      %603 = vmatpush1.bf16.msra.mxu0 0
      %604 = vmatprep.subr.bf16.mxu0 0
      %605 = vmatpush1.bf16.msra.mxu0 0
      %606 = vmatprep.subr.bf16.mxu0 0
      %607 = vmatpush1.bf16.msra.mxu0 0
      %608 = vmatprep.subr.bf16.mxu0 0
      %609 = vmatpush1.bf16.msra.mxu0 0
      %610 = vmatprep.subr.bf16.mxu0 0
      %611 = vmatpush1.bf16.msra.mxu0 0
      %612 = vmatprep.subr.bf16.mxu0 0
      %613 = vmatpush1.bf16.msra.mxu0 0
      %614 = vmatprep.subr.bf16.mxu0 0
      %615 = vmatpush1.bf16.msra.mxu0 0
      %616 = vmatprep.subr.bf16.mxu0 0
      %617 = vmatpush1.bf16.msra.mxu0 0
      %618 = vmatprep.mubr.bf16.mxu0 0
      %619 = vmatmul.mubr.bf16.gmra.mrb[0].mxu0 %v584
      %v620 = vpop.f32.mrb[0].mxu0
      %v621 = vadd.f32 0.0, %v620
      %v622 = vpop.f32.mrb[0].mxu0
      %v623 = vpop.f32.mrb[0].mxu0
      %v624 = vadd.f32 0.0, %v623
      %v625 = vpop.f32.mrb[0].mxu0
      %626 = vdwg.mxu0
      %v627 = vpack.c.bf16 %v624, %v621
      %v629 = vcombine.high %v627, %v627
      %v631 = vunpack.c.l.s4 1983009808
      %v632 = vunpack.c.0.s8 %v631
      %v633 = vlaneseq
      %v634 = vshrl.u32 %v633, 7
      %v635 = vsub.s32 %v632, %v634
      %v636 = vrot.slane %v627, %v635
      %v638 = vunpack.c.l.s4 1983009808
      %v639 = vunpack.c.0.s8 %v638
      %v640 = vlaneseq
      %v641 = vshrl.u32 %v640, 7
      %v642 = vsub.s32 %v639, %v641
      %v643 = vrot.slane %v629, %v642
      %v644 = vcombine.high %v636, %v636
      %v645 = vcombine.high %v643, %v643
      %v647 = vunpack.c.l.s4 1983009808
      %v648 = vunpack.c.0.s8 %v647
      %v649 = vlaneseq
      %v650 = vshrl.u32 %v649, 7
      %v651 = vsub.s32 %v648, %v650
      %v652 = vrot.slane %v636, %v651
      %653 = vrot.lane.b32.xlu0 %v652, 112
      %v654 = vpop.permute.xlu0 %653
      %vm655 = vcmask 64512
      %v657 = vsel %vm655, %v636, 0
      %v660 = vsel %vm655, %v654, 0
      %662 = vmatprep.subr.bf16.mxu0 0
      %663 = vmatpush1.bf16.xpose.msra.mxu0 %v660
      %664 = vmatprep.subr.bf16.mxu0 0
      %665 = vmatpush1.bf16.xpose.msra.mxu0 0
      %666 = vmatprep.subr.bf16.mxu0 0
      %667 = vmatpush1.bf16.xpose.msra.mxu0 0
      %668 = vmatprep.subr.bf16.mxu0 0
      %669 = vmatpush1.bf16.xpose.msra.mxu0 0
      %670 = vmatprep.subr.bf16.mxu0 0
      %671 = vmatpush1.bf16.xpose.msra.mxu0 0
      %672 = vmatprep.subr.bf16.mxu0 0
      %673 = vmatpush1.bf16.xpose.msra.mxu0 0
      %674 = vmatprep.subr.bf16.mxu0 0
      %675 = vmatpush1.bf16.xpose.msra.mxu0 0
      %676 = vmatprep.subr.bf16.mxu0 0
      %677 = vmatpush1.bf16.xpose.msra.mxu0 0
      %678 = vmatprep.subr.bf16.mxu0 0
      %679 = vmatpush1.bf16.xpose.msra.mxu0 0
      %680 = vmatprep.subr.bf16.mxu0 0
      %681 = vmatpush1.bf16.xpose.msra.mxu0 0
      %682 = vmatprep.subr.bf16.mxu0 0
      %683 = vmatpush1.bf16.xpose.msra.mxu0 0
      %684 = vmatprep.subr.bf16.mxu0 0
      %685 = vmatpush1.bf16.xpose.msra.mxu0 0
      %686 = vmatprep.subr.bf16.mxu0 0
      %687 = vmatpush1.bf16.xpose.msra.mxu0 0
      %688 = vmatprep.subr.bf16.mxu0 0
      %689 = vmatpush1.bf16.xpose.msra.mxu0 0
      %690 = vmatprep.subr.bf16.mxu0 0
      %691 = vmatpush1.bf16.xpose.msra.mxu0 0
      %692 = vmatprep.subr.bf16.mxu0 0
      %693 = vmatpush1.bf16.xpose.msra.mxu0 0
      %694 = vmatprep.mubr.bf16.mxu0 0
      %695 = vmatmul.mubr.bf16.gmra.mrb[0].mxu0 %v657
      %v696 = vpop.f32.mrb[0].mxu0
      %v697 = vadd.f32 0.0, %v696
      %v698 = vpop.f32.mrb[0].mxu0
      %v699 = vpop.f32.mrb[0].mxu0
      %v700 = vpop.f32.mrb[0].mxu0
      %701 = vdwg.mxu0
      %v703 = vunpack.c.l.s4 1983009808
      %v704 = vunpack.c.0.s8 %v703
      %v705 = vlaneseq
      %v706 = vshrl.u32 %v705, 7
      %v707 = vsub.s32 %v704, %v706
      %v708 = vrot.slane %v644, %v707
      %709 = vrot.lane.b32.xlu0 %v708, 112
      %v710 = vpop.permute.xlu0 %709
      %v712 = vsel %vm655, %v644, 0
      %v715 = vsel %vm655, %v710, 0
      %717 = vmatprep.subr.bf16.mxu0 0
      %718 = vmatpush1.bf16.xpose.msra.mxu0 %v715
      %719 = vmatprep.subr.bf16.mxu0 0
      %720 = vmatpush1.bf16.xpose.msra.mxu0 0
      %721 = vmatprep.subr.bf16.mxu0 0
      %722 = vmatpush1.bf16.xpose.msra.mxu0 0
      %723 = vmatprep.subr.bf16.mxu0 0
      %724 = vmatpush1.bf16.xpose.msra.mxu0 0
      %725 = vmatprep.subr.bf16.mxu0 0
      %726 = vmatpush1.bf16.xpose.msra.mxu0 0
      %727 = vmatprep.subr.bf16.mxu0 0
      %728 = vmatpush1.bf16.xpose.msra.mxu0 0
      %729 = vmatprep.subr.bf16.mxu0 0
      %730 = vmatpush1.bf16.xpose.msra.mxu0 0
      %731 = vmatprep.subr.bf16.mxu0 0
      %732 = vmatpush1.bf16.xpose.msra.mxu0 0
      %733 = vmatprep.subr.bf16.mxu0 0
      %734 = vmatpush1.bf16.xpose.msra.mxu0 0
      %735 = vmatprep.subr.bf16.mxu0 0
      %736 = vmatpush1.bf16.xpose.msra.mxu0 0
      %737 = vmatprep.subr.bf16.mxu0 0
      %738 = vmatpush1.bf16.xpose.msra.mxu0 0
      %739 = vmatprep.subr.bf16.mxu0 0
      %740 = vmatpush1.bf16.xpose.msra.mxu0 0
      %741 = vmatprep.subr.bf16.mxu0 0
      %742 = vmatpush1.bf16.xpose.msra.mxu0 0
      %743 = vmatprep.subr.bf16.mxu0 0
      %744 = vmatpush1.bf16.xpose.msra.mxu0 0
      %745 = vmatprep.subr.bf16.mxu0 0
      %746 = vmatpush1.bf16.xpose.msra.mxu0 0
      %747 = vmatprep.subr.bf16.mxu0 0
      %748 = vmatpush1.bf16.xpose.msra.mxu0 0
      %749 = vmatprep.mubr.bf16.mxu0 0
      %750 = vmatmul.mubr.bf16.gmra.mrb[0].mxu0 %v712
      %v751 = vpop.f32.mrb[0].mxu0
      %v752 = vadd.f32 0.0, %v751
      %v753 = vpop.f32.mrb[0].mxu0
      %v754 = vpop.f32.mrb[0].mxu0
      %v755 = vpop.f32.mrb[0].mxu0
      %756 = vdwg.mxu0
      %v758 = vunpack.c.l.s4 1983009808
      %v759 = vunpack.c.0.s8 %v758
      %v760 = vlaneseq
      %v761 = vshrl.u32 %v760, 7
      %v762 = vsub.s32 %v759, %v761
      %v763 = vrot.slane %v643, %v762
      %764 = vrot.lane.b32.xlu0 %v763, 112
      %v765 = vpop.permute.xlu0 %764
      %v767 = vsel %vm655, %v643, 0
      %v770 = vsel %vm655, %v765, 0
      %772 = vmatprep.subr.bf16.mxu0 0
      %773 = vmatpush1.bf16.xpose.msra.mxu0 %v770
      %774 = vmatprep.subr.bf16.mxu0 0
      %775 = vmatpush1.bf16.xpose.msra.mxu0 0
      %776 = vmatprep.subr.bf16.mxu0 0
      %777 = vmatpush1.bf16.xpose.msra.mxu0 0
      %778 = vmatprep.subr.bf16.mxu0 0
      %779 = vmatpush1.bf16.xpose.msra.mxu0 0
      %780 = vmatprep.subr.bf16.mxu0 0
      %781 = vmatpush1.bf16.xpose.msra.mxu0 0
      %782 = vmatprep.subr.bf16.mxu0 0
      %783 = vmatpush1.bf16.xpose.msra.mxu0 0
      %784 = vmatprep.subr.bf16.mxu0 0
      %785 = vmatpush1.bf16.xpose.msra.mxu0 0
      %786 = vmatprep.subr.bf16.mxu0 0
      %787 = vmatpush1.bf16.xpose.msra.mxu0 0
      %788 = vmatprep.subr.bf16.mxu0 0
      %789 = vmatpush1.bf16.xpose.msra.mxu0 0
      %790 = vmatprep.subr.bf16.mxu0 0
      %791 = vmatpush1.bf16.xpose.msra.mxu0 0
      %792 = vmatprep.subr.bf16.mxu0 0
      %793 = vmatpush1.bf16.xpose.msra.mxu0 0
      %794 = vmatprep.subr.bf16.mxu0 0
      %795 = vmatpush1.bf16.xpose.msra.mxu0 0
      %796 = vmatprep.subr.bf16.mxu0 0
      %797 = vmatpush1.bf16.xpose.msra.mxu0 0
      %798 = vmatprep.subr.bf16.mxu0 0
      %799 = vmatpush1.bf16.xpose.msra.mxu0 0
      %800 = vmatprep.subr.bf16.mxu0 0
      %801 = vmatpush1.bf16.xpose.msra.mxu0 0
      %802 = vmatprep.subr.bf16.mxu0 0
      %803 = vmatpush1.bf16.xpose.msra.mxu0 0
      %804 = vmatprep.mubr.bf16.mxu0 0
      %805 = vmatmul.mubr.bf16.gmra.mrb[0].mxu0 %v767
      %v806 = vpop.f32.mrb[0].mxu0
      %v807 = vadd.f32 0.0, %v806
      %v808 = vpop.f32.mrb[0].mxu0
      %v809 = vpop.f32.mrb[0].mxu0
      %v810 = vpop.f32.mrb[0].mxu0
      %811 = vdwg.mxu0
      %v813 = vunpack.c.l.s4 1983009808
      %v814 = vunpack.c.0.s8 %v813
      %v815 = vlaneseq
      %v816 = vshrl.u32 %v815, 7
      %v817 = vsub.s32 %v814, %v816
      %v818 = vrot.slane %v645, %v817
      %819 = vrot.lane.b32.xlu0 %v818, 112
      %v820 = vpop.permute.xlu0 %819
      %v822 = vsel %vm655, %v645, 0
      %v825 = vsel %vm655, %v820, 0
      %827 = vmatprep.subr.bf16.mxu0 0
      %828 = vmatpush1.bf16.xpose.msra.mxu0 %v825
      %829 = vmatprep.subr.bf16.mxu0 0
      %830 = vmatpush1.bf16.xpose.msra.mxu0 0
      %831 = vmatprep.subr.bf16.mxu0 0
      %832 = vmatpush1.bf16.xpose.msra.mxu0 0
      %833 = vmatprep.subr.bf16.mxu0 0
      %834 = vmatpush1.bf16.xpose.msra.mxu0 0
      %835 = vmatprep.subr.bf16.mxu0 0
      %836 = vmatpush1.bf16.xpose.msra.mxu0 0
      %837 = vmatprep.subr.bf16.mxu0 0
      %838 = vmatpush1.bf16.xpose.msra.mxu0 0
      %839 = vmatprep.subr.bf16.mxu0 0
      %840 = vmatpush1.bf16.xpose.msra.mxu0 0
      %841 = vmatprep.subr.bf16.mxu0 0
      %842 = vmatpush1.bf16.xpose.msra.mxu0 0
      %843 = vmatprep.subr.bf16.mxu0 0
      %844 = vmatpush1.bf16.xpose.msra.mxu0 0
      %845 = vmatprep.subr.bf16.mxu0 0
      %846 = vmatpush1.bf16.xpose.msra.mxu0 0
      %847 = vmatprep.subr.bf16.mxu0 0
      %848 = vmatpush1.bf16.xpose.msra.mxu0 0
      %849 = vmatprep.subr.bf16.mxu0 0
      %850 = vmatpush1.bf16.xpose.msra.mxu0 0
      %851 = vmatprep.subr.bf16.mxu0 0
      %852 = vmatpush1.bf16.xpose.msra.mxu0 0
      %853 = vmatprep.subr.bf16.mxu0 0
      %854 = vmatpush1.bf16.xpose.msra.mxu0 0
      %855 = vmatprep.subr.bf16.mxu0 0
      %856 = vmatpush1.bf16.xpose.msra.mxu0 0
      %857 = vmatprep.subr.bf16.mxu0 0
      %858 = vmatpush1.bf16.xpose.msra.mxu0 0
      %859 = vmatprep.mubr.bf16.mxu0 0
      %860 = vmatmul.mubr.bf16.gmra.mrb[0].mxu0 %v822
      %v861 = vpop.f32.mrb[0].mxu0
      %v862 = vadd.f32 0.0, %v861
      %v863 = vpop.f32.mrb[0].mxu0
      %v864 = vpop.f32.mrb[0].mxu0
      %v865 = vpop.f32.mrb[0].mxu0
      %866 = vdwg.mxu0
      %vm867 = vcmask 27648
      %v868 = vsel %vm867, %v697, -inf
      %869 = vmax.xlane.f32.xlu0 %v868
      %v870 = vpop.xlane.xlu0 %869
      %v871 = vsel %vm867, %v752, -inf
      %872 = vmax.xlane.f32.xlu0 %v871
      %v873 = vpop.xlane.xlu0 %872
      %v874 = vsel %vm867, %v807, -inf
      %875 = vmax.xlane.f32.xlu0 %v874
      %v876 = vpop.xlane.xlu0 %875
      %v877 = vsel %vm867, %v862, -inf
      %878 = vmax.xlane.f32.xlu0 %v877
      %v879 = vpop.xlane.xlu0 %878
      %v880 = vsub.f32 %v697, %v870
      %v881 = vsub.f32 %v752, %v873
      %v882 = vsub.f32 %v807, %v876
      %v883 = vsub.f32 %v862, %v879
      %v884 = vmul.f32 %v880, 1.442695
      %v885 = vpow.pop %v884
      %v886 = vmul.f32 %v881, 1.442695
      %v887 = vpow.pop %v886
      %v888 = vmul.f32 %v882, 1.442695
      %v889 = vpow.pop %v888
      %v890 = vmul.f32 %v883, 1.442695
      %v891 = vpow.pop %v890
      %v892 = vsel %vm867, %v885, 0.0
      %893 = vadd.xlane.f32.xlu0 %v892
      %v894 = vpop.xlane.xlu0 %893
      %v895 = vsel %vm867, %v887, 0.0
      %896 = vadd.xlane.f32.xlu0 %v895
      %v897 = vpop.xlane.xlu0 %896
      %v898 = vsel %vm867, %v889, 0.0
      %899 = vadd.xlane.f32.xlu0 %v898
      %v900 = vpop.xlane.xlu0 %899
      %v901 = vsel %vm867, %v891, 0.0
      %902 = vadd.xlane.f32.xlu0 %v901
      %v903 = vpop.xlane.xlu0 %902
      %v904 = vrcp.pop %v894
      %v905 = vmul.f32 %v885, %v904
      %v906 = vrcp.pop %v897
      %v907 = vmul.f32 %v887, %v906
      %v908 = vrcp.pop %v900
      %v909 = vmul.f32 %v889, %v908
      %v910 = vrcp.pop %v903
      %v911 = vmul.f32 %v891, %v910
      %v912 = vpack.c.bf16 %v905, %v905
      %v913 = vpack.c.bf16 %v907, %v907
      %v914 = vpack.c.bf16 %v909, %v909
      %v915 = vpack.c.bf16 %v911, %v911
      %916 = vrot.lane.b32.xlu0 %v652, 96
      %v917 = vpop.permute.xlu0 %916
      %vm918 = vcmask 31744
      %v920 = vsel %vm918, %v912, 0
      %vm922 = vcmask 1041408
      %v924 = vsel %vm922, %v917, 0
      %926 = vmatprep.subr.bf16.mxu0 0
      %927 = vmatpush1.bf16.msra.mxu0 %v924
      %928 = vmatprep.subr.bf16.mxu0 0
      %929 = vmatpush1.bf16.msra.mxu0 0
      %930 = vmatprep.subr.bf16.mxu0 0
      %931 = vmatpush1.bf16.msra.mxu0 0
      %932 = vmatprep.subr.bf16.mxu0 0
      %933 = vmatpush1.bf16.msra.mxu0 0
      %934 = vmatprep.subr.bf16.mxu0 0
      %935 = vmatpush1.bf16.msra.mxu0 0
      %936 = vmatprep.subr.bf16.mxu0 0
      %937 = vmatpush1.bf16.msra.mxu0 0
      %938 = vmatprep.subr.bf16.mxu0 0
      %939 = vmatpush1.bf16.msra.mxu0 0
      %940 = vmatprep.subr.bf16.mxu0 0
      %941 = vmatpush1.bf16.msra.mxu0 0
      %942 = vmatprep.subr.bf16.mxu0 0
      %943 = vmatpush1.bf16.msra.mxu0 0
      %944 = vmatprep.subr.bf16.mxu0 0
      %945 = vmatpush1.bf16.msra.mxu0 0
      %946 = vmatprep.subr.bf16.mxu0 0
      %947 = vmatpush1.bf16.msra.mxu0 0
      %948 = vmatprep.subr.bf16.mxu0 0
      %949 = vmatpush1.bf16.msra.mxu0 0
      %950 = vmatprep.subr.bf16.mxu0 0
      %951 = vmatpush1.bf16.msra.mxu0 0
      %952 = vmatprep.subr.bf16.mxu0 0
      %953 = vmatpush1.bf16.msra.mxu0 0
      %954 = vmatprep.subr.bf16.mxu0 0
      %955 = vmatpush1.bf16.msra.mxu0 0
      %956 = vmatprep.subr.bf16.mxu0 0
      %957 = vmatpush1.bf16.msra.mxu0 0
      %958 = vmatprep.mubr.bf16.mxu0 0
      %959 = vmatmul.mubr.bf16.gmra.mrb[0].mxu0 %v920
      %v960 = vpop.f32.mrb[0].mxu0
      %v961 = vadd.f32 0.0, %v960
      %v962 = vpop.f32.mrb[0].mxu0
      %v963 = vpop.f32.mrb[0].mxu0
      %v964 = vpop.f32.mrb[0].mxu0
      %965 = vdwg.mxu0
      %966 = vrot.lane.b32.xlu0 %v708, 96
      %v967 = vpop.permute.xlu0 %966
      %v969 = vsel %vm918, %v913, 0
      %v972 = vsel %vm922, %v967, 0
      %974 = vmatprep.subr.bf16.mxu0 0
      %975 = vmatpush1.bf16.msra.mxu0 %v972
      %976 = vmatprep.subr.bf16.mxu0 0
      %977 = vmatpush1.bf16.msra.mxu0 0
      %978 = vmatprep.subr.bf16.mxu0 0
      %979 = vmatpush1.bf16.msra.mxu0 0
      %980 = vmatprep.subr.bf16.mxu0 0
      %981 = vmatpush1.bf16.msra.mxu0 0
      %982 = vmatprep.subr.bf16.mxu0 0
      %983 = vmatpush1.bf16.msra.mxu0 0
      %984 = vmatprep.subr.bf16.mxu0 0
      %985 = vmatpush1.bf16.msra.mxu0 0
      %986 = vmatprep.subr.bf16.mxu0 0
      %987 = vmatpush1.bf16.msra.mxu0 0
      %988 = vmatprep.subr.bf16.mxu0 0
      %989 = vmatpush1.bf16.msra.mxu0 0
      %990 = vmatprep.subr.bf16.mxu0 0
      %991 = vmatpush1.bf16.msra.mxu0 0
      %992 = vmatprep.subr.bf16.mxu0 0
      %993 = vmatpush1.bf16.msra.mxu0 0
      %994 = vmatprep.subr.bf16.mxu0 0
      %995 = vmatpush1.bf16.msra.mxu0 0
      %996 = vmatprep.subr.bf16.mxu0 0
      %997 = vmatpush1.bf16.msra.mxu0 0
      %998 = vmatprep.subr.bf16.mxu0 0
      %999 = vmatpush1.bf16.msra.mxu0 0
      %1000 = vmatprep.subr.bf16.mxu0 0
      %1001 = vmatpush1.bf16.msra.mxu0 0
      %1002 = vmatprep.subr.bf16.mxu0 0
      %1003 = vmatpush1.bf16.msra.mxu0 0
      %1004 = vmatprep.subr.bf16.mxu0 0
      %1005 = vmatpush1.bf16.msra.mxu0 0
      %1006 = vmatprep.mubr.bf16.mxu0 0
      %1007 = vmatmul.mubr.bf16.gmra.mrb[0].mxu0 %v969
      %v1008 = vpop.f32.mrb[0].mxu0
      %v1009 = vadd.f32 0.0, %v1008
      %v1010 = vpop.f32.mrb[0].mxu0
      %v1011 = vpop.f32.mrb[0].mxu0
      %v1012 = vpop.f32.mrb[0].mxu0
      %1013 = vdwg.mxu0
      %1014 = vrot.lane.b32.xlu0 %v763, 96
      %v1015 = vpop.permute.xlu0 %1014
      %v1017 = vsel %vm918, %v914, 0
      %v1020 = vsel %vm922, %v1015, 0
      %1022 = vmatprep.subr.bf16.mxu0 0
      %1023 = vmatpush1.bf16.msra.mxu0 %v1020
      %1024 = vmatprep.subr.bf16.mxu0 0
      %1025 = vmatpush1.bf16.msra.mxu0 0
      %1026 = vmatprep.subr.bf16.mxu0 0
      %1027 = vmatpush1.bf16.msra.mxu0 0
      %1028 = vmatprep.subr.bf16.mxu0 0
      %1029 = vmatpush1.bf16.msra.mxu0 0
      %1030 = vmatprep.subr.bf16.mxu0 0
      %1031 = vmatpush1.bf16.msra.mxu0 0
      %1032 = vmatprep.subr.bf16.mxu0 0
      %1033 = vmatpush1.bf16.msra.mxu0 0
      %1034 = vmatprep.subr.bf16.mxu0 0
      %1035 = vmatpush1.bf16.msra.mxu0 0
      %1036 = vmatprep.subr.bf16.mxu0 0
      %1037 = vmatpush1.bf16.msra.mxu0 0
      %1038 = vmatprep.subr.bf16.mxu0 0
      %1039 = vmatpush1.bf16.msra.mxu0 0
      %1040 = vmatprep.subr.bf16.mxu0 0
      %1041 = vmatpush1.bf16.msra.mxu0 0
      %1042 = vmatprep.subr.bf16.mxu0 0
      %1043 = vmatpush1.bf16.msra.mxu0 0
      %1044 = vmatprep.subr.bf16.mxu0 0
      %1045 = vmatpush1.bf16.msra.mxu0 0
      %1046 = vmatprep.subr.bf16.mxu0 0
      %1047 = vmatpush1.bf16.msra.mxu0 0
      %1048 = vmatprep.subr.bf16.mxu0 0
      %1049 = vmatpush1.bf16.msra.mxu0 0
      %1050 = vmatprep.subr.bf16.mxu0 0
      %1051 = vmatpush1.bf16.msra.mxu0 0
      %1052 = vmatprep.subr.bf16.mxu0 0
      %1053 = vmatpush1.bf16.msra.mxu0 0
      %1054 = vmatprep.mubr.bf16.mxu0 0
      %1055 = vmatmul.mubr.bf16.gmra.mrb[0].mxu0 %v1017
      %v1056 = vpop.f32.mrb[0].mxu0
      %v1057 = vadd.f32 0.0, %v1056
      %v1058 = vpop.f32.mrb[0].mxu0
      %v1059 = vpop.f32.mrb[0].mxu0
      %v1060 = vpop.f32.mrb[0].mxu0
      %1061 = vdwg.mxu0
      %1062 = vrot.lane.b32.xlu0 %v818, 96
      %v1063 = vpop.permute.xlu0 %1062
      %v1065 = vsel %vm918, %v915, 0
      %v1068 = vsel %vm922, %v1063, 0
      %1070 = vmatprep.subr.bf16.mxu0 0
      %1071 = vmatpush1.bf16.msra.mxu0 %v1068
      %1072 = vmatprep.subr.bf16.mxu0 0
      %1073 = vmatpush1.bf16.msra.mxu0 0
      %1074 = vmatprep.subr.bf16.mxu0 0
      %1075 = vmatpush1.bf16.msra.mxu0 0
      %1076 = vmatprep.subr.bf16.mxu0 0
      %1077 = vmatpush1.bf16.msra.mxu0 0
      %1078 = vmatprep.subr.bf16.mxu0 0
      %1079 = vmatpush1.bf16.msra.mxu0 0
      %1080 = vmatprep.subr.bf16.mxu0 0
      %1081 = vmatpush1.bf16.msra.mxu0 0
      %1082 = vmatprep.subr.bf16.mxu0 0
      %1083 = vmatpush1.bf16.msra.mxu0 0
      %1084 = vmatprep.subr.bf16.mxu0 0
      %1085 = vmatpush1.bf16.msra.mxu0 0
      %1086 = vmatprep.subr.bf16.mxu0 0
      %1087 = vmatpush1.bf16.msra.mxu0 0
      %1088 = vmatprep.subr.bf16.mxu0 0
      %1089 = vmatpush1.bf16.msra.mxu0 0
      %1090 = vmatprep.subr.bf16.mxu0 0
      %1091 = vmatpush1.bf16.msra.mxu0 0
      %1092 = vmatprep.subr.bf16.mxu0 0
      %1093 = vmatpush1.bf16.msra.mxu0 0
      %1094 = vmatprep.subr.bf16.mxu0 0
      %1095 = vmatpush1.bf16.msra.mxu0 0
      %1096 = vmatprep.subr.bf16.mxu0 0
      %1097 = vmatpush1.bf16.msra.mxu0 0
      %1098 = vmatprep.subr.bf16.mxu0 0
      %1099 = vmatpush1.bf16.msra.mxu0 0
      %1100 = vmatprep.subr.bf16.mxu0 0
      %1101 = vmatpush1.bf16.msra.mxu0 0
      %1102 = vmatprep.mubr.bf16.mxu0 0
      %1103 = vmatmul.mubr.bf16.gmra.mrb[0].mxu0 %v1065
      %v1104 = vpop.f32.mrb[0].mxu0
      %v1105 = vadd.f32 0.0, %v1104
      %v1106 = vpop.f32.mrb[0].mxu0
      %v1107 = vpop.f32.mrb[0].mxu0
      %v1108 = vpop.f32.mrb[0].mxu0
      %1109 = vdwg.mxu0
      %1110 = vrot.lane.b32.xlu0 %v652, 120
      %v1111 = vpop.permute.xlu0 %1110
      %1112 = vrot.lane.b32.xlu0 %v652, 104
      %v1113 = vpop.permute.xlu0 %1112
      %v1115 = vsel %vm655, %v1111, 0
      %v1118 = vsel %vm655, %v1113, 0
      %1120 = vmatprep.subr.bf16.mxu0 0
      %1121 = vmatpush1.bf16.xpose.msra.mxu0 %v1118
      %1122 = vmatprep.subr.bf16.mxu0 0
      %1123 = vmatpush1.bf16.xpose.msra.mxu0 0
      %1124 = vmatprep.subr.bf16.mxu0 0
      %1125 = vmatpush1.bf16.xpose.msra.mxu0 0
      %1126 = vmatprep.subr.bf16.mxu0 0
      %1127 = vmatpush1.bf16.xpose.msra.mxu0 0
      %1128 = vmatprep.subr.bf16.mxu0 0
      %1129 = vmatpush1.bf16.xpose.msra.mxu0 0
      %1130 = vmatprep.subr.bf16.mxu0 0
      %1131 = vmatpush1.bf16.xpose.msra.mxu0 0
      %1132 = vmatprep.subr.bf16.mxu0 0
      %1133 = vmatpush1.bf16.xpose.msra.mxu0 0
      %1134 = vmatprep.subr.bf16.mxu0 0
      %1135 = vmatpush1.bf16.xpose.msra.mxu0 0
      %1136 = vmatprep.subr.bf16.mxu0 0
      %1137 = vmatpush1.bf16.xpose.msra.mxu0 0
      %1138 = vmatprep.subr.bf16.mxu0 0
      %1139 = vmatpush1.bf16.xpose.msra.mxu0 0
      %1140 = vmatprep.subr.bf16.mxu0 0
      %1141 = vmatpush1.bf16.xpose.msra.mxu0 0
      %1142 = vmatprep.subr.bf16.mxu0 0
      %1143 = vmatpush1.bf16.xpose.msra.mxu0 0
      %1144 = vmatprep.subr.bf16.mxu0 0
      %1145 = vmatpush1.bf16.xpose.msra.mxu0 0
      %1146 = vmatprep.subr.bf16.mxu0 0
      %1147 = vmatpush1.bf16.xpose.msra.mxu0 0
      %1148 = vmatprep.subr.bf16.mxu0 0
      %1149 = vmatpush1.bf16.xpose.msra.mxu0 0
      %1150 = vmatprep.subr.bf16.mxu0 0
      %1151 = vmatpush1.bf16.xpose.msra.mxu0 0
      %1152 = vmatprep.mubr.bf16.mxu0 0
      %1153 = vmatmul.mubr.bf16.gmra.mrb[0].mxu0 %v1115
      %v1154 = vpop.f32.mrb[0].mxu0
      %v1155 = vadd.f32 0.0, %v1154
      %v1156 = vpop.f32.mrb[0].mxu0
      %v1157 = vpop.f32.mrb[0].mxu0
      %v1158 = vpop.f32.mrb[0].mxu0
      %1159 = vdwg.mxu0
      %1160 = vrot.lane.b32.xlu0 %v708, 120
      %v1161 = vpop.permute.xlu0 %1160
      %1162 = vrot.lane.b32.xlu0 %v708, 104
      %v1163 = vpop.permute.xlu0 %1162
      %v1165 = vsel %vm655, %v1161, 0
      %v1168 = vsel %vm655, %v1163, 0
      %1170 = vmatprep.subr.bf16.mxu0 0
      %1171 = vmatpush1.bf16.xpose.msra.mxu0 %v1168
      %1172 = vmatprep.subr.bf16.mxu0 0
      %1173 = vmatpush1.bf16.xpose.msra.mxu0 0
      %1174 = vmatprep.subr.bf16.mxu0 0
      %1175 = vmatpush1.bf16.xpose.msra.mxu0 0
      %1176 = vmatprep.subr.bf16.mxu0 0
      %1177 = vmatpush1.bf16.xpose.msra.mxu0 0
      %1178 = vmatprep.subr.bf16.mxu0 0
      %1179 = vmatpush1.bf16.xpose.msra.mxu0 0
      %1180 = vmatprep.subr.bf16.mxu0 0
      %1181 = vmatpush1.bf16.xpose.msra.mxu0 0
      %1182 = vmatprep.subr.bf16.mxu0 0
      %1183 = vmatpush1.bf16.xpose.msra.mxu0 0
      %1184 = vmatprep.subr.bf16.mxu0 0
      %1185 = vmatpush1.bf16.xpose.msra.mxu0 0
      %1186 = vmatprep.subr.bf16.mxu0 0
      %1187 = vmatpush1.bf16.xpose.msra.mxu0 0
      %1188 = vmatprep.subr.bf16.mxu0 0
      %1189 = vmatpush1.bf16.xpose.msra.mxu0 0
      %1190 = vmatprep.subr.bf16.mxu0 0
      %1191 = vmatpush1.bf16.xpose.msra.mxu0 0
      %1192 = vmatprep.subr.bf16.mxu0 0
      %1193 = vmatpush1.bf16.xpose.msra.mxu0 0
      %1194 = vmatprep.subr.bf16.mxu0 0
      %1195 = vmatpush1.bf16.xpose.msra.mxu0 0
      %1196 = vmatprep.subr.bf16.mxu0 0
      %1197 = vmatpush1.bf16.xpose.msra.mxu0 0
      %1198 = vmatprep.subr.bf16.mxu0 0
      %1199 = vmatpush1.bf16.xpose.msra.mxu0 0
      %1200 = vmatprep.subr.bf16.mxu0 0
      %1201 = vmatpush1.bf16.xpose.msra.mxu0 0
      %1202 = vmatprep.mubr.bf16.mxu0 0
      %1203 = vmatmul.mubr.bf16.gmra.mrb[0].mxu0 %v1165
      %v1204 = vpop.f32.mrb[0].mxu0
      %v1205 = vadd.f32 0.0, %v1204
      %v1206 = vpop.f32.mrb[0].mxu0
      %v1207 = vpop.f32.mrb[0].mxu0
      %v1208 = vpop.f32.mrb[0].mxu0
      %1209 = vdwg.mxu0
      %1210 = vrot.lane.b32.xlu0 %v763, 120
      %v1211 = vpop.permute.xlu0 %1210
      %1212 = vrot.lane.b32.xlu0 %v763, 104
      %v1213 = vpop.permute.xlu0 %1212
      %v1215 = vsel %vm655, %v1211, 0
      %v1218 = vsel %vm655, %v1213, 0
      %1220 = vmatprep.subr.bf16.mxu0 0
      %1221 = vmatpush1.bf16.xpose.msra.mxu0 %v1218
      %1222 = vmatprep.subr.bf16.mxu0 0
      %1223 = vmatpush1.bf16.xpose.msra.mxu0 0
      %1224 = vmatprep.subr.bf16.mxu0 0
      %1225 = vmatpush1.bf16.xpose.msra.mxu0 0
      %1226 = vmatprep.subr.bf16.mxu0 0
      %1227 = vmatpush1.bf16.xpose.msra.mxu0 0
      %1228 = vmatprep.subr.bf16.mxu0 0
      %1229 = vmatpush1.bf16.xpose.msra.mxu0 0
      %1230 = vmatprep.subr.bf16.mxu0 0
      %1231 = vmatpush1.bf16.xpose.msra.mxu0 0
      %1232 = vmatprep.subr.bf16.mxu0 0
      %1233 = vmatpush1.bf16.xpose.msra.mxu0 0
      %1234 = vmatprep.subr.bf16.mxu0 0
      %1235 = vmatpush1.bf16.xpose.msra.mxu0 0
      %1236 = vmatprep.subr.bf16.mxu0 0
      %1237 = vmatpush1.bf16.xpose.msra.mxu0 0
      %1238 = vmatprep.subr.bf16.mxu0 0
      %1239 = vmatpush1.bf16.xpose.msra.mxu0 0
      %1240 = vmatprep.subr.bf16.mxu0 0
      %1241 = vmatpush1.bf16.xpose.msra.mxu0 0
      %1242 = vmatprep.subr.bf16.mxu0 0
      %1243 = vmatpush1.bf16.xpose.msra.mxu0 0
      %1244 = vmatprep.subr.bf16.mxu0 0
      %1245 = vmatpush1.bf16.xpose.msra.mxu0 0
      %1246 = vmatprep.subr.bf16.mxu0 0
      %1247 = vmatpush1.bf16.xpose.msra.mxu0 0
      %1248 = vmatprep.subr.bf16.mxu0 0
      %1249 = vmatpush1.bf16.xpose.msra.mxu0 0
      %1250 = vmatprep.subr.bf16.mxu0 0
      %1251 = vmatpush1.bf16.xpose.msra.mxu0 0
      %1252 = vmatprep.mubr.bf16.mxu0 0
      %1253 = vmatmul.mubr.bf16.gmra.mrb[0].mxu0 %v1215
      %v1254 = vpop.f32.mrb[0].mxu0
      %v1255 = vadd.f32 0.0, %v1254
      %v1256 = vpop.f32.mrb[0].mxu0
      %v1257 = vpop.f32.mrb[0].mxu0
      %v1258 = vpop.f32.mrb[0].mxu0
      %1259 = vdwg.mxu0
      %1260 = vrot.lane.b32.xlu0 %v818, 120
      %v1261 = vpop.permute.xlu0 %1260
      %1262 = vrot.lane.b32.xlu0 %v818, 104
      %v1263 = vpop.permute.xlu0 %1262
      %v1265 = vsel %vm655, %v1261, 0
      %v1268 = vsel %vm655, %v1263, 0
      %1270 = vmatprep.subr.bf16.mxu0 0
      %1271 = vmatpush1.bf16.xpose.msra.mxu0 %v1268
      %1272 = vmatprep.subr.bf16.mxu0 0
      %1273 = vmatpush1.bf16.xpose.msra.mxu0 0
      %1274 = vmatprep.subr.bf16.mxu0 0
      %1275 = vmatpush1.bf16.xpose.msra.mxu0 0
      %1276 = vmatprep.subr.bf16.mxu0 0
      %1277 = vmatpush1.bf16.xpose.msra.mxu0 0
      %1278 = vmatprep.subr.bf16.mxu0 0
      %1279 = vmatpush1.bf16.xpose.msra.mxu0 0
      %1280 = vmatprep.subr.bf16.mxu0 0
      %1281 = vmatpush1.bf16.xpose.msra.mxu0 0
      %1282 = vmatprep.subr.bf16.mxu0 0
      %1283 = vmatpush1.bf16.xpose.msra.mxu0 0
      %1284 = vmatprep.subr.bf16.mxu0 0
      %1285 = vmatpush1.bf16.xpose.msra.mxu0 0
      %1286 = vmatprep.subr.bf16.mxu0 0
      %1287 = vmatpush1.bf16.xpose.msra.mxu0 0
      %1288 = vmatprep.subr.bf16.mxu0 0
      %1289 = vmatpush1.bf16.xpose.msra.mxu0 0
      %1290 = vmatprep.subr.bf16.mxu0 0
      %1291 = vmatpush1.bf16.xpose.msra.mxu0 0
      %1292 = vmatprep.subr.bf16.mxu0 0
      %1293 = vmatpush1.bf16.xpose.msra.mxu0 0
      %1294 = vmatprep.subr.bf16.mxu0 0
      %1295 = vmatpush1.bf16.xpose.msra.mxu0 0
      %1296 = vmatprep.subr.bf16.mxu0 0
      %1297 = vmatpush1.bf16.xpose.msra.mxu0 0
      %1298 = vmatprep.subr.bf16.mxu0 0
      %1299 = vmatpush1.bf16.xpose.msra.mxu0 0
      %1300 = vmatprep.subr.bf16.mxu0 0
      %1301 = vmatpush1.bf16.xpose.msra.mxu0 0
      %1302 = vmatprep.mubr.bf16.mxu0 0
      %1303 = vmatmul.mubr.bf16.gmra.mrb[0].mxu0 %v1265
      %v1304 = vpop.f32.mrb[0].mxu0
      %v1305 = vadd.f32 0.0, %v1304
      %v1306 = vpop.f32.mrb[0].mxu0
      %v1307 = vpop.f32.mrb[0].mxu0
      %v1308 = vpop.f32.mrb[0].mxu0
      %1309 = vdwg.mxu0
      %v1310 = vsel %vm867, %v1155, -inf
      %1311 = vmax.xlane.f32.xlu0 %v1310
      %v1312 = vpop.xlane.xlu0 %1311
      %v1313 = vsel %vm867, %v1205, -inf
      %1314 = vmax.xlane.f32.xlu0 %v1313
      %v1315 = vpop.xlane.xlu0 %1314
      %v1316 = vsel %vm867, %v1255, -inf
      %1317 = vmax.xlane.f32.xlu0 %v1316
      %v1318 = vpop.xlane.xlu0 %1317
      %v1319 = vsel %vm867, %v1305, -inf
      %1320 = vmax.xlane.f32.xlu0 %v1319
      %v1321 = vpop.xlane.xlu0 %1320
      %v1322 = vsub.f32 %v1155, %v1312
      %v1323 = vsub.f32 %v1205, %v1315
      %v1324 = vsub.f32 %v1255, %v1318
      %v1325 = vsub.f32 %v1305, %v1321
      %v1326 = vmul.f32 %v1322, 1.442695
      %v1327 = vpow.pop %v1326
      %v1328 = vmul.f32 %v1323, 1.442695
      %v1329 = vpow.pop %v1328
      %v1330 = vmul.f32 %v1324, 1.442695
      %v1331 = vpow.pop %v1330
      %v1332 = vmul.f32 %v1325, 1.442695
      %v1333 = vpow.pop %v1332
      %v1334 = vsel %vm867, %v1327, 0.0
      %1335 = vadd.xlane.f32.xlu0 %v1334
      %v1336 = vpop.xlane.xlu0 %1335
      %v1337 = vsel %vm867, %v1329, 0.0
      %1338 = vadd.xlane.f32.xlu0 %v1337
      %v1339 = vpop.xlane.xlu0 %1338
      %v1340 = vsel %vm867, %v1331, 0.0
      %1341 = vadd.xlane.f32.xlu0 %v1340
      %v1342 = vpop.xlane.xlu0 %1341
      %v1343 = vsel %vm867, %v1333, 0.0
      %1344 = vadd.xlane.f32.xlu0 %v1343
      %v1345 = vpop.xlane.xlu0 %1344
      %v1346 = vrcp.pop %v1336
      %v1347 = vmul.f32 %v1327, %v1346
      %v1348 = vrcp.pop %v1339
      %v1349 = vmul.f32 %v1329, %v1348
      %v1350 = vrcp.pop %v1342
      %v1351 = vmul.f32 %v1331, %v1350
      %v1352 = vrcp.pop %v1345
      %v1353 = vmul.f32 %v1333, %v1352
      %v1354 = vpack.c.bf16 %v1347, %v1347
      %v1355 = vpack.c.bf16 %v1349, %v1349
      %v1356 = vpack.c.bf16 %v1351, %v1351
      %v1357 = vpack.c.bf16 %v1353, %v1353
      %1358 = vrot.lane.b32.xlu0 %v652, 88
      %v1359 = vpop.permute.xlu0 %1358
      %v1361 = vsel %vm918, %v1354, 0
      %v1364 = vsel %vm922, %v1359, 0
      %1366 = vmatprep.subr.bf16.mxu0 0
      %1367 = vmatpush1.bf16.msra.mxu0 %v1364
      %1368 = vmatprep.subr.bf16.mxu0 0
      %1369 = vmatpush1.bf16.msra.mxu0 0
      %1370 = vmatprep.subr.bf16.mxu0 0
      %1371 = vmatpush1.bf16.msra.mxu0 0
      %1372 = vmatprep.subr.bf16.mxu0 0
      %1373 = vmatpush1.bf16.msra.mxu0 0
      %1374 = vmatprep.subr.bf16.mxu0 0
      %1375 = vmatpush1.bf16.msra.mxu0 0
      %1376 = vmatprep.subr.bf16.mxu0 0
      %1377 = vmatpush1.bf16.msra.mxu0 0
      %1378 = vmatprep.subr.bf16.mxu0 0
      %1379 = vmatpush1.bf16.msra.mxu0 0
      %1380 = vmatprep.subr.bf16.mxu0 0
      %1381 = vmatpush1.bf16.msra.mxu0 0
      %1382 = vmatprep.subr.bf16.mxu0 0
      %1383 = vmatpush1.bf16.msra.mxu0 0
      %1384 = vmatprep.subr.bf16.mxu0 0
      %1385 = vmatpush1.bf16.msra.mxu0 0
      %1386 = vmatprep.subr.bf16.mxu0 0
      %1387 = vmatpush1.bf16.msra.mxu0 0
      %1388 = vmatprep.subr.bf16.mxu0 0
      %1389 = vmatpush1.bf16.msra.mxu0 0
      %1390 = vmatprep.subr.bf16.mxu0 0
      %1391 = vmatpush1.bf16.msra.mxu0 0
      %1392 = vmatprep.subr.bf16.mxu0 0
      %1393 = vmatpush1.bf16.msra.mxu0 0
      %1394 = vmatprep.subr.bf16.mxu0 0
      %1395 = vmatpush1.bf16.msra.mxu0 0
      %1396 = vmatprep.subr.bf16.mxu0 0
      %1397 = vmatpush1.bf16.msra.mxu0 0
      %1398 = vmatprep.mubr.bf16.mxu0 0
      %1399 = vmatmul.mubr.bf16.gmra.mrb[0].mxu0 %v1361
      %v1400 = vpop.f32.mrb[0].mxu0
      %v1401 = vadd.f32 0.0, %v1400
      %v1402 = vpop.f32.mrb[0].mxu0
      %v1403 = vpop.f32.mrb[0].mxu0
      %v1404 = vpop.f32.mrb[0].mxu0
      %1405 = vdwg.mxu0
      %1406 = vrot.lane.b32.xlu0 %v708, 88
      %v1407 = vpop.permute.xlu0 %1406
      %v1409 = vsel %vm918, %v1355, 0
      %v1412 = vsel %vm922, %v1407, 0
      %1414 = vmatprep.subr.bf16.mxu0 0
      %1415 = vmatpush1.bf16.msra.mxu0 %v1412
      %1416 = vmatprep.subr.bf16.mxu0 0
      %1417 = vmatpush1.bf16.msra.mxu0 0
      %1418 = vmatprep.subr.bf16.mxu0 0
      %1419 = vmatpush1.bf16.msra.mxu0 0
      %1420 = vmatprep.subr.bf16.mxu0 0
      %1421 = vmatpush1.bf16.msra.mxu0 0
      %1422 = vmatprep.subr.bf16.mxu0 0
      %1423 = vmatpush1.bf16.msra.mxu0 0
      %1424 = vmatprep.subr.bf16.mxu0 0
      %1425 = vmatpush1.bf16.msra.mxu0 0
      %1426 = vmatprep.subr.bf16.mxu0 0
      %1427 = vmatpush1.bf16.msra.mxu0 0
      %1428 = vmatprep.subr.bf16.mxu0 0
      %1429 = vmatpush1.bf16.msra.mxu0 0
      %1430 = vmatprep.subr.bf16.mxu0 0
      %1431 = vmatpush1.bf16.msra.mxu0 0
      %1432 = vmatprep.subr.bf16.mxu0 0
      %1433 = vmatpush1.bf16.msra.mxu0 0
      %1434 = vmatprep.subr.bf16.mxu0 0
      %1435 = vmatpush1.bf16.msra.mxu0 0
      %1436 = vmatprep.subr.bf16.mxu0 0
      %1437 = vmatpush1.bf16.msra.mxu0 0
      %1438 = vmatprep.subr.bf16.mxu0 0
      %1439 = vmatpush1.bf16.msra.mxu0 0
      %1440 = vmatprep.subr.bf16.mxu0 0
      %1441 = vmatpush1.bf16.msra.mxu0 0
      %1442 = vmatprep.subr.bf16.mxu0 0
      %1443 = vmatpush1.bf16.msra.mxu0 0
      %1444 = vmatprep.subr.bf16.mxu0 0
      %1445 = vmatpush1.bf16.msra.mxu0 0
      %1446 = vmatprep.mubr.bf16.mxu0 0
      %1447 = vmatmul.mubr.bf16.gmra.mrb[0].mxu0 %v1409
      %v1448 = vpop.f32.mrb[0].mxu0
      %v1449 = vadd.f32 0.0, %v1448
      %v1450 = vpop.f32.mrb[0].mxu0
      %v1451 = vpop.f32.mrb[0].mxu0
      %v1452 = vpop.f32.mrb[0].mxu0
      %1453 = vdwg.mxu0
      %1454 = vrot.lane.b32.xlu0 %v763, 88
      %v1455 = vpop.permute.xlu0 %1454
      %v1457 = vsel %vm918, %v1356, 0
      %v1460 = vsel %vm922, %v1455, 0
      %1462 = vmatprep.subr.bf16.mxu0 0
      %1463 = vmatpush1.bf16.msra.mxu0 %v1460
      %1464 = vmatprep.subr.bf16.mxu0 0
      %1465 = vmatpush1.bf16.msra.mxu0 0
      %1466 = vmatprep.subr.bf16.mxu0 0
      %1467 = vmatpush1.bf16.msra.mxu0 0
      %1468 = vmatprep.subr.bf16.mxu0 0
      %1469 = vmatpush1.bf16.msra.mxu0 0
      %1470 = vmatprep.subr.bf16.mxu0 0
      %1471 = vmatpush1.bf16.msra.mxu0 0
      %1472 = vmatprep.subr.bf16.mxu0 0
      %1473 = vmatpush1.bf16.msra.mxu0 0
      %1474 = vmatprep.subr.bf16.mxu0 0
      %1475 = vmatpush1.bf16.msra.mxu0 0
      %1476 = vmatprep.subr.bf16.mxu0 0
      %1477 = vmatpush1.bf16.msra.mxu0 0
      %1478 = vmatprep.subr.bf16.mxu0 0
      %1479 = vmatpush1.bf16.msra.mxu0 0
      %1480 = vmatprep.subr.bf16.mxu0 0
      %1481 = vmatpush1.bf16.msra.mxu0 0
      %1482 = vmatprep.subr.bf16.mxu0 0
      %1483 = vmatpush1.bf16.msra.mxu0 0
      %1484 = vmatprep.subr.bf16.mxu0 0
      %1485 = vmatpush1.bf16.msra.mxu0 0
      %1486 = vmatprep.subr.bf16.mxu0 0
      %1487 = vmatpush1.bf16.msra.mxu0 0
      %1488 = vmatprep.subr.bf16.mxu0 0
      %1489 = vmatpush1.bf16.msra.mxu0 0
      %1490 = vmatprep.subr.bf16.mxu0 0
      %1491 = vmatpush1.bf16.msra.mxu0 0
      %1492 = vmatprep.subr.bf16.mxu0 0
      %1493 = vmatpush1.bf16.msra.mxu0 0
      %1494 = vmatprep.mubr.bf16.mxu0 0
      %1495 = vmatmul.mubr.bf16.gmra.mrb[0].mxu0 %v1457
      %v1496 = vpop.f32.mrb[0].mxu0
      %v1497 = vadd.f32 0.0, %v1496
      %v1498 = vpop.f32.mrb[0].mxu0
      %v1499 = vpop.f32.mrb[0].mxu0
      %v1500 = vpop.f32.mrb[0].mxu0
      %1501 = vdwg.mxu0
      %1502 = vrot.lane.b32.xlu0 %v818, 88
      %v1503 = vpop.permute.xlu0 %1502
      %v1505 = vsel %vm918, %v1357, 0
      %v1508 = vsel %vm922, %v1503, 0
      %1510 = vmatprep.subr.bf16.mxu0 0
      %1511 = vmatpush1.bf16.msra.mxu0 %v1508
      %1512 = vmatprep.subr.bf16.mxu0 0
      %1513 = vmatpush1.bf16.msra.mxu0 0
      %1514 = vmatprep.subr.bf16.mxu0 0
      %1515 = vmatpush1.bf16.msra.mxu0 0
      %1516 = vmatprep.subr.bf16.mxu0 0
      %1517 = vmatpush1.bf16.msra.mxu0 0
      %1518 = vmatprep.subr.bf16.mxu0 0
      %1519 = vmatpush1.bf16.msra.mxu0 0
      %1520 = vmatprep.subr.bf16.mxu0 0
      %1521 = vmatpush1.bf16.msra.mxu0 0
      %1522 = vmatprep.subr.bf16.mxu0 0
      %1523 = vmatpush1.bf16.msra.mxu0 0
      %1524 = vmatprep.subr.bf16.mxu0 0
      %1525 = vmatpush1.bf16.msra.mxu0 0
      %1526 = vmatprep.subr.bf16.mxu0 0
      %1527 = vmatpush1.bf16.msra.mxu0 0
      %1528 = vmatprep.subr.bf16.mxu0 0
      %1529 = vmatpush1.bf16.msra.mxu0 0
      %1530 = vmatprep.subr.bf16.mxu0 0
      %1531 = vmatpush1.bf16.msra.mxu0 0
      %1532 = vmatprep.subr.bf16.mxu0 0
      %1533 = vmatpush1.bf16.msra.mxu0 0
      %1534 = vmatprep.subr.bf16.mxu0 0
      %1535 = vmatpush1.bf16.msra.mxu0 0
      %1536 = vmatprep.subr.bf16.mxu0 0
      %1537 = vmatpush1.bf16.msra.mxu0 0
      %1538 = vmatprep.subr.bf16.mxu0 0
      %1539 = vmatpush1.bf16.msra.mxu0 0
      %1540 = vmatprep.subr.bf16.mxu0 0
      %1541 = vmatpush1.bf16.msra.mxu0 0
      %1542 = vmatprep.mubr.bf16.mxu0 0
      %1543 = vmatmul.mubr.bf16.gmra.mrb[0].mxu0 %v1505
      %v1544 = vpop.f32.mrb[0].mxu0
      %v1545 = vadd.f32 0.0, %v1544
      %v1546 = vpop.f32.mrb[0].mxu0
      %v1547 = vpop.f32.mrb[0].mxu0
      %v1548 = vpop.f32.mrb[0].mxu0
      %1549 = vdwg.mxu0
      %1554 = vrot.lane.b32.xlu0 %v1401, 8
      %v1555 = vpop.permute.xlu0 %1554
      %1556 = vrot.lane.b32.xlu0 %v1449, 8
      %v1557 = vpop.permute.xlu0 %1556
      %1558 = vrot.lane.b32.xlu0 %v1497, 8
      %v1559 = vpop.permute.xlu0 %1558
      %1560 = vrot.lane.b32.xlu0 %v1545, 8
      %v1561 = vpop.permute.xlu0 %1560
      %v1566 = vsel %vm655, %v961, %v1555
      %v1567 = vsel %vm655, %v1009, %v1557
      %v1568 = vsel %vm655, %v1057, %v1559
      %v1569 = vsel %vm655, %v1105, %v1561
      %v1574 = vcombine.low %v1566, %v1567
      %v1575 = vcombine.low %v1568, %v1569
      %v1578 = vpack.c.bf16 %v1575, %v1574
      %v1579 = vld [vmem:[%s4] sm:$0xf]
      %v1580 = vld [vmem:[%s4 + $0x4] sm:$0xf]
      %v1583 = vunpack.c.l.b16 %v1579
      %v1584 = vunpack.c.l.b16 %v1580
      %v1585 = vpack.c.b16 %v1584, %v1583
      %v1588 = vsel %vm432, %v1578, 0
      %1590 = vmatprep.subr.bf16.mxu0 0
      %1591 = vmatpush1.bf16.msra.mxu0 %v1585
      %1592 = vmatprep.subr.bf16.mxu0 0
      %1593 = vmatpush1.bf16.msra.mxu0 0
      %1594 = vmatprep.subr.bf16.mxu0 0
      %1595 = vmatpush1.bf16.msra.mxu0 0
      %1596 = vmatprep.subr.bf16.mxu0 0
      %1597 = vmatpush1.bf16.msra.mxu0 0
      %1598 = vmatprep.subr.bf16.mxu0 0
      %1599 = vmatpush1.bf16.msra.mxu0 0
      %1600 = vmatprep.subr.bf16.mxu0 0
      %1601 = vmatpush1.bf16.msra.mxu0 0
      %1602 = vmatprep.subr.bf16.mxu0 0
      %1603 = vmatpush1.bf16.msra.mxu0 0
      %1604 = vmatprep.subr.bf16.mxu0 0
      %1605 = vmatpush1.bf16.msra.mxu0 0
      %1606 = vmatprep.subr.bf16.mxu0 0
      %1607 = vmatpush1.bf16.msra.mxu0 0
      %1608 = vmatprep.subr.bf16.mxu0 0
      %1609 = vmatpush1.bf16.msra.mxu0 0
      %1610 = vmatprep.subr.bf16.mxu0 0
      %1611 = vmatpush1.bf16.msra.mxu0 0
      %1612 = vmatprep.subr.bf16.mxu0 0
      %1613 = vmatpush1.bf16.msra.mxu0 0
      %1614 = vmatprep.subr.bf16.mxu0 0
      %1615 = vmatpush1.bf16.msra.mxu0 0
      %1616 = vmatprep.subr.bf16.mxu0 0
      %1617 = vmatpush1.bf16.msra.mxu0 0
      %1618 = vmatprep.subr.bf16.mxu0 0
      %1619 = vmatpush1.bf16.msra.mxu0 0
      %1620 = vmatprep.subr.bf16.mxu0 0
      %1621 = vmatpush1.bf16.msra.mxu0 0
      %1622 = vmatprep.mubr.bf16.mxu0 0
      %1623 = vmatmul.mubr.bf16.gmra.mrb[0].mxu0 %v1588
      %v1624 = vpop.f32.mrb[0].mxu0
      %v1625 = vadd.f32 0.0, %v1624
      %v1626 = vpop.f32.mrb[0].mxu0
      %v1627 = vpop.f32.mrb[0].mxu0
      %v1628 = vadd.f32 0.0, %v1627
      %v1629 = vpop.f32.mrb[0].mxu0
      %1630 = vdwg.mxu0
      %v1633 = vcombine.high %v1625, %v1625
      %v1634 = vcombine.high %v1628, %v1628
      %v1637 = vadd.f32 %v418, %v1625
      %v1638 = vadd.f32 %v419, %v1633
      %v1639 = vadd.f32 %v420, %v1628
      %v1640 = vadd.f32 %v421, %v1634
      %v1641 = vld [vmem:[%s5] sm:$0x1]
      %v1643 = vlaneseq
      %v1644 = vshrl.u32 %v1643, 7
      %v1645 = vsub.s32 0, %v1644
      %v1646 = vrot.slane %v1641, %v1645
      %v1648 = vcombine.high %v1646, %v1646
      %v1650 = vadd.f32 %v1637, %v1646
      %v1651 = vadd.f32 %v1638, %v1648
      %v1652 = vadd.f32 %v1639, %v1646
      %v1653 = vadd.f32 %v1640, %v1648
      %v1654 = vld [vmem:[%s6] sm:$0x1]
      %v1655 = vld [vmem:[%s7] sm:$0x1]
      %v1660 = vcombine.low %v1650, %v1651
      %v1661 = vcombine.low %v1652, %v1653
      %v1664 = vsel %vm432, %v1660, 0.0
      %1665 = vadd.xlane.f32.xlu0 %v1664
      %v1666 = vpop.xlane.xlu0 %1665
      %v1667 = vsel %vm432, %v1661, 0.0
      %1668 = vadd.xlane.f32.xlu0 %v1667
      %v1669 = vpop.xlane.xlu0 %1668
      %v1670 = vmul.f32 %v1666, %v439
      %v1671 = vmul.f32 %v1669, %v439
      %v1675 = vunpack.c.l.s4 839922192
      %v1676 = vunpack.c.0.s8 %v1675
      %v1677 = vlaneseq
      %v1678 = vshrl.u32 %v1677, 7
      %v1679 = vsub.s32 %v1676, %v1678
      %v1680 = vrot.slane %v1670, %v1679
      %v1682 = vunpack.c.l.s4 1985246804
      %v1683 = vunpack.c.0.s8 %v1682
      %v1684 = vlaneseq
      %v1685 = vshrl.u32 %v1684, 7
      %v1686 = vsub.s32 %v1683, %v1685
      %v1687 = vrot.slane %v1670, %v1686
      %v1689 = vunpack.c.l.s4 839922192
      %v1690 = vunpack.c.0.s8 %v1689
      %v1691 = vlaneseq
      %v1692 = vshrl.u32 %v1691, 7
      %v1693 = vsub.s32 %v1690, %v1692
      %v1694 = vrot.slane %v1671, %v1693
      %v1696 = vunpack.c.l.s4 1985246804
      %v1697 = vunpack.c.0.s8 %v1696
      %v1698 = vlaneseq
      %v1699 = vshrl.u32 %v1698, 7
      %v1700 = vsub.s32 %v1697, %v1699
      %v1701 = vrot.slane %v1671, %v1700
      %v1706 = vsub.f32 %v1650, %v1680
      %v1707 = vsub.f32 %v1651, %v1687
      %v1708 = vsub.f32 %v1652, %v1694
      %v1709 = vsub.f32 %v1653, %v1701
      %v1710 = vmul.f32 %v1706, %v1706
      %v1711 = vmul.f32 %v1707, %v1707
      %v1712 = vmul.f32 %v1708, %v1708
      %v1713 = vmul.f32 %v1709, %v1709
      %v1718 = vcombine.low %v1710, %v1711
      %v1719 = vcombine.low %v1712, %v1713
      %v1722 = vsel %vm432, %v1718, 0.0
      %1723 = vadd.xlane.f32.xlu0 %v1722
      %v1724 = vpop.xlane.xlu0 %1723
      %v1725 = vsel %vm432, %v1719, 0.0
      %1726 = vadd.xlane.f32.xlu0 %v1725
      %v1727 = vpop.xlane.xlu0 %1726
      %v1728 = vmul.f32 %v1724, %v439
      %v1729 = vmul.f32 %v1727, %v439
      %v1730 = vadd.f32 %v1728, 1e-05
      %v1731 = vadd.f32 %v1729, 1e-05
      %v1732 = vrsqrt.pop %v1730
      %v1733 = vrsqrt.pop %v1731
      %v1737 = vunpack.c.l.s4 839922192
      %v1738 = vunpack.c.0.s8 %v1737
      %v1739 = vlaneseq
      %v1740 = vshrl.u32 %v1739, 7
      %v1741 = vsub.s32 %v1738, %v1740
      %v1742 = vrot.slane %v1732, %v1741
      %v1744 = vunpack.c.l.s4 1985246804
      %v1745 = vunpack.c.0.s8 %v1744
      %v1746 = vlaneseq
      %v1747 = vshrl.u32 %v1746, 7
      %v1748 = vsub.s32 %v1745, %v1747
      %v1749 = vrot.slane %v1732, %v1748
      %v1751 = vunpack.c.l.s4 839922192
      %v1752 = vunpack.c.0.s8 %v1751
      %v1753 = vlaneseq
      %v1754 = vshrl.u32 %v1753, 7
      %v1755 = vsub.s32 %v1752, %v1754
      %v1756 = vrot.slane %v1733, %v1755
      %v1758 = vunpack.c.l.s4 1985246804
      %v1759 = vunpack.c.0.s8 %v1758
      %v1760 = vlaneseq
      %v1761 = vshrl.u32 %v1760, 7
      %v1762 = vsub.s32 %v1759, %v1761
      %v1763 = vrot.slane %v1733, %v1762
      %v1768 = vmul.f32 %v1706, %v1742
      %v1769 = vmul.f32 %v1707, %v1749
      %v1770 = vmul.f32 %v1708, %v1756
      %v1771 = vmul.f32 %v1709, %v1763
      %v1773 = vlaneseq
      %v1774 = vshrl.u32 %v1773, 7
      %v1775 = vsub.s32 0, %v1774
      %v1776 = vrot.slane %v1654, %v1775
      %v1778 = vcombine.high %v1776, %v1776
      %v1780 = vmul.f32 %v1768, %v1776
      %v1781 = vmul.f32 %v1769, %v1778
      %v1782 = vmul.f32 %v1770, %v1776
      %v1783 = vmul.f32 %v1771, %v1778
      %v1785 = vlaneseq
      %v1786 = vshrl.u32 %v1785, 7
      %v1787 = vsub.s32 0, %v1786
      %v1788 = vrot.slane %v1655, %v1787
      %v1790 = vcombine.high %v1788, %v1788
      %v1792 = vadd.f32 %v1780, %v1788
      %v1793 = vadd.f32 %v1781, %v1790
      %v1794 = vadd.f32 %v1782, %v1788
      %v1795 = vadd.f32 %v1783, %v1790
      %v1800 = vcombine.low %v1792, %v1793
      %v1801 = vcombine.low %v1794, %v1795
      %v1804 = vpack.c.bf16 %v1801, %v1800
      %v1805 = vld [vmem:[%s8] sm:$0xf]
      %v1806 = vld [vmem:[%s8 + $0x4] sm:$0xf]
      %v1807 = vld [vmem:[%s9] sm:$0x1]
      %v1809 = vlaneseq
      %v1810 = vshrl.u32 %v1809, 7
      %v1811 = vsub.s32 0, %v1810
      %v1812 = vrot.slane %v1807, %v1811
      %v1816 = vunpack.c.l.b16 %v1805
      %v1817 = vunpack.c.l.b16 %v1806
      %v1818 = vpack.c.b16 %v1817, %v1816
      %v1821 = vsel %vm432, %v1804, 0
      %1823 = vmatprep.subr.bf16.mxu0 0
      %1824 = vmatpush1.bf16.msra.mxu0 %v1818
      %1825 = vmatprep.subr.bf16.mxu0 0
      %1826 = vmatpush1.bf16.msra.mxu0 0
      %1827 = vmatprep.subr.bf16.mxu0 0
      %1828 = vmatpush1.bf16.msra.mxu0 0
      %1829 = vmatprep.subr.bf16.mxu0 0
      %1830 = vmatpush1.bf16.msra.mxu0 0
      %1831 = vmatprep.subr.bf16.mxu0 0
      %1832 = vmatpush1.bf16.msra.mxu0 0
      %1833 = vmatprep.subr.bf16.mxu0 0
      %1834 = vmatpush1.bf16.msra.mxu0 0
      %1835 = vmatprep.subr.bf16.mxu0 0
      %1836 = vmatpush1.bf16.msra.mxu0 0
      %1837 = vmatprep.subr.bf16.mxu0 0
      %1838 = vmatpush1.bf16.msra.mxu0 0
      %1839 = vmatprep.subr.bf16.mxu0 0
      %1840 = vmatpush1.bf16.msra.mxu0 0
      %1841 = vmatprep.subr.bf16.mxu0 0
      %1842 = vmatpush1.bf16.msra.mxu0 0
      %1843 = vmatprep.subr.bf16.mxu0 0
      %1844 = vmatpush1.bf16.msra.mxu0 0
      %1845 = vmatprep.subr.bf16.mxu0 0
      %1846 = vmatpush1.bf16.msra.mxu0 0
      %1847 = vmatprep.subr.bf16.mxu0 0
      %1848 = vmatpush1.bf16.msra.mxu0 0
      %1849 = vmatprep.subr.bf16.mxu0 0
      %1850 = vmatpush1.bf16.msra.mxu0 0
      %1851 = vmatprep.subr.bf16.mxu0 0
      %1852 = vmatpush1.bf16.msra.mxu0 0
      %1853 = vmatprep.subr.bf16.mxu0 0
      %1854 = vmatpush1.bf16.msra.mxu0 0
      %1855 = vmatprep.mubr.bf16.mxu0 0
      %1856 = vmatmul.mubr.bf16.gmra.mrb[0].mxu0 %v1821
      %v1857 = vpop.f32.mrb[0].mxu0
      %v1858 = vadd.f32 %v1812, %v1857
      %v1859 = vpop.f32.mrb[0].mxu0
      %v1860 = vpop.f32.mrb[0].mxu0
      %v1861 = vadd.f32 %v1812, %v1860
      %v1862 = vpop.f32.mrb[0].mxu0
      %1863 = vdwg.mxu0
      %v1864 = vmax.f32 %v1858, 0.0
      %v1865 = vmax.f32 %v1861, 0.0
      %v1866 = vpack.c.bf16 %v1865, %v1864
      %v1867 = vld [vmem:[%s10] sm:$0xf]
      %v1868 = vld [vmem:[%s10 + $0x4] sm:$0xf]
      %v1869 = vld [vmem:[%s10 + $0x8] sm:$0xf]
      %v1870 = vld [vmem:[%s10 + $0xc] sm:$0xf]
      %v1871 = vld [vmem:[%s10 + $0x10] sm:$0xf]
      %v1872 = vld [vmem:[%s10 + $0x14] sm:$0xf]
      %v1873 = vld [vmem:[%s10 + $0x18] sm:$0xf]
      %v1874 = vld [vmem:[%s10 + $0x1c] sm:$0xf]
      %v1883 = vunpack.c.l.b16 %v1867
      %v1884 = vunpack.c.l.b16 %v1868
      %v1885 = vunpack.c.l.b16 %v1869
      %v1886 = vunpack.c.l.b16 %v1870
      %v1887 = vunpack.c.l.b16 %v1871
      %v1888 = vunpack.c.l.b16 %v1872
      %v1889 = vunpack.c.l.b16 %v1873
      %v1890 = vunpack.c.l.b16 %v1874
      %v1891 = vpack.c.b16 %v1884, %v1883
      %v1892 = vpack.c.b16 %v1886, %v1885
      %v1893 = vpack.c.b16 %v1888, %v1887
      %v1894 = vpack.c.b16 %v1890, %v1889
      %vm1899 = vcmask 523264
      %v1901 = vsel %vm1899, %v1866, 0
      %1903 = vmatprep.subr.bf16.mxu0 0
      %1904 = vmatpush1.bf16.msra.mxu0 %v1891
      %1905 = vmatprep.subr.bf16.mxu0 0
      %1906 = vmatpush1.bf16.msra.mxu0 %v1892
      %1907 = vmatprep.subr.bf16.mxu0 0
      %1908 = vmatpush1.bf16.msra.mxu0 %v1893
      %1909 = vmatprep.subr.bf16.mxu0 0
      %1910 = vmatpush1.bf16.msra.mxu0 %v1894
      %1911 = vmatprep.subr.bf16.mxu0 0
      %1912 = vmatpush1.bf16.msra.mxu0 0
      %1913 = vmatprep.subr.bf16.mxu0 0
      %1914 = vmatpush1.bf16.msra.mxu0 0
      %1915 = vmatprep.subr.bf16.mxu0 0
      %1916 = vmatpush1.bf16.msra.mxu0 0
      %1917 = vmatprep.subr.bf16.mxu0 0
      %1918 = vmatpush1.bf16.msra.mxu0 0
      %1919 = vmatprep.subr.bf16.mxu0 0
      %1920 = vmatpush1.bf16.msra.mxu0 0
      %1921 = vmatprep.subr.bf16.mxu0 0
      %1922 = vmatpush1.bf16.msra.mxu0 0
      %1923 = vmatprep.subr.bf16.mxu0 0
      %1924 = vmatpush1.bf16.msra.mxu0 0
      %1925 = vmatprep.subr.bf16.mxu0 0
      %1926 = vmatpush1.bf16.msra.mxu0 0
      %1927 = vmatprep.subr.bf16.mxu0 0
      %1928 = vmatpush1.bf16.msra.mxu0 0
      %1929 = vmatprep.subr.bf16.mxu0 0
      %1930 = vmatpush1.bf16.msra.mxu0 0
      %1931 = vmatprep.subr.bf16.mxu0 0
      %1932 = vmatpush1.bf16.msra.mxu0 0
      %1933 = vmatprep.subr.bf16.mxu0 0
      %1934 = vmatpush1.bf16.msra.mxu0 0
      %1935 = vmatprep.mubr.bf16.mxu0 0
      %1936 = vmatmul.mubr.bf16.gmra.mrb[0].mxu0 %v1901
      %v1937 = vpop.f32.mrb[0].mxu0
      %v1938 = vadd.f32 0.0, %v1937
      %v1939 = vpop.f32.mrb[0].mxu0
      %v1940 = vpop.f32.mrb[0].mxu0
      %v1941 = vadd.f32 0.0, %v1940
      %v1942 = vpop.f32.mrb[0].mxu0
      %1943 = vdwg.mxu0
      %v1946 = vcombine.high %v1938, %v1938
      %v1947 = vcombine.high %v1941, %v1941
      %v1950 = vadd.f32 %v1650, %v1938
      %v1951 = vadd.f32 %v1651, %v1946
      %v1952 = vadd.f32 %v1652, %v1941
      %v1953 = vadd.f32 %v1653, %v1947
      %v1954 = vld [vmem:[%s11] sm:$0x1]
      %v1956 = vlaneseq
      %v1957 = vshrl.u32 %v1956, 7
      %v1958 = vsub.s32 0, %v1957
      %v1959 = vrot.slane %v1954, %v1958
      %v1961 = vcombine.high %v1959, %v1959
      %v1963 = vadd.f32 %v1950, %v1959
      %v1964 = vadd.f32 %v1951, %v1961
      %v1965 = vadd.f32 %v1952, %v1959
      %v1966 = vadd.f32 %v1953, %v1961
      %vm1967 = vcmask 125952
      %1968 = vst.msk [vmem:[%s415] sm:$0xf] %vm1967, %v1963
      %1969 = vst.msk [vmem:[%s415 + $0x4] sm:$0xf] %vm1967, %v1964
      %1970 = vst.msk [vmem:[%s415 + $0x8] sm:$0xf] %vm1967, %v1965
      %1971 = vst.msk [vmem:[%s415 + $0xc] sm:$0xf] %vm1967, %v1966
      %s1972 = smul.u32 4, %s23
      %p1973 = scmp.lt.s32.totalorder %s1972, 7
      %s1974 = scalar_select %p1973, %s1972, 7
      %s1975 = smul.addr %s1974, 4
      %s1976 = scalar_lea.vmem %s12, %s1975
      // Predicated region
      $region69: #{encoder_forward.7} parent=67 // pred_check
        %p1977 = pneg %p298
      $region70: #{encoder_forward.7} parent=67 // pred_check_branch
        %1979 = sbr.rel (%p1977) target = $region72
      $region71: #{encoder_forward.7} parent=67 // pred_region
        %s1980 = smul.u32 4, %s23
      $region72: #{encoder_forward.7} parent=67 // pred_fallthru
        _
    $region68: #{encoder_forward.7} parent=5 // pred_fallthru
      _
    %p1981 = scmp.le.s32.totalorder 2, %s18
    // Predicated region
    $region73: #{encoder_forward.7} parent=5 // pred_check
      %p1982 = pneg %p1981
    $region74: #{encoder_forward.7} parent=5 // pred_check_branch
      %1984 = sbr.rel (%p1982) target = $region76
    $region75: #{encoder_forward.7} parent=5 // pred_region
      %s1985 = ssub.s32 %s18, 2
      // Predicated region
      $region77: #{encoder_forward.7} parent=75 // pred_check
        %p1986 = pneg %p304
      $region78: #{encoder_forward.7} parent=75 // pred_check_branch
        %1988 = sbr.rel (%p1986) target = $region80
      $region79: #{encoder_forward.7} parent=75 // pred_region
        %s1989 = smul.u32 4, %s24
        %p1990 = scmp.lt.s32.totalorder %s1989, 7
        %s1991 = scalar_select %p1990, %s1989, 7
        %s1992 = smul.addr %s1991, 4
        %s1993 = scalar_lea.vmem %s12, %s1992
      $region80: #{encoder_forward.7} parent=75 // pred_fallthru
        _
    $region76: #{encoder_forward.7} parent=5 // pred_fallthru
      _
  $region6: #{encoder_forward.7} parent=0 // loop_footer
    %s22 = sadd.s32 1, %s18
  $region7: #{encoder_forward.7} parent=0 // loop_footer_branch
    %17 = sbr.rel target = $region3
  $region8: #{encoder_forward.7} parent=0 // loop_exit
    _

// kernel: encoder_forward.8
$region0: #{encoder_forward.8}
  #allocation0 [shape = 'u32[]', space=smem, size = 0x4, offset = 0x4, fixed_abs, tag = 'smem constant byte address 0x4 - core index']
  #allocation1 [shape = 'u32[144,128]{1,0:T(1,128)}', space=vmem, size = 0x12000, scoped, tag = 'internal scratch']
  %s0 = inlined_call_operand.vmem [shape: f32[2,5,64], index: 0, kind: input, shape index: {}]
  %s1 = inlined_call_operand.vmem [shape: f32[2,5,32], index: 1, kind: input, shape index: {}]
  %s2 = inlined_call_operand.vmem [shape: bf16[64,32], index: 2, kind: input, shape index: {}]
  %s3 = inlined_call_operand.vmem [shape: f32[1,32], index: 3, kind: input, shape index: {}]
  %s4 = inlined_call_operand.vmem [shape: f32[1,32], index: 4, kind: input, shape index: {}]
  %s5 = inlined_call_operand.vmem [shape: f32[1,32], index: 5, kind: input, shape index: {}]
  %s6 = inlined_call_operand.vmem [shape: bf16[32,48], index: 6, kind: input, shape index: {}]
  %s7 = inlined_call_operand.vmem [shape: bf16[16,32], index: 7, kind: input, shape index: {}]
  %s8 = inlined_call_operand.vmem [shape: f32[1,32], index: 8, kind: input, shape index: {}]
  %s9 = inlined_call_operand.vmem [shape: f32[1,32], index: 9, kind: input, shape index: {}]
  %s10 = inlined_call_operand.vmem [shape: f32[1,32], index: 10, kind: input, shape index: {}]
  %s11 = inlined_call_operand.vmem [shape: bf16[32,128], index: 11, kind: input, shape index: {}]
  %s12 = inlined_call_operand.vmem [shape: f32[1,128], index: 12, kind: input, shape index: {}]
  %s13 = inlined_call_operand.vmem [shape: bf16[128,32], index: 13, kind: input, shape index: {}]
  %s14 = inlined_call_operand.vmem [shape: f32[1,32], index: 14, kind: input, shape index: {}]
  %s15 = inlined_call_operand.vmem [shape: f32[2,5,32], index: 15, kind: output, shape index: {}]
  %s16 = sld [smem:[#allocation0]]
  $region93: #{encoder_forward.8} parent=0
    _
  %s18 = ssub.s32 1, %s16
  %s19 = scalar_select 0, %s18, %s16
  loop: start=0, step=1, limit=4
  $region2: #{encoder_forward.8} parent=0 // loop_pre_header
    _
  $region3: #{encoder_forward.8} parent=0 // loop_header
    %s21 = sphi 0, %s25
    %p22 = scmp.ge.s32.totalorder %s21, 4
    %s31 = sphi 0, %s33
    %s34 = sphi 0, %s31
    %s35 = sphi 0, %s34
    %s51 = sphi 0, %s35
    %s57 = sphi 0, %s59
    %s60 = sphi 0, %s57
    %s61 = sphi 0, %s60
    %s77 = sphi 0, %s61
    %s81 = sphi 0, %s81
    %s83 = sphi 0, %s81
    %s84 = sphi 0, %s83
    %s98 = sphi 0, %s84
    %s102 = sphi 0, %s102
    %s104 = sphi 0, %s102
    %s105 = sphi 0, %s104
    %s119 = sphi 0, %s105
    %s123 = sphi 0, %s123
    %s125 = sphi 0, %s123
    %s126 = sphi 0, %s125
    %s140 = sphi 0, %s126
    %s144 = sphi 0, %s144
    %s146 = sphi 0, %s144
    %s147 = sphi 0, %s146
    %s161 = sphi 0, %s147
    %s165 = sphi 0, %s165
    %s167 = sphi 0, %s165
    %s168 = sphi 0, %s167
    %s182 = sphi 0, %s168
    %s186 = sphi 0, %s186
    %s188 = sphi 0, %s186
    %s189 = sphi 0, %s188
    %s203 = sphi 0, %s189
    %s207 = sphi 0, %s207
    %s209 = sphi 0, %s207
    %s210 = sphi 0, %s209
    %s224 = sphi 0, %s210
    %s228 = sphi 0, %s228
    %s230 = sphi 0, %s228
    %s231 = sphi 0, %s230
    %s245 = sphi 0, %s231
    %s249 = sphi 0, %s249
    %s251 = sphi 0, %s249
    %s252 = sphi 0, %s251
    %s266 = sphi 0, %s252
    %s270 = sphi 0, %s270
    %s272 = sphi 0, %s270
    %s273 = sphi 0, %s272
    %s287 = sphi 0, %s273
    %s291 = sphi 0, %s291
    %s293 = sphi 0, %s291
    %s294 = sphi 0, %s293
    %s308 = sphi 0, %s294
    %s312 = sphi 0, %s312
    %s314 = sphi 0, %s312
    %s315 = sphi 0, %s314
    %s329 = sphi 0, %s315
    %s333 = sphi 0, %s333
    %s335 = sphi 0, %s333
    %s336 = sphi 0, %s335
    %s350 = sphi 0, %s336
    %s356 = sphi 0, %s358
    %s359 = sphi 0, %s356
    %s360 = sphi 0, %s359
    %s376 = sphi 0, %s360
  $region4: #{encoder_forward.8} parent=0 // loop_header_branch
    %24 = sbr.rel (%p22) target = $region8
  $region5: #{encoder_forward.8} parent=0 // loop_body
    %s26 = ssub.s32 %s21, 1
    %s27 = ssub.s32 %s21, 2
    %s28 = sadd.s32 %s21, 1
    %s29 = ssub.s32 %s21, %s28
    %p30 = scmp.eq.s32.totalorder %s29, 0
    %s32 = sadd.s32 %s31, 1
    %s33 = scalar_select %p30, %s31, %s32
    %p36 = pneg %p30
    %p37 = scmp.eq.s32.totalorder %s21, 1
    %p38 = por %p36, %p37
    %p39 = scmp.ne.s32.totalorder %s31, %s34
    %p40 = scmp.eq.s32.totalorder %s21, 0
    %p41 = por %p39, %p40
    %p42 = scmp.ne.s32.totalorder %s31, %s34
    %p43 = scmp.eq.s32.totalorder %s26, 1
    %p44 = por %p42, %p43
    %p45 = scmp.ne.s32.totalorder %s34, %s35
    %p46 = scmp.eq.s32.totalorder %s26, 0
    %p47 = por %p45, %p46
    %p48 = scmp.ne.s32.totalorder %s34, %s35
    %p49 = scmp.eq.s32.totalorder %s27, 1
    %p50 = por %p48, %p49
    %p52 = scmp.ne.s32.totalorder %s35, %s51
    %p53 = scmp.eq.s32.totalorder %s27, 0
    %p54 = por %p52, %p53
    %s55 = ssub.s32 %s21, %s28
    %p56 = scmp.eq.s32.totalorder %s55, 0
    %s58 = sadd.s32 %s57, 1
    %s59 = scalar_select %p56, %s57, %s58
    %p62 = pneg %p56
    %p63 = scmp.eq.s32.totalorder %s21, 1
    %p64 = por %p62, %p63
    %p65 = scmp.ne.s32.totalorder %s57, %s60
    %p66 = scmp.eq.s32.totalorder %s21, 0
    %p67 = por %p65, %p66
    %p68 = scmp.ne.s32.totalorder %s57, %s60
    %p69 = scmp.eq.s32.totalorder %s26, 1
    %p70 = por %p68, %p69
    %p71 = scmp.ne.s32.totalorder %s60, %s61
    %p72 = scmp.eq.s32.totalorder %s26, 0
    %p73 = por %p71, %p72
    %p74 = scmp.ne.s32.totalorder %s60, %s61
    %p75 = scmp.eq.s32.totalorder %s27, 1
    %p76 = por %p74, %p75
    %p78 = scmp.ne.s32.totalorder %s61, %s77
    %p79 = scmp.eq.s32.totalorder %s27, 0
    %p80 = por %p78, %p79
    %s82 = sadd.s32 %s81, 1
    %p85 = scmp.eq.s32.totalorder %s21, 1
    %p86 = scmp.ne.s32.totalorder %s81, %s83
    %p87 = scmp.eq.s32.totalorder %s21, 0
    %p88 = por %p86, %p87
    %p89 = scmp.ne.s32.totalorder %s81, %s83
    %p90 = scmp.eq.s32.totalorder %s26, 1
    %p91 = por %p89, %p90
    %p92 = scmp.ne.s32.totalorder %s83, %s84
    %p93 = scmp.eq.s32.totalorder %s26, 0
    %p94 = por %p92, %p93
    %p95 = scmp.ne.s32.totalorder %s83, %s84
    %p96 = scmp.eq.s32.totalorder %s27, 1
    %p97 = por %p95, %p96
    %p99 = scmp.ne.s32.totalorder %s84, %s98
    %p100 = scmp.eq.s32.totalorder %s27, 0
    %p101 = por %p99, %p100
    %s103 = sadd.s32 %s102, 1
    %p106 = scmp.eq.s32.totalorder %s21, 1
    %p107 = scmp.ne.s32.totalorder %s102, %s104
    %p108 = scmp.eq.s32.totalorder %s21, 0
    %p109 = por %p107, %p108
    %p110 = scmp.ne.s32.totalorder %s102, %s104
    %p111 = scmp.eq.s32.totalorder %s26, 1
    %p112 = por %p110, %p111
    %p113 = scmp.ne.s32.totalorder %s104, %s105
    %p114 = scmp.eq.s32.totalorder %s26, 0
    %p115 = por %p113, %p114
    %p116 = scmp.ne.s32.totalorder %s104, %s105
    %p117 = scmp.eq.s32.totalorder %s27, 1
    %p118 = por %p116, %p117
    %p120 = scmp.ne.s32.totalorder %s105, %s119
    %p121 = scmp.eq.s32.totalorder %s27, 0
    %p122 = por %p120, %p121
    %s124 = sadd.s32 %s123, 1
    %p127 = scmp.eq.s32.totalorder %s21, 1
    %p128 = scmp.ne.s32.totalorder %s123, %s125
    %p129 = scmp.eq.s32.totalorder %s21, 0
    %p130 = por %p128, %p129
    %p131 = scmp.ne.s32.totalorder %s123, %s125
    %p132 = scmp.eq.s32.totalorder %s26, 1
    %p133 = por %p131, %p132
    %p134 = scmp.ne.s32.totalorder %s125, %s126
    %p135 = scmp.eq.s32.totalorder %s26, 0
    %p136 = por %p134, %p135
    %p137 = scmp.ne.s32.totalorder %s125, %s126
    %p138 = scmp.eq.s32.totalorder %s27, 1
    %p139 = por %p137, %p138
    %p141 = scmp.ne.s32.totalorder %s126, %s140
    %p142 = scmp.eq.s32.totalorder %s27, 0
    %p143 = por %p141, %p142
    %s145 = sadd.s32 %s144, 1
    %p148 = scmp.eq.s32.totalorder %s21, 1
    %p149 = scmp.ne.s32.totalorder %s144, %s146
    %p150 = scmp.eq.s32.totalorder %s21, 0
    %p151 = por %p149, %p150
    %p152 = scmp.ne.s32.totalorder %s144, %s146
    %p153 = scmp.eq.s32.totalorder %s26, 1
    %p154 = por %p152, %p153
    %p155 = scmp.ne.s32.totalorder %s146, %s147
    %p156 = scmp.eq.s32.totalorder %s26, 0
    %p157 = por %p155, %p156
    %p158 = scmp.ne.s32.totalorder %s146, %s147
    %p159 = scmp.eq.s32.totalorder %s27, 1
    %p160 = por %p158, %p159
    %p162 = scmp.ne.s32.totalorder %s147, %s161
    %p163 = scmp.eq.s32.totalorder %s27, 0
    %p164 = por %p162, %p163
    %s166 = sadd.s32 %s165, 1
    %p169 = scmp.eq.s32.totalorder %s21, 1
    %p170 = scmp.ne.s32.totalorder %s165, %s167
    %p171 = scmp.eq.s32.totalorder %s21, 0
    %p172 = por %p170, %p171
    %p173 = scmp.ne.s32.totalorder %s165, %s167
    %p174 = scmp.eq.s32.totalorder %s26, 1
    %p175 = por %p173, %p174
    %p176 = scmp.ne.s32.totalorder %s167, %s168
    %p177 = scmp.eq.s32.totalorder %s26, 0
    %p178 = por %p176, %p177
    %p179 = scmp.ne.s32.totalorder %s167, %s168
    %p180 = scmp.eq.s32.totalorder %s27, 1
    %p181 = por %p179, %p180
    %p183 = scmp.ne.s32.totalorder %s168, %s182
    %p184 = scmp.eq.s32.totalorder %s27, 0
    %p185 = por %p183, %p184
    %s187 = sadd.s32 %s186, 1
    %p190 = scmp.eq.s32.totalorder %s21, 1
    %p191 = scmp.ne.s32.totalorder %s186, %s188
    %p192 = scmp.eq.s32.totalorder %s21, 0
    %p193 = por %p191, %p192
    %p194 = scmp.ne.s32.totalorder %s186, %s188
    %p195 = scmp.eq.s32.totalorder %s26, 1
    %p196 = por %p194, %p195
    %p197 = scmp.ne.s32.totalorder %s188, %s189
    %p198 = scmp.eq.s32.totalorder %s26, 0
    %p199 = por %p197, %p198
    %p200 = scmp.ne.s32.totalorder %s188, %s189
    %p201 = scmp.eq.s32.totalorder %s27, 1
    %p202 = por %p200, %p201
    %p204 = scmp.ne.s32.totalorder %s189, %s203
    %p205 = scmp.eq.s32.totalorder %s27, 0
    %p206 = por %p204, %p205
    %s208 = sadd.s32 %s207, 1
    %p211 = scmp.eq.s32.totalorder %s21, 1
    %p212 = scmp.ne.s32.totalorder %s207, %s209
    %p213 = scmp.eq.s32.totalorder %s21, 0
    %p214 = por %p212, %p213
    %p215 = scmp.ne.s32.totalorder %s207, %s209
    %p216 = scmp.eq.s32.totalorder %s26, 1
    %p217 = por %p215, %p216
    %p218 = scmp.ne.s32.totalorder %s209, %s210
    %p219 = scmp.eq.s32.totalorder %s26, 0
    %p220 = por %p218, %p219
    %p221 = scmp.ne.s32.totalorder %s209, %s210
    %p222 = scmp.eq.s32.totalorder %s27, 1
    %p223 = por %p221, %p222
    %p225 = scmp.ne.s32.totalorder %s210, %s224
    %p226 = scmp.eq.s32.totalorder %s27, 0
    %p227 = por %p225, %p226
    %s229 = sadd.s32 %s228, 1
    %p232 = scmp.eq.s32.totalorder %s21, 1
    %p233 = scmp.ne.s32.totalorder %s228, %s230
    %p234 = scmp.eq.s32.totalorder %s21, 0
    %p235 = por %p233, %p234
    %p236 = scmp.ne.s32.totalorder %s228, %s230
    %p237 = scmp.eq.s32.totalorder %s26, 1
    %p238 = por %p236, %p237
    %p239 = scmp.ne.s32.totalorder %s230, %s231
    %p240 = scmp.eq.s32.totalorder %s26, 0
    %p241 = por %p239, %p240
    %p242 = scmp.ne.s32.totalorder %s230, %s231
    %p243 = scmp.eq.s32.totalorder %s27, 1
    %p244 = por %p242, %p243
    %p246 = scmp.ne.s32.totalorder %s231, %s245
    %p247 = scmp.eq.s32.totalorder %s27, 0
    %p248 = por %p246, %p247
    %s250 = sadd.s32 %s249, 1
    %p253 = scmp.eq.s32.totalorder %s21, 1
    %p254 = scmp.ne.s32.totalorder %s249, %s251
    %p255 = scmp.eq.s32.totalorder %s21, 0
    %p256 = por %p254, %p255
    %p257 = scmp.ne.s32.totalorder %s249, %s251
    %p258 = scmp.eq.s32.totalorder %s26, 1
    %p259 = por %p257, %p258
    %p260 = scmp.ne.s32.totalorder %s251, %s252
    %p261 = scmp.eq.s32.totalorder %s26, 0
    %p262 = por %p260, %p261
    %p263 = scmp.ne.s32.totalorder %s251, %s252
    %p264 = scmp.eq.s32.totalorder %s27, 1
    %p265 = por %p263, %p264
    %p267 = scmp.ne.s32.totalorder %s252, %s266
    %p268 = scmp.eq.s32.totalorder %s27, 0
    %p269 = por %p267, %p268
    %s271 = sadd.s32 %s270, 1
    %p274 = scmp.eq.s32.totalorder %s21, 1
    %p275 = scmp.ne.s32.totalorder %s270, %s272
    %p276 = scmp.eq.s32.totalorder %s21, 0
    %p277 = por %p275, %p276
    %p278 = scmp.ne.s32.totalorder %s270, %s272
    %p279 = scmp.eq.s32.totalorder %s26, 1
    %p280 = por %p278, %p279
    %p281 = scmp.ne.s32.totalorder %s272, %s273
    %p282 = scmp.eq.s32.totalorder %s26, 0
    %p283 = por %p281, %p282
    %p284 = scmp.ne.s32.totalorder %s272, %s273
    %p285 = scmp.eq.s32.totalorder %s27, 1
    %p286 = por %p284, %p285
    %p288 = scmp.ne.s32.totalorder %s273, %s287
    %p289 = scmp.eq.s32.totalorder %s27, 0
    %p290 = por %p288, %p289
    %s292 = sadd.s32 %s291, 1
    %p295 = scmp.eq.s32.totalorder %s21, 1
    %p296 = scmp.ne.s32.totalorder %s291, %s293
    %p297 = scmp.eq.s32.totalorder %s21, 0
    %p298 = por %p296, %p297
    %p299 = scmp.ne.s32.totalorder %s291, %s293
    %p300 = scmp.eq.s32.totalorder %s26, 1
    %p301 = por %p299, %p300
    %p302 = scmp.ne.s32.totalorder %s293, %s294
    %p303 = scmp.eq.s32.totalorder %s26, 0
    %p304 = por %p302, %p303
    %p305 = scmp.ne.s32.totalorder %s293, %s294
    %p306 = scmp.eq.s32.totalorder %s27, 1
    %p307 = por %p305, %p306
    %p309 = scmp.ne.s32.totalorder %s294, %s308
    %p310 = scmp.eq.s32.totalorder %s27, 0
    %p311 = por %p309, %p310
    %s313 = sadd.s32 %s312, 1
    %p316 = scmp.eq.s32.totalorder %s21, 1
    %p317 = scmp.ne.s32.totalorder %s312, %s314
    %p318 = scmp.eq.s32.totalorder %s21, 0
    %p319 = por %p317, %p318
    %p320 = scmp.ne.s32.totalorder %s312, %s314
    %p321 = scmp.eq.s32.totalorder %s26, 1
    %p322 = por %p320, %p321
    %p323 = scmp.ne.s32.totalorder %s314, %s315
    %p324 = scmp.eq.s32.totalorder %s26, 0
    %p325 = por %p323, %p324
    %p326 = scmp.ne.s32.totalorder %s314, %s315
    %p327 = scmp.eq.s32.totalorder %s27, 1
    %p328 = por %p326, %p327
    %p330 = scmp.ne.s32.totalorder %s315, %s329
    %p331 = scmp.eq.s32.totalorder %s27, 0
    %p332 = por %p330, %p331
    %s334 = sadd.s32 %s333, 1
    %p337 = scmp.eq.s32.totalorder %s21, 1
    %p338 = scmp.ne.s32.totalorder %s333, %s335
    %p339 = scmp.eq.s32.totalorder %s21, 0
    %p340 = por %p338, %p339
    %p341 = scmp.ne.s32.totalorder %s333, %s335
    %p342 = scmp.eq.s32.totalorder %s26, 1
    %p343 = por %p341, %p342
    %p344 = scmp.ne.s32.totalorder %s335, %s336
    %p345 = scmp.eq.s32.totalorder %s26, 0
    %p346 = por %p344, %p345
    %p347 = scmp.ne.s32.totalorder %s335, %s336
    %p348 = scmp.eq.s32.totalorder %s27, 1
    %p349 = por %p347, %p348
    %p351 = scmp.ne.s32.totalorder %s336, %s350
    %p352 = scmp.eq.s32.totalorder %s27, 0
    %p353 = por %p351, %p352
    %s354 = ssub.s32 %s21, %s28
    %p355 = scmp.eq.s32.totalorder %s354, 0
    %s357 = sadd.s32 %s356, 1
    %s358 = scalar_select %p355, %s356, %s357
    %p361 = pneg %p355
    %p362 = scmp.eq.s32.totalorder %s21, 1
    %p363 = por %p361, %p362
    %p364 = scmp.ne.s32.totalorder %s356, %s359
    %p365 = scmp.eq.s32.totalorder %s21, 0
    %p366 = por %p364, %p365
    %p367 = scmp.ne.s32.totalorder %s356, %s359
    %p368 = scmp.eq.s32.totalorder %s26, 1
    %p369 = por %p367, %p368
    %p370 = scmp.ne.s32.totalorder %s359, %s360
    %p371 = scmp.eq.s32.totalorder %s26, 0
    %p372 = por %p370, %p371
    %p373 = scmp.ne.s32.totalorder %s359, %s360
    %p374 = scmp.eq.s32.totalorder %s27, 1
    %p375 = por %p373, %p374
    %p377 = scmp.ne.s32.totalorder %s360, %s376
    %p378 = scmp.eq.s32.totalorder %s27, 0
    %p379 = por %p377, %p378
    %p380 = scmp.le.s32.totalorder 1, %s21
    %p381 = scmp.lt.s32.totalorder %s21, 3
    %p382 = pnand %p380, %p381
    %p383 = pneg %p382
    // Predicated region
    $region9: #{encoder_forward.8} parent=5 // pred_check
      _
    $region10: #{encoder_forward.8} parent=5 // pred_check_branch
      %385 = sbr.rel (%p382) target = $region12
    $region11: #{encoder_forward.8} parent=5 // pred_region
      %s386 = ssub.s32 %s21, 1
      // Predicated region
      $region13: #{encoder_forward.8} parent=11 // pred_check
        %p387 = pneg %p94
      $region14: #{encoder_forward.8} parent=11 // pred_check_branch
        %389 = sbr.rel (%p387) target = $region16
      $region15: #{encoder_forward.8} parent=11 // pred_region
        _
      $region16: #{encoder_forward.8} parent=11 // pred_fallthru
        _
      // Predicated region
      $region17: #{encoder_forward.8} parent=11 // pred_check
        %p390 = pneg %p115
      $region18: #{encoder_forward.8} parent=11 // pred_check_branch
        %392 = sbr.rel (%p390) target = $region20
      $region19: #{encoder_forward.8} parent=11 // pred_region
        _
      $region20: #{encoder_forward.8} parent=11 // pred_fallthru
        _
      // Predicated region
      $region21: #{encoder_forward.8} parent=11 // pred_check
        %p393 = pneg %p136
      $region22: #{encoder_forward.8} parent=11 // pred_check_branch
        %395 = sbr.rel (%p393) target = $region24
      $region23: #{encoder_forward.8} parent=11 // pred_region
        _
      $region24: #{encoder_forward.8} parent=11 // pred_fallthru
        _
      // Predicated region
      $region25: #{encoder_forward.8} parent=11 // pred_check
        %p396 = pneg %p157
      $region26: #{encoder_forward.8} parent=11 // pred_check_branch
        %398 = sbr.rel (%p396) target = $region28
      $region27: #{encoder_forward.8} parent=11 // pred_region
        _
      $region28: #{encoder_forward.8} parent=11 // pred_fallthru
        _
      // Predicated region
      $region29: #{encoder_forward.8} parent=11 // pred_check
        %p399 = pneg %p178
      $region30: #{encoder_forward.8} parent=11 // pred_check_branch
        %401 = sbr.rel (%p399) target = $region32
      $region31: #{encoder_forward.8} parent=11 // pred_region
        _
      $region32: #{encoder_forward.8} parent=11 // pred_fallthru
        _
      // Predicated region
      $region33: #{encoder_forward.8} parent=11 // pred_check
        %p402 = pneg %p199
      $region34: #{encoder_forward.8} parent=11 // pred_check_branch
        %404 = sbr.rel (%p402) target = $region36
      $region35: #{encoder_forward.8} parent=11 // pred_region
        _
      $region36: #{encoder_forward.8} parent=11 // pred_fallthru
        _
      // Predicated region
      $region37: #{encoder_forward.8} parent=11 // pred_check
        %p405 = pneg %p220
      $region38: #{encoder_forward.8} parent=11 // pred_check_branch
        %407 = sbr.rel (%p405) target = $region40
      $region39: #{encoder_forward.8} parent=11 // pred_region
        _
      $region40: #{encoder_forward.8} parent=11 // pred_fallthru
        _
      // Predicated region
      $region41: #{encoder_forward.8} parent=11 // pred_check
        %p408 = pneg %p241
      $region42: #{encoder_forward.8} parent=11 // pred_check_branch
        %410 = sbr.rel (%p408) target = $region44
      $region43: #{encoder_forward.8} parent=11 // pred_region
        _
      $region44: #{encoder_forward.8} parent=11 // pred_fallthru
        _
      // Predicated region
      $region45: #{encoder_forward.8} parent=11 // pred_check
        %p411 = pneg %p262
      $region46: #{encoder_forward.8} parent=11 // pred_check_branch
        %413 = sbr.rel (%p411) target = $region48
      $region47: #{encoder_forward.8} parent=11 // pred_region
        _
      $region48: #{encoder_forward.8} parent=11 // pred_fallthru
        _
      // Predicated region
      $region49: #{encoder_forward.8} parent=11 // pred_check
        %p414 = pneg %p283
      $region50: #{encoder_forward.8} parent=11 // pred_check_branch
        %416 = sbr.rel (%p414) target = $region52
      $region51: #{encoder_forward.8} parent=11 // pred_region
        _
      $region52: #{encoder_forward.8} parent=11 // pred_fallthru
        _
      // Predicated region
      $region53: #{encoder_forward.8} parent=11 // pred_check
        %p417 = pneg %p304
      $region54: #{encoder_forward.8} parent=11 // pred_check_branch
        %419 = sbr.rel (%p417) target = $region56
      $region55: #{encoder_forward.8} parent=11 // pred_region
        _
      $region56: #{encoder_forward.8} parent=11 // pred_fallthru
        _
      // Predicated region
      $region57: #{encoder_forward.8} parent=11 // pred_check
        %p420 = pneg %p325
      $region58: #{encoder_forward.8} parent=11 // pred_check_branch
        %422 = sbr.rel (%p420) target = $region60
      $region59: #{encoder_forward.8} parent=11 // pred_region
        _
      $region60: #{encoder_forward.8} parent=11 // pred_fallthru
        _
      // Predicated region
      $region61: #{encoder_forward.8} parent=11 // pred_check
        %p423 = pneg %p346
      $region62: #{encoder_forward.8} parent=11 // pred_check_branch
        %425 = sbr.rel (%p423) target = $region64
      $region63: #{encoder_forward.8} parent=11 // pred_region
        _
      $region64: #{encoder_forward.8} parent=11 // pred_fallthru
        _
    $region12: #{encoder_forward.8} parent=5 // pred_fallthru
      _
    %p426 = scmp.lt.s32.totalorder %s21, 2
    // Predicated region
    $region65: #{encoder_forward.8} parent=5 // pred_check
      %p427 = pneg %p426
    $region66: #{encoder_forward.8} parent=5 // pred_check_branch
      %429 = sbr.rel (%p427) target = $region68
    $region67: #{encoder_forward.8} parent=5 // pred_region
      // Predicated region
      $region69: #{encoder_forward.8} parent=67 // pred_check
        %p430 = pneg %p41
      $region70: #{encoder_forward.8} parent=67 // pred_check_branch
        %432 = sbr.rel (%p430) target = $region72
      $region71: #{encoder_forward.8} parent=67 // pred_region
        %p433 = scmp.lt.s32.totalorder %s21, 1
        %s434 = scalar_select %p433, %s21, 1
        %s435 = smul.addr %s434, 8
        %s436 = scalar_lea.vmem %s0, %s435
      $region72: #{encoder_forward.8} parent=67 // pred_fallthru
        _
      // Predicated region
      $region73: #{encoder_forward.8} parent=67 // pred_check
        %p437 = pneg %p67
      $region74: #{encoder_forward.8} parent=67 // pred_check_branch
        %439 = sbr.rel (%p437) target = $region76
      $region75: #{encoder_forward.8} parent=67 // pred_region
        %p440 = scmp.lt.s32.totalorder %s21, 1
        %s441 = scalar_select %p440, %s21, 1
        %s442 = smul.addr %s441, 8
        %s443 = scalar_lea.vmem %s1, %s442
      $region76: #{encoder_forward.8} parent=67 // pred_fallthru
        _
    $region68: #{encoder_forward.8} parent=5 // pred_fallthru
      _
    %p444 = scmp.le.s32.totalorder 1, %s21
    %p445 = scmp.lt.s32.totalorder %s21, 3
    %p446 = pnand %p444, %p445
    %p447 = pneg %p446
    // Predicated region
    $region77: #{encoder_forward.8} parent=5 // pred_check
      _
    $region78: #{encoder_forward.8} parent=5 // pred_check_branch
      %449 = sbr.rel (%p446) target = $region80
    $region79: #{encoder_forward.8} parent=5 // pred_region
      %s450 = ssub.s32 %s21, 1
      %p451 = scmp.lt.s32.totalorder %s26, 1
      %s452 = scalar_select %p451, %s26, 1
      %s453 = smul.addr %s452, 8
      %s454 = scalar_lea.vmem %s0, %s453
      %p455 = pneg %p47
      %p456 = pneg %p44
      %p457 = scmp.lt.s32.totalorder %s26, 1
      %s458 = scalar_select %p457, %s26, 1
      %s459 = smul.addr %s458, 8
      %s460 = scalar_lea.vmem %s1, %s459
      %p461 = pneg %p73
      %p462 = pneg %p70
      %p463 = pneg %p94
      %p464 = pneg %p91
      %p465 = pneg %p115
      %p466 = pneg %p112
      %p467 = pneg %p136
      %p468 = pneg %p133
      %p469 = pneg %p157
      %p470 = pneg %p154
      %p471 = pneg %p178
      %p472 = pneg %p175
      %p473 = pneg %p199
      %p474 = pneg %p196
      %p475 = pneg %p220
      %p476 = pneg %p217
      %p477 = pneg %p241
      %p478 = pneg %p238
      %p479 = pneg %p262
      %p480 = pneg %p259
      %p481 = pneg %p283
      %p482 = pneg %p280
      %p483 = pneg %p304
      %p484 = pneg %p301
      %p485 = pneg %p325
      %p486 = pneg %p322
      %p487 = pneg %p346
      %p488 = pneg %p343
      %p489 = pneg %p372
      %p490 = pneg %p369
      %p491 = scmp.lt.s32.totalorder %s26, 1
      %s492 = scalar_select %p491, %s26, 1
      %s493 = smul.addr %s492, 8
      %s494 = scalar_lea.vmem %s15, %s493
      %p495 = scmp.lt.s32.totalorder %s26, 1
      %s496 = scalar_select %p495, %s26, 1
      %s497 = smul.addr %s496, 8
      %s498 = scalar_lea.vmem %s0, %s497
      %p499 = scmp.lt.s32.totalorder %s26, 1
      %s500 = scalar_select %p499, %s26, 1
      %s501 = smul.addr %s500, 8
      %s502 = scalar_lea.vmem %s1, %s501
      %p503 = scmp.lt.s32.totalorder %s26, 1
      %s504 = scalar_select %p503, %s26, 1
      %s505 = smul.addr %s504, 8
      %s506 = scalar_lea.vmem %s15, %s505
      %v508 = vld [vmem:[%s498] sm:$0x1f]
      %v509 = vpack.c.bf16 %v508, %v508
      %v510 = vld [vmem:[%s2] sm:$0xf]
      %v511 = vld [vmem:[%s2 + $0x4] sm:$0xf]
      %v512 = vld [vmem:[%s2 + $0x8] sm:$0xf]
      %v513 = vld [vmem:[%s2 + $0xc] sm:$0xf]
      %v514 = vld [vmem:[%s2 + $0x10] sm:$0xf]
      %v515 = vld [vmem:[%s2 + $0x14] sm:$0xf]
      %v516 = vld [vmem:[%s2 + $0x18] sm:$0xf]
      %v517 = vld [vmem:[%s2 + $0x1c] sm:$0xf]
      %v518 = vld [vmem:[%s3] sm:$0x1]
      %v520 = vlaneseq
      %v521 = vshrl.u32 %v520, 7
      %v522 = vsub.s32 0, %v521
      %v523 = vrot.slane %v518, %v522
      %v533 = vunpack.c.l.b16 %v510
      %v534 = vunpack.c.l.b16 %v511
      %v535 = vunpack.c.l.b16 %v512
      %v536 = vunpack.c.l.b16 %v513
      %v537 = vunpack.c.l.b16 %v514
      %v538 = vunpack.c.l.b16 %v515
      %v539 = vunpack.c.l.b16 %v516
      %v540 = vunpack.c.l.b16 %v517
      %v541 = vpack.c.b16 %v534, %v533
      %v542 = vpack.c.b16 %v536, %v535
      %v543 = vpack.c.b16 %v538, %v537
      %v544 = vpack.c.b16 %v540, %v539
      %vm549 = vcmask 523264
      %v551 = vsel %vm549, %v509, 0
      %553 = vmatprep.subr.bf16.mxu0 0
      %554 = vmatpush1.bf16.msra.mxu0 %v541
      %555 = vmatprep.subr.bf16.mxu0 0
      %556 = vmatpush1.bf16.msra.mxu0 %v542
      %557 = vmatprep.subr.bf16.mxu0 0
      %558 = vmatpush1.bf16.msra.mxu0 %v543
      %559 = vmatprep.subr.bf16.mxu0 0
      %560 = vmatpush1.bf16.msra.mxu0 %v544
      %561 = vmatprep.subr.bf16.mxu0 0
      %562 = vmatpush1.bf16.msra.mxu0 0
      %563 = vmatprep.subr.bf16.mxu0 0
      %564 = vmatpush1.bf16.msra.mxu0 0
      %565 = vmatprep.subr.bf16.mxu0 0
      %566 = vmatpush1.bf16.msra.mxu0 0
      %567 = vmatprep.subr.bf16.mxu0 0
      %568 = vmatpush1.bf16.msra.mxu0 0
      %569 = vmatprep.subr.bf16.mxu0 0
      %570 = vmatpush1.bf16.msra.mxu0 0
      %571 = vmatprep.subr.bf16.mxu0 0
      %572 = vmatpush1.bf16.msra.mxu0 0
      %573 = vmatprep.subr.bf16.mxu0 0
      %574 = vmatpush1.bf16.msra.mxu0 0
      %575 = vmatprep.subr.bf16.mxu0 0
      %576 = vmatpush1.bf16.msra.mxu0 0
      %577 = vmatprep.subr.bf16.mxu0 0
      %578 = vmatpush1.bf16.msra.mxu0 0
      %579 = vmatprep.subr.bf16.mxu0 0
      %580 = vmatpush1.bf16.msra.mxu0 0
      %581 = vmatprep.subr.bf16.mxu0 0
      %582 = vmatpush1.bf16.msra.mxu0 0
      %583 = vmatprep.subr.bf16.mxu0 0
      %584 = vmatpush1.bf16.msra.mxu0 0
      %585 = vmatprep.mubr.bf16.mxu0 0
      %586 = vmatmul.mubr.bf16.gmra.mrb[0].mxu0 %v551
      %v587 = vpop.f32.mrb[0].mxu0
      %v588 = vadd.f32 %v523, %v587
      %v589 = vpop.f32.mrb[0].mxu0
      %v590 = vpop.f32.mrb[0].mxu0
      %v591 = vpop.f32.mrb[0].mxu0
      %592 = vdwg.mxu0
      %v593 = vlaneseq
      %v594 = vshrl.u32 %v593, 7
      %vm595 = vcmp.ge.s32.totalorder %v594, 1
      %v596 = vsel %vm595, %v588, 0.0
      %v597 = vld [vmem:[%s502] sm:$0x1f]
      %v598 = vadd.f32 %v597, %v596
      %v599 = vld [vmem:[%s4] sm:$0x1]
      %v600 = vld [vmem:[%s5] sm:$0x1]
      %vm601 = vcmask 258048
      %v602 = vsel %vm601, %v598, 0.0
      %603 = vadd.xlane.f32.xlu0 %v602
      %v604 = vpop.xlane.xlu0 %603
      %v605 = vrcp.pop 32.0
      %v606 = vmul.f32 %v604, %v605
      %v607 = vsub.f32 %v598, %v606
      %v608 = vmul.f32 %v607, %v607
      %v609 = vsel %vm601, %v608, 0.0
      %610 = vadd.xlane.f32.xlu0 %v609
      %v611 = vpop.xlane.xlu0 %610
      %v612 = vmul.f32 %v611, %v605
      %v613 = vadd.f32 %v612, 1e-05
      %v614 = vrsqrt.pop %v613
      %v615 = vmul.f32 %v607, %v614
      %v617 = vlaneseq
      %v618 = vshrl.u32 %v617, 7
      %v619 = vsub.s32 0, %v618
      %v620 = vrot.slane %v599, %v619
      %v622 = vmul.f32 %v615, %v620
      %v624 = vlaneseq
      %v625 = vshrl.u32 %v624, 7
      %v626 = vsub.s32 0, %v625
      %v627 = vrot.slane %v600, %v626
      %v629 = vadd.f32 %v622, %v627
      %v630 = vpack.c.bf16 %v629, %v629
      %v631 = vld [vmem:[%s6] sm:$0xf]
      %v632 = vld [vmem:[%s6 + $0x4] sm:$0xf]
      %v633 = vld [vmem:[%s6 + $0x8] sm:$0xf]
      %v634 = vld [vmem:[%s6 + $0xc] sm:$0xf]
      %v639 = vunpack.c.l.b16 %v631
      %v640 = vunpack.c.l.b16 %v632
      %v641 = vunpack.c.l.b16 %v633
      %v642 = vunpack.c.l.b16 %v634
      %v643 = vpack.c.b16 %v640, %v639
      %v644 = vpack.c.b16 %v642, %v641
      %vm647 = vcmask 261120
      %v649 = vsel %vm647, %v630, 0
      %651 = vmatprep.subr.bf16.mxu0 0
      %652 = vmatpush1.bf16.msra.mxu0 %v643
      %653 = vmatprep.subr.bf16.mxu0 0
      %654 = vmatpush1.bf16.msra.mxu0 %v644
      %655 = vmatprep.subr.bf16.mxu0 0
      %656 = vmatpush1.bf16.msra.mxu0 0
      %657 = vmatprep.subr.bf16.mxu0 0
      %658 = vmatpush1.bf16.msra.mxu0 0
      %659 = vmatprep.subr.bf16.mxu0 0
      %660 = vmatpush1.bf16.msra.mxu0 0
      %661 = vmatprep.subr.bf16.mxu0 0
      %662 = vmatpush1.bf16.msra.mxu0 0
      %663 = vmatprep.subr.bf16.mxu0 0
      %664 = vmatpush1.bf16.msra.mxu0 0
      %665 = vmatprep.subr.bf16.mxu0 0
      %666 = vmatpush1.bf16.msra.mxu0 0
      %667 = vmatprep.subr.bf16.mxu0 0
      %668 = vmatpush1.bf16.msra.mxu0 0
      %669 = vmatprep.subr.bf16.mxu0 0
      %670 = vmatpush1.bf16.msra.mxu0 0
      %671 = vmatprep.subr.bf16.mxu0 0
      %672 = vmatpush1.bf16.msra.mxu0 0
      %673 = vmatprep.subr.bf16.mxu0 0
      %674 = vmatpush1.bf16.msra.mxu0 0
      %675 = vmatprep.subr.bf16.mxu0 0
      %676 = vmatpush1.bf16.msra.mxu0 0
      %677 = vmatprep.subr.bf16.mxu0 0
      %678 = vmatpush1.bf16.msra.mxu0 0
      %679 = vmatprep.subr.bf16.mxu0 0
      %680 = vmatpush1.bf16.msra.mxu0 0
      %681 = vmatprep.subr.bf16.mxu0 0
      %682 = vmatpush1.bf16.msra.mxu0 0
      %683 = vmatprep.mubr.bf16.mxu0 0
      %684 = vmatmul.mubr.bf16.gmra.mrb[0].mxu0 %v649
      %v685 = vpop.f32.mrb[0].mxu0
      %v686 = vadd.f32 0.0, %v685
      %v687 = vpop.f32.mrb[0].mxu0
      %v688 = vpop.f32.mrb[0].mxu0
      %v689 = vpop.f32.mrb[0].mxu0
      %690 = vdwg.mxu0
      %v691 = vpack.c.bf16 %v686, %v686
      %693 = vrot.lane.b32.xlu0 %v691, 112
      %v694 = vpop.permute.xlu0 %693
      %vm695 = vcmask 64512
      %v697 = vsel %vm695, %v691, 0
      %v700 = vsel %vm695, %v694, 0
      %702 = vmatprep.subr.bf16.mxu0 0
      %703 = vmatpush1.bf16.xpose.msra.mxu0 %v700
      %704 = vmatprep.subr.bf16.mxu0 0
      %705 = vmatpush1.bf16.xpose.msra.mxu0 0
      %706 = vmatprep.subr.bf16.mxu0 0
      %707 = vmatpush1.bf16.xpose.msra.mxu0 0
      %708 = vmatprep.subr.bf16.mxu0 0
      %709 = vmatpush1.bf16.xpose.msra.mxu0 0
      %710 = vmatprep.subr.bf16.mxu0 0
      %711 = vmatpush1.bf16.xpose.msra.mxu0 0
      %712 = vmatprep.subr.bf16.mxu0 0
      %713 = vmatpush1.bf16.xpose.msra.mxu0 0
      %714 = vmatprep.subr.bf16.mxu0 0
      %715 = vmatpush1.bf16.xpose.msra.mxu0 0
      %716 = vmatprep.subr.bf16.mxu0 0
      %717 = vmatpush1.bf16.xpose.msra.mxu0 0
      %718 = vmatprep.subr.bf16.mxu0 0
      %719 = vmatpush1.bf16.xpose.msra.mxu0 0
      %720 = vmatprep.subr.bf16.mxu0 0
      %721 = vmatpush1.bf16.xpose.msra.mxu0 0
      %722 = vmatprep.subr.bf16.mxu0 0
      %723 = vmatpush1.bf16.xpose.msra.mxu0 0
      %724 = vmatprep.subr.bf16.mxu0 0
      %725 = vmatpush1.bf16.xpose.msra.mxu0 0
      %726 = vmatprep.subr.bf16.mxu0 0
      %727 = vmatpush1.bf16.xpose.msra.mxu0 0
      %728 = vmatprep.subr.bf16.mxu0 0
      %729 = vmatpush1.bf16.xpose.msra.mxu0 0
      %730 = vmatprep.subr.bf16.mxu0 0
      %731 = vmatpush1.bf16.xpose.msra.mxu0 0
      %732 = vmatprep.subr.bf16.mxu0 0
      %733 = vmatpush1.bf16.xpose.msra.mxu0 0
      %734 = vmatprep.mubr.bf16.mxu0 0
      %735 = vmatmul.mubr.bf16.gmra.mrb[0].mxu0 %v697
      %v736 = vpop.f32.mrb[0].mxu0
      %v737 = vadd.f32 0.0, %v736
      %v738 = vpop.f32.mrb[0].mxu0
      %v739 = vpop.f32.mrb[0].mxu0
      %v740 = vpop.f32.mrb[0].mxu0
      %741 = vdwg.mxu0
      %vm742 = vcmask 36864
      %v743 = vsel %vm742, %v737, -inf
      %744 = vmax.xlane.f32.xlu0 %v743
      %v745 = vpop.xlane.xlu0 %744
      %v746 = vsub.f32 %v737, %v745
      %v747 = vmul.f32 %v746, 1.442695
      %v748 = vpow.pop %v747
      %v749 = vsel %vm742, %v748, 0.0
      %750 = vadd.xlane.f32.xlu0 %v749
      %v751 = vpop.xlane.xlu0 %750
      %v752 = vrcp.pop %v751
      %v753 = vmul.f32 %v748, %v752
      %v754 = vpack.c.bf16 %v753, %v753
      %755 = vrot.lane.b32.xlu0 %v691, 96
      %v756 = vpop.permute.xlu0 %755
      %vm757 = vcmask 39936
      %v759 = vsel %vm757, %v754, 0
      %vm761 = vcmask 1041408
      %vm762 = vcmask 1042432
      %v763 = vsel %vm761, 4294967295, 65535
      %v764 = vsel %vm762, %v763, 0
      %v766 = vand.u32 %v756, %v764
      %768 = vmatprep.subr.bf16.mxu0 0
      %769 = vmatpush1.bf16.msra.mxu0 %v766
      %770 = vmatprep.subr.bf16.mxu0 0
      %771 = vmatpush1.bf16.msra.mxu0 0
      %772 = vmatprep.subr.bf16.mxu0 0
      %773 = vmatpush1.bf16.msra.mxu0 0
      %774 = vmatprep.subr.bf16.mxu0 0
      %775 = vmatpush1.bf16.msra.mxu0 0
      %776 = vmatprep.subr.bf16.mxu0 0
      %777 = vmatpush1.bf16.msra.mxu0 0
      %778 = vmatprep.subr.bf16.mxu0 0
      %779 = vmatpush1.bf16.msra.mxu0 0
      %780 = vmatprep.subr.bf16.mxu0 0
      %781 = vmatpush1.bf16.msra.mxu0 0
      %782 = vmatprep.subr.bf16.mxu0 0
      %783 = vmatpush1.bf16.msra.mxu0 0
      %784 = vmatprep.subr.bf16.mxu0 0
      %785 = vmatpush1.bf16.msra.mxu0 0
      %786 = vmatprep.subr.bf16.mxu0 0
      %787 = vmatpush1.bf16.msra.mxu0 0
      %788 = vmatprep.subr.bf16.mxu0 0
      %789 = vmatpush1.bf16.msra.mxu0 0
      %790 = vmatprep.subr.bf16.mxu0 0
      %791 = vmatpush1.bf16.msra.mxu0 0
      %792 = vmatprep.subr.bf16.mxu0 0
      %793 = vmatpush1.bf16.msra.mxu0 0
      %794 = vmatprep.subr.bf16.mxu0 0
      %795 = vmatpush1.bf16.msra.mxu0 0
      %796 = vmatprep.subr.bf16.mxu0 0
      %797 = vmatpush1.bf16.msra.mxu0 0
      %798 = vmatprep.subr.bf16.mxu0 0
      %799 = vmatpush1.bf16.msra.mxu0 0
      %800 = vmatprep.mubr.bf16.mxu0 0
      %801 = vmatmul.mubr.bf16.gmra.mrb[0].mxu0 %v759
      %v802 = vpop.f32.mrb[0].mxu0
      %v803 = vadd.f32 0.0, %v802
      %v804 = vpop.f32.mrb[0].mxu0
      %v805 = vpop.f32.mrb[0].mxu0
      %v806 = vpop.f32.mrb[0].mxu0
      %807 = vdwg.mxu0
      %808 = vrot.lane.b32.xlu0 %v691, 120
      %v809 = vpop.permute.xlu0 %808
      %810 = vrot.lane.b32.xlu0 %v691, 104
      %v811 = vpop.permute.xlu0 %810
      %v813 = vsel %vm695, %v809, 0
      %v816 = vsel %vm695, %v811, 0
      %818 = vmatprep.subr.bf16.mxu0 0
      %819 = vmatpush1.bf16.xpose.msra.mxu0 %v816
      %820 = vmatprep.subr.bf16.mxu0 0
      %821 = vmatpush1.bf16.xpose.msra.mxu0 0
      %822 = vmatprep.subr.bf16.mxu0 0
      %823 = vmatpush1.bf16.xpose.msra.mxu0 0
      %824 = vmatprep.subr.bf16.mxu0 0
      %825 = vmatpush1.bf16.xpose.msra.mxu0 0
      %826 = vmatprep.subr.bf16.mxu0 0
      %827 = vmatpush1.bf16.xpose.msra.mxu0 0
      %828 = vmatprep.subr.bf16.mxu0 0
      %829 = vmatpush1.bf16.xpose.msra.mxu0 0
      %830 = vmatprep.subr.bf16.mxu0 0
      %831 = vmatpush1.bf16.xpose.msra.mxu0 0
      %832 = vmatprep.subr.bf16.mxu0 0
      %833 = vmatpush1.bf16.xpose.msra.mxu0 0
      %834 = vmatprep.subr.bf16.mxu0 0
      %835 = vmatpush1.bf16.xpose.msra.mxu0 0
      %836 = vmatprep.subr.bf16.mxu0 0
      %837 = vmatpush1.bf16.xpose.msra.mxu0 0
      %838 = vmatprep.subr.bf16.mxu0 0
      %839 = vmatpush1.bf16.xpose.msra.mxu0 0
      %840 = vmatprep.subr.bf16.mxu0 0
      %841 = vmatpush1.bf16.xpose.msra.mxu0 0
      %842 = vmatprep.subr.bf16.mxu0 0
      %843 = vmatpush1.bf16.xpose.msra.mxu0 0
      %844 = vmatprep.subr.bf16.mxu0 0
      %845 = vmatpush1.bf16.xpose.msra.mxu0 0
      %846 = vmatprep.subr.bf16.mxu0 0
      %847 = vmatpush1.bf16.xpose.msra.mxu0 0
      %848 = vmatprep.subr.bf16.mxu0 0
      %849 = vmatpush1.bf16.xpose.msra.mxu0 0
      %850 = vmatprep.mubr.bf16.mxu0 0
      %851 = vmatmul.mubr.bf16.gmra.mrb[0].mxu0 %v813
      %v852 = vpop.f32.mrb[0].mxu0
      %v853 = vadd.f32 0.0, %v852
      %v854 = vpop.f32.mrb[0].mxu0
      %v855 = vpop.f32.mrb[0].mxu0
      %v856 = vpop.f32.mrb[0].mxu0
      %857 = vdwg.mxu0
      %v858 = vsel %vm742, %v853, -inf
      %859 = vmax.xlane.f32.xlu0 %v858
      %v860 = vpop.xlane.xlu0 %859
      %v861 = vsub.f32 %v853, %v860
      %v862 = vmul.f32 %v861, 1.442695
      %v863 = vpow.pop %v862
      %v864 = vsel %vm742, %v863, 0.0
      %865 = vadd.xlane.f32.xlu0 %v864
      %v866 = vpop.xlane.xlu0 %865
      %v867 = vrcp.pop %v866
      %v868 = vmul.f32 %v863, %v867
      %v869 = vpack.c.bf16 %v868, %v868
      %870 = vrot.lane.b32.xlu0 %v691, 88
      %v871 = vpop.permute.xlu0 %870
      %v873 = vsel %vm757, %v869, 0
      %v876 = vand.u32 %v871, %v764
      %878 = vmatprep.subr.bf16.mxu0 0
      %879 = vmatpush1.bf16.msra.mxu0 %v876
      %880 = vmatprep.subr.bf16.mxu0 0
      %881 = vmatpush1.bf16.msra.mxu0 0
      %882 = vmatprep.subr.bf16.mxu0 0
      %883 = vmatpush1.bf16.msra.mxu0 0
      %884 = vmatprep.subr.bf16.mxu0 0
      %885 = vmatpush1.bf16.msra.mxu0 0
      %886 = vmatprep.subr.bf16.mxu0 0
      %887 = vmatpush1.bf16.msra.mxu0 0
      %888 = vmatprep.subr.bf16.mxu0 0
      %889 = vmatpush1.bf16.msra.mxu0 0
      %890 = vmatprep.subr.bf16.mxu0 0
      %891 = vmatpush1.bf16.msra.mxu0 0
      %892 = vmatprep.subr.bf16.mxu0 0
      %893 = vmatpush1.bf16.msra.mxu0 0
      %894 = vmatprep.subr.bf16.mxu0 0
      %895 = vmatpush1.bf16.msra.mxu0 0
      %896 = vmatprep.subr.bf16.mxu0 0
      %897 = vmatpush1.bf16.msra.mxu0 0
      %898 = vmatprep.subr.bf16.mxu0 0
      %899 = vmatpush1.bf16.msra.mxu0 0
      %900 = vmatprep.subr.bf16.mxu0 0
      %901 = vmatpush1.bf16.msra.mxu0 0
      %902 = vmatprep.subr.bf16.mxu0 0
      %903 = vmatpush1.bf16.msra.mxu0 0
      %904 = vmatprep.subr.bf16.mxu0 0
      %905 = vmatpush1.bf16.msra.mxu0 0
      %906 = vmatprep.subr.bf16.mxu0 0
      %907 = vmatpush1.bf16.msra.mxu0 0
      %908 = vmatprep.subr.bf16.mxu0 0
      %909 = vmatpush1.bf16.msra.mxu0 0
      %910 = vmatprep.mubr.bf16.mxu0 0
      %911 = vmatmul.mubr.bf16.gmra.mrb[0].mxu0 %v873
      %v912 = vpop.f32.mrb[0].mxu0
      %v913 = vadd.f32 0.0, %v912
      %v914 = vpop.f32.mrb[0].mxu0
      %v915 = vpop.f32.mrb[0].mxu0
      %v916 = vpop.f32.mrb[0].mxu0
      %917 = vdwg.mxu0
      %919 = vrot.lane.b32.xlu0 %v913, 8
      %v920 = vpop.permute.xlu0 %919
      %v922 = vsel %vm695, %v803, %v920
      %v923 = vpack.c.bf16 %v922, %v922
      %v924 = vld [vmem:[%s7] sm:$0xf]
      %v925 = vld [vmem:[%s7 + $0x4] sm:$0xf]
      %v928 = vunpack.c.l.b16 %v924
      %v929 = vunpack.c.l.b16 %v925
      %v930 = vpack.c.b16 %v929, %v928
      %vm932 = vcmask 130048
      %v934 = vsel %vm932, %v923, 0
      %936 = vmatprep.subr.bf16.mxu0 0
      %937 = vmatpush1.bf16.msra.mxu0 %v930
      %938 = vmatprep.subr.bf16.mxu0 0
      %939 = vmatpush1.bf16.msra.mxu0 0
      %940 = vmatprep.subr.bf16.mxu0 0
      %941 = vmatpush1.bf16.msra.mxu0 0
      %942 = vmatprep.subr.bf16.mxu0 0
      %943 = vmatpush1.bf16.msra.mxu0 0
      %944 = vmatprep.subr.bf16.mxu0 0
      %945 = vmatpush1.bf16.msra.mxu0 0
      %946 = vmatprep.subr.bf16.mxu0 0
      %947 = vmatpush1.bf16.msra.mxu0 0
      %948 = vmatprep.subr.bf16.mxu0 0
      %949 = vmatpush1.bf16.msra.mxu0 0
      %950 = vmatprep.subr.bf16.mxu0 0
      %951 = vmatpush1.bf16.msra.mxu0 0
      %952 = vmatprep.subr.bf16.mxu0 0
      %953 = vmatpush1.bf16.msra.mxu0 0
      %954 = vmatprep.subr.bf16.mxu0 0
      %955 = vmatpush1.bf16.msra.mxu0 0
      %956 = vmatprep.subr.bf16.mxu0 0
      %957 = vmatpush1.bf16.msra.mxu0 0
      %958 = vmatprep.subr.bf16.mxu0 0
      %959 = vmatpush1.bf16.msra.mxu0 0
      %960 = vmatprep.subr.bf16.mxu0 0
      %961 = vmatpush1.bf16.msra.mxu0 0
      %962 = vmatprep.subr.bf16.mxu0 0
      %963 = vmatpush1.bf16.msra.mxu0 0
      %964 = vmatprep.subr.bf16.mxu0 0
      %965 = vmatpush1.bf16.msra.mxu0 0
      %966 = vmatprep.subr.bf16.mxu0 0
      %967 = vmatpush1.bf16.msra.mxu0 0
      %968 = vmatprep.mubr.bf16.mxu0 0
      %969 = vmatmul.mubr.bf16.gmra.mrb[0].mxu0 %v934
      %v970 = vpop.f32.mrb[0].mxu0
      %v971 = vadd.f32 0.0, %v970
      %v972 = vpop.f32.mrb[0].mxu0
      %v973 = vpop.f32.mrb[0].mxu0
      %v974 = vpop.f32.mrb[0].mxu0
      %975 = vdwg.mxu0
      %v976 = vadd.f32 %v598, %v971
      %v977 = vld [vmem:[%s8] sm:$0x1]
      %v979 = vlaneseq
      %v980 = vshrl.u32 %v979, 7
      %v981 = vsub.s32 0, %v980
      %v982 = vrot.slane %v977, %v981
      %v984 = vadd.f32 %v976, %v982
      %v985 = vld [vmem:[%s9] sm:$0x1]
      %v986 = vld [vmem:[%s10] sm:$0x1]
      %v987 = vsel %vm601, %v984, 0.0
      %988 = vadd.xlane.f32.xlu0 %v987
      %v989 = vpop.xlane.xlu0 %988
      %v990 = vmul.f32 %v989, %v605
      %v991 = vsub.f32 %v984, %v990
      %v992 = vmul.f32 %v991, %v991
      %v993 = vsel %vm601, %v992, 0.0
      %994 = vadd.xlane.f32.xlu0 %v993
      %v995 = vpop.xlane.xlu0 %994
      %v996 = vmul.f32 %v995, %v605
      %v997 = vadd.f32 %v996, 1e-05
      %v998 = vrsqrt.pop %v997
      %v999 = vmul.f32 %v991, %v998
      %v1001 = vlaneseq
      %v1002 = vshrl.u32 %v1001, 7
      %v1003 = vsub.s32 0, %v1002
      %v1004 = vrot.slane %v985, %v1003
      %v1006 = vmul.f32 %v999, %v1004
      %v1008 = vlaneseq
      %v1009 = vshrl.u32 %v1008, 7
      %v1010 = vsub.s32 0, %v1009
      %v1011 = vrot.slane %v986, %v1010
      %v1013 = vadd.f32 %v1006, %v1011
      %v1014 = vpack.c.bf16 %v1013, %v1013
      %v1015 = vld [vmem:[%s11] sm:$0xf]
      %v1016 = vld [vmem:[%s11 + $0x4] sm:$0xf]
      %v1017 = vld [vmem:[%s11 + $0x8] sm:$0xf]
      %v1018 = vld [vmem:[%s11 + $0xc] sm:$0xf]
      %v1019 = vld [vmem:[%s12] sm:$0x1]
      %v1021 = vlaneseq
      %v1022 = vshrl.u32 %v1021, 7
      %v1023 = vsub.s32 0, %v1022
      %v1024 = vrot.slane %v1019, %v1023
      %v1030 = vunpack.c.l.b16 %v1015
      %v1031 = vunpack.c.l.b16 %v1016
      %v1032 = vunpack.c.l.b16 %v1017
      %v1033 = vunpack.c.l.b16 %v1018
      %v1034 = vpack.c.b16 %v1031, %v1030
      %v1035 = vpack.c.b16 %v1033, %v1032
      %v1039 = vsel %vm647, %v1014, 0
      %1041 = vmatprep.subr.bf16.mxu0 0
      %1042 = vmatpush1.bf16.msra.mxu0 %v1034
      %1043 = vmatprep.subr.bf16.mxu0 0
      %1044 = vmatpush1.bf16.msra.mxu0 %v1035
      %1045 = vmatprep.subr.bf16.mxu0 0
      %1046 = vmatpush1.bf16.msra.mxu0 0
      %1047 = vmatprep.subr.bf16.mxu0 0
      %1048 = vmatpush1.bf16.msra.mxu0 0
      %1049 = vmatprep.subr.bf16.mxu0 0
      %1050 = vmatpush1.bf16.msra.mxu0 0
      %1051 = vmatprep.subr.bf16.mxu0 0
      %1052 = vmatpush1.bf16.msra.mxu0 0
      %1053 = vmatprep.subr.bf16.mxu0 0
      %1054 = vmatpush1.bf16.msra.mxu0 0
      %1055 = vmatprep.subr.bf16.mxu0 0
      %1056 = vmatpush1.bf16.msra.mxu0 0
      %1057 = vmatprep.subr.bf16.mxu0 0
      %1058 = vmatpush1.bf16.msra.mxu0 0
      %1059 = vmatprep.subr.bf16.mxu0 0
      %1060 = vmatpush1.bf16.msra.mxu0 0
      %1061 = vmatprep.subr.bf16.mxu0 0
      %1062 = vmatpush1.bf16.msra.mxu0 0
      %1063 = vmatprep.subr.bf16.mxu0 0
      %1064 = vmatpush1.bf16.msra.mxu0 0
      %1065 = vmatprep.subr.bf16.mxu0 0
      %1066 = vmatpush1.bf16.msra.mxu0 0
      %1067 = vmatprep.subr.bf16.mxu0 0
      %1068 = vmatpush1.bf16.msra.mxu0 0
      %1069 = vmatprep.subr.bf16.mxu0 0
      %1070 = vmatpush1.bf16.msra.mxu0 0
      %1071 = vmatprep.subr.bf16.mxu0 0
      %1072 = vmatpush1.bf16.msra.mxu0 0
      %1073 = vmatprep.mubr.bf16.mxu0 0
      %1074 = vmatmul.mubr.bf16.gmra.mrb[0].mxu0 %v1039
      %v1075 = vpop.f32.mrb[0].mxu0
      %v1076 = vadd.f32 %v1024, %v1075
      %v1077 = vpop.f32.mrb[0].mxu0
      %v1078 = vpop.f32.mrb[0].mxu0
      %v1079 = vpop.f32.mrb[0].mxu0
      %1080 = vdwg.mxu0
      %v1081 = vmax.f32 %v1076, 0.0
      %v1082 = vpack.c.bf16 %v1081, %v1081
      %v1083 = vld [vmem:[%s13] sm:$0xf]
      %v1084 = vld [vmem:[%s13 + $0x4] sm:$0xf]
      %v1085 = vld [vmem:[%s13 + $0x8] sm:$0xf]
      %v1086 = vld [vmem:[%s13 + $0xc] sm:$0xf]
      %v1087 = vld [vmem:[%s13 + $0x10] sm:$0xf]
      %v1088 = vld [vmem:[%s13 + $0x14] sm:$0xf]
      %v1089 = vld [vmem:[%s13 + $0x18] sm:$0xf]
      %v1090 = vld [vmem:[%s13 + $0x1c] sm:$0xf]
      %v1091 = vld [vmem:[%s13 + $0x20] sm:$0xf]
      %v1092 = vld [vmem:[%s13 + $0x24] sm:$0xf]
      %v1093 = vld [vmem:[%s13 + $0x28] sm:$0xf]
      %v1094 = vld [vmem:[%s13 + $0x2c] sm:$0xf]
      %v1095 = vld [vmem:[%s13 + $0x30] sm:$0xf]
      %v1096 = vld [vmem:[%s13 + $0x34] sm:$0xf]
      %v1097 = vld [vmem:[%s13 + $0x38] sm:$0xf]
      %v1098 = vld [vmem:[%s13 + $0x3c] sm:$0xf]
      %v1115 = vunpack.c.l.b16 %v1083
      %v1116 = vunpack.c.l.b16 %v1084
      %v1117 = vunpack.c.l.b16 %v1085
      %v1118 = vunpack.c.l.b16 %v1086
      %v1119 = vunpack.c.l.b16 %v1087
      %v1120 = vunpack.c.l.b16 %v1088
      %v1121 = vunpack.c.l.b16 %v1089
      %v1122 = vunpack.c.l.b16 %v1090
      %v1123 = vunpack.c.l.b16 %v1091
      %v1124 = vunpack.c.l.b16 %v1092
      %v1125 = vunpack.c.l.b16 %v1093
      %v1126 = vunpack.c.l.b16 %v1094
      %v1127 = vunpack.c.l.b16 %v1095
      %v1128 = vunpack.c.l.b16 %v1096
      %v1129 = vunpack.c.l.b16 %v1097
      %v1130 = vunpack.c.l.b16 %v1098
      %v1131 = vpack.c.b16 %v1116, %v1115
      %v1132 = vpack.c.b16 %v1118, %v1117
      %v1133 = vpack.c.b16 %v1120, %v1119
      %v1134 = vpack.c.b16 %v1122, %v1121
      %v1135 = vpack.c.b16 %v1124, %v1123
      %v1136 = vpack.c.b16 %v1126, %v1125
      %v1137 = vpack.c.b16 %v1128, %v1127
      %v1138 = vpack.c.b16 %v1130, %v1129
      %1147 = vmatprep.subr.bf16.mxu0 0
      %1148 = vmatpush1.bf16.msra.mxu0 %v1131
      %1149 = vmatprep.subr.bf16.mxu0 0
      %1150 = vmatpush1.bf16.msra.mxu0 %v1132
      %1151 = vmatprep.subr.bf16.mxu0 0
      %1152 = vmatpush1.bf16.msra.mxu0 %v1133
      %1153 = vmatprep.subr.bf16.mxu0 0
      %1154 = vmatpush1.bf16.msra.mxu0 %v1134
      %1155 = vmatprep.subr.bf16.mxu0 0
      %1156 = vmatpush1.bf16.msra.mxu0 %v1135
      %1157 = vmatprep.subr.bf16.mxu0 0
      %1158 = vmatpush1.bf16.msra.mxu0 %v1136
      %1159 = vmatprep.subr.bf16.mxu0 0
      %1160 = vmatpush1.bf16.msra.mxu0 %v1137
      %1161 = vmatprep.subr.bf16.mxu0 0
      %1162 = vmatpush1.bf16.msra.mxu0 %v1138
      %1163 = vmatprep.subr.bf16.mxu0 0
      %1164 = vmatpush1.bf16.msra.mxu0 0
      %1165 = vmatprep.subr.bf16.mxu0 0
      %1166 = vmatpush1.bf16.msra.mxu0 0
      %1167 = vmatprep.subr.bf16.mxu0 0
      %1168 = vmatpush1.bf16.msra.mxu0 0
      %1169 = vmatprep.subr.bf16.mxu0 0
      %1170 = vmatpush1.bf16.msra.mxu0 0
      %1171 = vmatprep.subr.bf16.mxu0 0
      %1172 = vmatpush1.bf16.msra.mxu0 0
      %1173 = vmatprep.subr.bf16.mxu0 0
      %1174 = vmatpush1.bf16.msra.mxu0 0
      %1175 = vmatprep.subr.bf16.mxu0 0
      %1176 = vmatpush1.bf16.msra.mxu0 0
      %1177 = vmatprep.subr.bf16.mxu0 0
      %1178 = vmatpush1.bf16.msra.mxu0 0
      %1179 = vmatprep.mubr.bf16.mxu0 0
      %1180 = vmatmul.mubr.bf16.gmra.mrb[0].mxu0 %v1082
      %v1181 = vpop.f32.mrb[0].mxu0
      %v1182 = vadd.f32 0.0, %v1181
      %v1183 = vpop.f32.mrb[0].mxu0
      %v1184 = vpop.f32.mrb[0].mxu0
      %v1185 = vpop.f32.mrb[0].mxu0
      %1186 = vdwg.mxu0
      %v1187 = vadd.f32 %v984, %v1182
      %v1188 = vld [vmem:[%s14] sm:$0x1]
      %v1190 = vlaneseq
      %v1191 = vshrl.u32 %v1190, 7
      %v1192 = vsub.s32 0, %v1191
      %v1193 = vrot.slane %v1188, %v1192
      %v1195 = vadd.f32 %v1187, %v1193
      %1196 = vst.msk [vmem:[%s506] sm:$0x1f] %vm601, %v1195
      %p1197 = scmp.lt.s32.totalorder %s26, 1
      %s1198 = scalar_select %p1197, %s26, 1
      %s1199 = smul.addr %s1198, 8
      %s1200 = scalar_lea.vmem %s15, %s1199
      // Predicated region
      $region81: #{encoder_forward.8} parent=79 // pred_check
        %p1201 = pneg %p369
      $region82: #{encoder_forward.8} parent=79 // pred_check_branch
        %1203 = sbr.rel (%p1201) target = $region84
      $region83: #{encoder_forward.8} parent=79 // pred_region
        _
      $region84: #{encoder_forward.8} parent=79 // pred_fallthru
        _
    $region80: #{encoder_forward.8} parent=5 // pred_fallthru
      _
    %p1204 = scmp.le.s32.totalorder 2, %s21
    // Predicated region
    $region85: #{encoder_forward.8} parent=5 // pred_check
      %p1205 = pneg %p1204
    $region86: #{encoder_forward.8} parent=5 // pred_check_branch
      %1207 = sbr.rel (%p1205) target = $region88
    $region87: #{encoder_forward.8} parent=5 // pred_region
      %s1208 = ssub.s32 %s21, 2
      // Predicated region
      $region89: #{encoder_forward.8} parent=87 // pred_check
        %p1209 = pneg %p375
      $region90: #{encoder_forward.8} parent=87 // pred_check_branch
        %1211 = sbr.rel (%p1209) target = $region92
      $region91: #{encoder_forward.8} parent=87 // pred_region
        %p1212 = scmp.lt.s32.totalorder %s27, 1
        %s1213 = scalar_select %p1212, %s27, 1
        %s1214 = smul.addr %s1213, 8
        %s1215 = scalar_lea.vmem %s15, %s1214
      $region92: #{encoder_forward.8} parent=87 // pred_fallthru
        _
    $region88: #{encoder_forward.8} parent=5 // pred_fallthru
      _
  $region6: #{encoder_forward.8} parent=0 // loop_footer
    %s25 = sadd.s32 1, %s21
  $region7: #{encoder_forward.8} parent=0 // loop_footer_branch
    %20 = sbr.rel target = $region3
  $region8: #{encoder_forward.8} parent=0 // loop_exit
    _

</llo_original>
